<compile_context>
chip_gen: v7x
topology: tpu7x:2x2x1
jax: 0.10.0
libtpu: 0.0.40
codegen_flags: <defaults>
</compile_context>

<pallas_src>
import jax
import jax.numpy as jnp
from jax.experimental import pallas as pl
from jax.experimental.pallas import tpu as pltpu

IN_DIM = 28 * 28      # 784
H1 = 1024
H2 = 512
NUM_CLASSES = 10
OUT_PAD = 128         # lane-dense padded logits width


def _round_up(n, m):
    return ((n + m - 1) // m) * m


def mlp_kernel(x_ref, w1_ref, b1_ref, w2_ref, b2_ref, w3_ref, b3_ref, o_ref):
    # Entire forward pass fused in VMEM (bf16 weights ~2.7 MB fit easily).
    # bf16 inputs feed the MXU; accumulation / bias / ReLU are f32.
    x = x_ref[...]                                      # bf16 [tile, 784]
    h1 = jnp.dot(x, w1_ref[...], preferred_element_type=jnp.float32) + b1_ref[...]
    h1 = jnp.maximum(h1, 0.0)
    h2 = jnp.dot(h1.astype(jnp.bfloat16), w2_ref[...],
                 preferred_element_type=jnp.float32) + b2_ref[...]
    h2 = jnp.maximum(h2, 0.0)
    out = jnp.dot(h2.astype(jnp.bfloat16), w3_ref[...],
                  preferred_element_type=jnp.float32) + b3_ref[...]
    o_ref[...] = out                                    # f32 [tile, 128]


def mlp_forward(x, params, *, batch_tile=256):
    """x: [B, 784] float32. Returns logits [B, 10] float32."""
    w1, b1, w2, b2, w3, b3 = params
    B = x.shape[0]

    # Lane-dense output: zero-pad fc3 to 128 output columns; slice back below.
    w3p = jnp.pad(w3, ((0, 0), (0, OUT_PAD - NUM_CLASSES)))
    b3p = jnp.pad(b3, ((0, 0), (0, OUT_PAD - NUM_CLASSES)))

    # bf16 MXU inputs; biases stay f32 (f32 VPU math, important on v5e).
    x_bf = x.astype(jnp.bfloat16)
    w1_bf = w1.astype(jnp.bfloat16)
    w2_bf = w2.astype(jnp.bfloat16)
    w3_bf = w3p.astype(jnp.bfloat16)

    # Batch tiling: fill the MXU M dimension; small batches get a single tile.
    tile = min(batch_tile, max(_round_up(B, 8), 8))
    Bp = _round_up(B, tile)
    if Bp != B:
        x_bf = jnp.pad(x_bf, ((0, Bp - B), (0, 0)))
    grid = (Bp // tile,)

    # Weights / biases are loaded whole; constant block index -> DMA'd once.
    full = lambda shape: pl.BlockSpec(shape, lambda i: (0, 0))

    out = pl.pallas_call(
        mlp_kernel,
        out_shape=jax.ShapeDtypeStruct((Bp, OUT_PAD), jnp.float32),
        grid_spec=pltpu.PrefetchScalarGridSpec(
            num_scalar_prefetch=0,
            grid=grid,
            in_specs=[
                pl.BlockSpec((tile, IN_DIM), lambda i: (i, 0)),   # x tile
                full((IN_DIM, H1)),                               # w1 (bf16)
                full((1, H1)),                                    # b1 (f32)
                full((H1, H2)),                                   # w2 (bf16)
                full((1, H2)),                                    # b2 (f32)
                full((H2, OUT_PAD)),                              # w3 padded (bf16)
                full((1, OUT_PAD)),                               # b3 padded (f32)
            ],
            out_specs=pl.BlockSpec((tile, OUT_PAD), lambda i: (i, 0)),
        ),
        compiler_params=pltpu.CompilerParams(
            dimension_semantics=("parallel",),   # megacore-shardable on v7x
            vmem_limit_bytes=32 << 20,
        ),
    )(x_bf, w1_bf, b1, w2_bf, b2, w3_bf, b3p)

    return out[:B, :NUM_CLASSES]


def init_params(key):
    """Deterministic synthetic init (shapes match the nn.Linear layers)."""
    ks = jax.random.split(key, 6)

    def linear(k_w, k_b, fan_in, fan_out):
        bound = 1.0 / jnp.sqrt(fan_in)
        # stored as [in, out] (pre-transposed relative to PyTorch's [out, in])
        w = jax.random.uniform(k_w, (fan_in, fan_out), jnp.float32, -bound, bound)
        b = jax.random.uniform(k_b, (1, fan_out), jnp.float32, -bound, bound)
        return w, b

    w1, b1 = linear(ks[0], ks[1], IN_DIM, H1)
    w2, b2 = linear(ks[2], ks[3], H1, H2)
    w3, b3 = linear(ks[4], ks[5], H2, NUM_CLASSES)
    return (w1, b1, w2, b2, w3, b3)


def mlp_reference(x, params):
    """Pure-JAX reference emulating the kernel's bf16-input / f32-accum math."""
    w1, b1, w2, b2, w3, b3 = params
    bf = lambda a: a.astype(jnp.bfloat16)
    h1 = jnp.maximum(jnp.dot(bf(x), bf(w1), preferred_element_type=jnp.float32) + b1, 0.0)
    h2 = jnp.maximum(jnp.dot(bf(h1), bf(w2), preferred_element_type=jnp.float32) + b2, 0.0)
    return jnp.dot(bf(h2), bf(w3), preferred_element_type=jnp.float32) + b3


if __name__ == "__main__":
    key = jax.random.PRNGKey(0)
    k_params, k_x = jax.random.split(key)

    params = init_params(k_params)

    # Small single-tile batch.
    batch = 32
    x = jax.random.normal(k_x, (batch, IN_DIM), dtype=jnp.float32)
    out = jax.block_until_ready(mlp_forward(x, params))
    ref = mlp_reference(x, params)
    assert out.shape == (batch, NUM_CLASSES)
    assert jnp.allclose(out, ref, atol=1e-3, rtol=1e-3)

    # Multi-step grid path (exercises batch tiling / the "parallel" axis).
    batch2 = 64
    x2 = jax.random.normal(jax.random.PRNGKey(1), (batch2, IN_DIM), dtype=jnp.float32)
    out2 = jax.block_until_ready(mlp_forward(x2, params, batch_tile=16))
    ref2 = mlp_reference(x2, params)
    assert out2.shape == (batch2, NUM_CLASSES)
    assert jnp.allclose(out2, ref2, atol=1e-3, rtol=1e-3)

    print("KERNEL_OK")
</pallas_src>

<mosaic_0001>
module attributes {stable_mosaic.version = 11 : i64} {
  func.func @mlp_kernel(%arg0: i32, %arg1: memref<32x784xbf16, #tpu.memory_space<vmem>>, %arg2: memref<784x1024xbf16, #tpu.memory_space<vmem>>, %arg3: memref<1x1024xf32, #tpu.memory_space<vmem>>, %arg4: memref<1024x512xbf16, #tpu.memory_space<vmem>>, %arg5: memref<1x512xf32, #tpu.memory_space<vmem>>, %arg6: memref<512x128xbf16, #tpu.memory_space<vmem>>, %arg7: memref<1x128xf32, #tpu.memory_space<vmem>>, %arg8: memref<32x128xf32, #tpu.memory_space<vmem>>) attributes {dimension_semantics = [#tpu.dimension_semantics<parallel>], iteration_bounds = array<i64: 1>, scalar_prefetch = 0 : i64, scratch_operands = 0 : i64, tpu.core_type = #tpu.core_type<tc>, window_params = [{transform_indices = @transform_0, window_bounds = array<i64: 32, 784>}, {pipeline_mode = #tpu.pipeline_mode<synchronous>, transform_indices = @transform_1, window_bounds = array<i64: 784, 1024>}, {pipeline_mode = #tpu.pipeline_mode<synchronous>, transform_indices = @transform_2, window_bounds = array<i64: 1, 1024>}, {pipeline_mode = #tpu.pipeline_mode<synchronous>, transform_indices = @transform_3, window_bounds = array<i64: 1024, 512>}, {pipeline_mode = #tpu.pipeline_mode<synchronous>, transform_indices = @transform_4, window_bounds = array<i64: 1, 512>}, {pipeline_mode = #tpu.pipeline_mode<synchronous>, transform_indices = @transform_5, window_bounds = array<i64: 512, 128>}, {pipeline_mode = #tpu.pipeline_mode<synchronous>, transform_indices = @transform_6, window_bounds = array<i64: 1, 128>}, {transform_indices = @transform_7, window_bounds = array<i64: 32, 128>}]} {
    %c0 = arith.constant 0 : index
    %c0_0 = arith.constant 0 : index
    %0 = vector.load %arg1[%c0, %c0_0] : memref<32x784xbf16, #tpu.memory_space<vmem>>, vector<32x784xbf16>
    %c0_1 = arith.constant 0 : index
    %c0_2 = arith.constant 0 : index
    %1 = vector.load %arg2[%c0_1, %c0_2] : memref<784x1024xbf16, #tpu.memory_space<vmem>>, vector<784x1024xbf16>
    %cst = arith.constant dense<0.000000e+00> : vector<32x1024xf32>
    %2 = tpu.matmul %0, %1, %cst {dimension_numbers = #tpu.dot_dimension_numbers<[1], [0], [0], [1], [0, 0, 1, 1], [], []>} : vector<32x784xbf16>, vector<784x1024xbf16>, vector<32x1024xf32> -> vector<32x1024xf32>
    %c0_3 = arith.constant 0 : index
    %c0_4 = arith.constant 0 : index
    %3 = vector.load %arg3[%c0_3, %c0_4] : memref<1x1024xf32, #tpu.memory_space<vmem>>, vector<1x1024xf32>
    %4 = vector.broadcast %3 : vector<1x1024xf32> to vector<32x1024xf32>
    %5 = arith.addf %2, %4 : vector<32x1024xf32>
    %cst_5 = arith.constant 0.000000e+00 : f32
    %6 = vector.broadcast %cst_5 : f32 to vector<32x1024xf32>
    %7 = arith.maximumf %5, %6 : vector<32x1024xf32>
    %8 = arith.truncf %7 : vector<32x1024xf32> to vector<32x1024xbf16>
    %c0_6 = arith.constant 0 : index
    %c0_7 = arith.constant 0 : index
    %9 = vector.load %arg4[%c0_6, %c0_7] : memref<1024x512xbf16, #tpu.memory_space<vmem>>, vector<1024x512xbf16>
    %cst_8 = arith.constant dense<0.000000e+00> : vector<32x512xf32>
    %10 = tpu.matmul %8, %9, %cst_8 {dimension_numbers = #tpu.dot_dimension_numbers<[1], [0], [0], [1], [0, 0, 1, 1], [], []>} : vector<32x1024xbf16>, vector<1024x512xbf16>, vector<32x512xf32> -> vector<32x512xf32>
    %c0_9 = arith.constant 0 : index
    %c0_10 = arith.constant 0 : index
    %11 = vector.load %arg5[%c0_9, %c0_10] : memref<1x512xf32, #tpu.memory_space<vmem>>, vector<1x512xf32>
    %12 = vector.broadcast %11 : vector<1x512xf32> to vector<32x512xf32>
    %13 = arith.addf %10, %12 : vector<32x512xf32>
    %cst_11 = arith.constant 0.000000e+00 : f32
    %14 = vector.broadcast %cst_11 : f32 to vector<32x512xf32>
    %15 = arith.maximumf %13, %14 : vector<32x512xf32>
    %16 = arith.truncf %15 : vector<32x512xf32> to vector<32x512xbf16>
    %c0_12 = arith.constant 0 : index
    %c0_13 = arith.constant 0 : index
    %17 = vector.load %arg6[%c0_12, %c0_13] : memref<512x128xbf16, #tpu.memory_space<vmem>>, vector<512x128xbf16>
    %cst_14 = arith.constant dense<0.000000e+00> : vector<32x128xf32>
    %18 = tpu.matmul %16, %17, %cst_14 {dimension_numbers = #tpu.dot_dimension_numbers<[1], [0], [0], [1], [0, 0, 1, 1], [], []>} : vector<32x512xbf16>, vector<512x128xbf16>, vector<32x128xf32> -> vector<32x128xf32>
    %c0_15 = arith.constant 0 : index
    %c0_16 = arith.constant 0 : index
    %19 = vector.load %arg7[%c0_15, %c0_16] : memref<1x128xf32, #tpu.memory_space<vmem>>, vector<1x128xf32>
    %20 = vector.broadcast %19 : vector<1x128xf32> to vector<32x128xf32>
    %21 = arith.addf %18, %20 : vector<32x128xf32>
    %c0_17 = arith.constant 0 : index
    %c0_18 = arith.constant 0 : index
    %22 = vector.load %arg8[%c0_17, %c0_18] : memref<32x128xf32, #tpu.memory_space<vmem>>, vector<32x128xf32>
    tpu.vector_store %arg8[%c0_17, %c0_18], %21 {strides = array<i32>} : memref<32x128xf32, #tpu.memory_space<vmem>>, vector<32x128xf32>,
    return
  }
  func.func @transform_0(%arg0: i32) -> (i32, i32) {
    %c0_i32 = arith.constant 0 : i32
    %c0_i32_0 = arith.constant 0 : i32
    return %arg0, %c0_i32 : i32, i32
  }
  func.func @transform_1(%arg0: i32) -> (i32, i32) {
    %c0_i32 = arith.constant 0 : i32
    %c0_i32_0 = arith.constant 0 : i32
    %c0_i32_1 = arith.constant 0 : i32
    return %c0_i32, %c0_i32_0 : i32, i32
  }
  func.func @transform_2(%arg0: i32) -> (i32, i32) {
    %c0_i32 = arith.constant 0 : i32
    %c0_i32_0 = arith.constant 0 : i32
    %c0_i32_1 = arith.constant 0 : i32
    return %c0_i32, %c0_i32_0 : i32, i32
  }
  func.func @transform_3(%arg0: i32) -> (i32, i32) {
    %c0_i32 = arith.constant 0 : i32
    %c0_i32_0 = arith.constant 0 : i32
    %c0_i32_1 = arith.constant 0 : i32
    return %c0_i32, %c0_i32_0 : i32, i32
  }
  func.func @transform_4(%arg0: i32) -> (i32, i32) {
    %c0_i32 = arith.constant 0 : i32
    %c0_i32_0 = arith.constant 0 : i32
    %c0_i32_1 = arith.constant 0 : i32
    return %c0_i32, %c0_i32_0 : i32, i32
  }
  func.func @transform_5(%arg0: i32) -> (i32, i32) {
    %c0_i32 = arith.constant 0 : i32
    %c0_i32_0 = arith.constant 0 : i32
    %c0_i32_1 = arith.constant 0 : i32
    return %c0_i32, %c0_i32_0 : i32, i32
  }
  func.func @transform_6(%arg0: i32) -> (i32, i32) {
    %c0_i32 = arith.constant 0 : i32
    %c0_i32_0 = arith.constant 0 : i32
    %c0_i32_1 = arith.constant 0 : i32
    return %c0_i32, %c0_i32_0 : i32, i32
  }
  func.func @transform_7(%arg0: i32) -> (i32, i32) {
    %c0_i32 = arith.constant 0 : i32
    %c0_i32_0 = arith.constant 0 : i32
    return %arg0, %c0_i32 : i32, i32
  }
}

</mosaic_0001>

<llo_original>
// kernel: tpu_custom_call.1
$region0: #{tpu_custom_call.1}
  #allocation0 [shape = 'u32[]', space=smem, size = 0x4, offset = 0x4, fixed_abs, tag = 'smem constant byte address 0x4 - core index']
  #allocation1 [shape = 'u32[144,128]{1,0:T(1,128)}', space=vmem, size = 0x12000, scoped, tag = 'internal scratch']
  %s0 = inlined_call_operand.hbm [shape: bf16[32,784], index: 0, kind: input, shape index: {}]
  %s1 = inlined_call_operand.hbm [shape: bf16[784,1024], index: 1, kind: input, shape index: {}]
  %s2 = inlined_call_operand.hbm [shape: f32[1,1024], index: 2, kind: input, shape index: {}]
  %s3 = inlined_call_operand.hbm [shape: bf16[1024,512], index: 3, kind: input, shape index: {}]
  %s4 = inlined_call_operand.hbm [shape: f32[1,512], index: 4, kind: input, shape index: {}]
  %s5 = inlined_call_operand.hbm [shape: bf16[512,128], index: 5, kind: input, shape index: {}]
  %s6 = inlined_call_operand.hbm [shape: f32[1,128], index: 6, kind: input, shape index: {}]
  %s7 = inlined_call_operand.hbm [shape: f32[32,128], index: 7, kind: output, shape index: {}]
  %s8 = sld [smem:[#allocation0]]
  $region66: #{tpu_custom_call.1} parent=0
    _
  %s10 = ssub.s32 1, %s8
  %s11 = scalar_select 0, %s10, %s8
  $region1: #{tpu_custom_call.1} parent=0
    #allocation2 [shape = 'u8[57344]{0}', space=vmem, size = 0xe000, scoped, tag = 'input window, operand 0, single buffered']
    #allocation3 [shape = 's32[1]{0}', space=sflag, size = 0x4, scoped, tag = 'scoped memory for tpu_custom_call.1']
    #allocation4 [shape = 's32[1]{0}', space=sflag, size = 0x4, scoped, tag = 'scoped memory for tpu_custom_call.1']
    #allocation5 [shape = 'u8[1605632]{0}', space=vmem, size = 0x188000, scoped, tag = 'input window, operand 1, single buffered']
    #allocation6 [shape = 's32[1]{0}', space=sflag, size = 0x4, scoped, tag = 'scoped memory for tpu_custom_call.1']
    #allocation7 [shape = 'u8[4096]{0}', space=vmem, size = 0x1000, scoped, tag = 'input window, operand 2, single buffered']
    #allocation8 [shape = 'u8[1048576]{0}', space=vmem, size = 0x100000, scoped, tag = 'input window, operand 3, single buffered']
    #allocation9 [shape = 's32[1]{0}', space=sflag, size = 0x4, scoped, tag = 'scoped memory for tpu_custom_call.1']
    #allocation10 [shape = 'u8[2048]{0}', space=vmem, size = 0x800, scoped, tag = 'input window, operand 4, single buffered']
    #allocation11 [shape = 'u8[131072]{0}', space=vmem, size = 0x20000, scoped, tag = 'input window, operand 5, single buffered']
    #allocation12 [shape = 's32[1]{0}', space=sflag, size = 0x4, scoped, tag = 'scoped memory for tpu_custom_call.1']
    #allocation13 [shape = 'u8[512]{0}', space=vmem, size = 0x400, scoped, tag = 'input window, operand 6, single buffered']
    #allocation14 [shape = 'u8[16384]{0}', space=vmem, size = 0x4000, scoped, tag = 'output window, operand 0, single buffered']
    %12 = vsyncpa [#allocation3], 0
    %13 = vsyncpa [#allocation6], 0
    %14 = vsyncpa [#allocation9], 0
    %15 = vsyncpa [#allocation12], 0
    %16 = vsyncpa [#allocation4], 0
    // Predicated region
    $region2: #{tpu_custom_call.1} parent=1 // pred_check
      _
    $region3: #{tpu_custom_call.1} parent=1 // pred_check_branch
      %18 = sbr.rel (0) target = $region5
    $region4: #{tpu_custom_call.1} parent=1 // pred_region
      %s20 = ssub.s32 1792, 1792
      %21 = vsyncadd [#allocation3], %s20
      %s22 = sshll.u32 [#allocation2], 4
      %s23 = int_to_ptr.vmem [resolvable:$true] %s22
      %28 = dma.hbm_to_vmem [thread:$0]  %s0, 1792, %s23, [#allocation3], 448, 448, 28
    $region5: #{tpu_custom_call.1} parent=1 // pred_fallthru
      _
    // Predicated region
    $region6: #{tpu_custom_call.1} parent=1 // pred_check
      _
    $region7: #{tpu_custom_call.1} parent=1 // pred_check_branch
      %30 = sbr.rel (0) target = $region9
    $region8: #{tpu_custom_call.1} parent=1 // pred_region
      %s32 = ssub.s32 50176, 50176
      %33 = vsyncadd [#allocation6], %s32
      %s34 = sshll.u32 [#allocation5], 4
      %s35 = int_to_ptr.vmem [resolvable:$true] %s34
      %40 = dma.hbm_to_vmem [thread:$0]  %s1, 50176, %s35, [#allocation6], 512, 512, 32
    $region9: #{tpu_custom_call.1} parent=1 // pred_fallthru
      _
    // Predicated region
    $region10: #{tpu_custom_call.1} parent=1 // pred_check
      _
    $region11: #{tpu_custom_call.1} parent=1 // pred_check_branch
      %42 = sbr.rel (0) target = $region13
    $region12: #{tpu_custom_call.1} parent=1 // pred_region
      %s44 = ssub.s32 128, 128
      %45 = vsyncadd [#allocation6], %s44
      %s47 = sshll.u32 [#allocation7], 4
      %s48 = int_to_ptr.vmem [resolvable:$true] %s47
      %50 = dma.hbm_to_vmem [thread:$0]  %s2, 128, %s48, [#allocation6]
    $region13: #{tpu_custom_call.1} parent=1 // pred_fallthru
      _
    // Predicated region
    $region14: #{tpu_custom_call.1} parent=1 // pred_check
      _
    $region15: #{tpu_custom_call.1} parent=1 // pred_check_branch
      %52 = sbr.rel (0) target = $region17
    $region16: #{tpu_custom_call.1} parent=1 // pred_region
      %s54 = ssub.s32 32768, 32768
      %55 = vsyncadd [#allocation9], %s54
      %s56 = sshll.u32 [#allocation8], 4
      %s57 = int_to_ptr.vmem [resolvable:$true] %s56
      %62 = dma.hbm_to_vmem [thread:$0]  %s3, 32768, %s57, [#allocation9], 256, 256, 16
    $region17: #{tpu_custom_call.1} parent=1 // pred_fallthru
      _
    // Predicated region
    $region18: #{tpu_custom_call.1} parent=1 // pred_check
      _
    $region19: #{tpu_custom_call.1} parent=1 // pred_check_branch
      %64 = sbr.rel (0) target = $region21
    $region20: #{tpu_custom_call.1} parent=1 // pred_region
      %s66 = ssub.s32 64, 64
      %67 = vsyncadd [#allocation9], %s66
      %s69 = sshll.u32 [#allocation10], 4
      %s70 = int_to_ptr.vmem [resolvable:$true] %s69
      %72 = dma.hbm_to_vmem [thread:$0]  %s4, 64, %s70, [#allocation9]
    $region21: #{tpu_custom_call.1} parent=1 // pred_fallthru
      _
    // Predicated region
    $region22: #{tpu_custom_call.1} parent=1 // pred_check
      _
    $region23: #{tpu_custom_call.1} parent=1 // pred_check_branch
      %74 = sbr.rel (0) target = $region25
    $region24: #{tpu_custom_call.1} parent=1 // pred_region
      %s76 = ssub.s32 4096, 4096
      %77 = vsyncadd [#allocation12], %s76
      %s78 = sshll.u32 [#allocation11], 4
      %s79 = int_to_ptr.vmem [resolvable:$true] %s78
      %84 = dma.hbm_to_vmem [thread:$0]  %s5, 4096, %s79, [#allocation12], 64, 64, 4
    $region25: #{tpu_custom_call.1} parent=1 // pred_fallthru
      _
    // Predicated region
    $region26: #{tpu_custom_call.1} parent=1 // pred_check
      _
    $region27: #{tpu_custom_call.1} parent=1 // pred_check_branch
      %86 = sbr.rel (0) target = $region29
    $region28: #{tpu_custom_call.1} parent=1 // pred_region
      %s88 = ssub.s32 16, 16
      %89 = vsyncadd [#allocation12], %s88
      %s91 = sshll.u32 [#allocation13], 4
      %s92 = int_to_ptr.vmem [resolvable:$true] %s91
      %94 = dma.hbm_to_vmem [thread:$0]  %s6, 16, %s92, [#allocation12]
    $region29: #{tpu_custom_call.1} parent=1 // pred_fallthru
      _
    // Predicated region
    $region30: #{tpu_custom_call.1} parent=1 // pred_check
      _
    $region31: #{tpu_custom_call.1} parent=1 // pred_check_branch
      %96 = sbr.rel (0) target = $region33
    $region32: #{tpu_custom_call.1} parent=1 // pred_region
      %97 = dma.done [#allocation3], 1792
    $region33: #{tpu_custom_call.1} parent=1 // pred_fallthru
      _
    // Predicated region
    $region34: #{tpu_custom_call.1} parent=1 // pred_check
      _
    $region35: #{tpu_custom_call.1} parent=1 // pred_check_branch
      %99 = sbr.rel (0) target = $region37
    $region36: #{tpu_custom_call.1} parent=1 // pred_region
      %100 = dma.done [#allocation6], 50176
    $region37: #{tpu_custom_call.1} parent=1 // pred_fallthru
      _
    // Predicated region
    $region38: #{tpu_custom_call.1} parent=1 // pred_check
      _
    $region39: #{tpu_custom_call.1} parent=1 // pred_check_branch
      %102 = sbr.rel (0) target = $region41
    $region40: #{tpu_custom_call.1} parent=1 // pred_region
      %103 = dma.done [#allocation6], 128
    $region41: #{tpu_custom_call.1} parent=1 // pred_fallthru
      _
    // Predicated region
    $region42: #{tpu_custom_call.1} parent=1 // pred_check
      _
    $region43: #{tpu_custom_call.1} parent=1 // pred_check_branch
      %105 = sbr.rel (0) target = $region45
    $region44: #{tpu_custom_call.1} parent=1 // pred_region
      %106 = dma.done [#allocation9], 32768
    $region45: #{tpu_custom_call.1} parent=1 // pred_fallthru
      _
    // Predicated region
    $region46: #{tpu_custom_call.1} parent=1 // pred_check
      _
    $region47: #{tpu_custom_call.1} parent=1 // pred_check_branch
      %108 = sbr.rel (0) target = $region49
    $region48: #{tpu_custom_call.1} parent=1 // pred_region
      %109 = dma.done [#allocation9], 64
    $region49: #{tpu_custom_call.1} parent=1 // pred_fallthru
      _
    // Predicated region
    $region50: #{tpu_custom_call.1} parent=1 // pred_check
      _
    $region51: #{tpu_custom_call.1} parent=1 // pred_check_branch
      %111 = sbr.rel (0) target = $region53
    $region52: #{tpu_custom_call.1} parent=1 // pred_region
      %112 = dma.done [#allocation12], 4096
    $region53: #{tpu_custom_call.1} parent=1 // pred_fallthru
      _
    // Predicated region
    $region54: #{tpu_custom_call.1} parent=1 // pred_check
      _
    $region55: #{tpu_custom_call.1} parent=1 // pred_check_branch
      %114 = sbr.rel (0) target = $region57
    $region56: #{tpu_custom_call.1} parent=1 // pred_region
      %115 = dma.done [#allocation12], 16
    $region57: #{tpu_custom_call.1} parent=1 // pred_fallthru
      _
    %v117 = vld [vmem:[#allocation2] sm:$0xff]
    %v118 = vld [vmem:[#allocation2 + $0x8] sm:$0xff]
    %v119 = vld [vmem:[#allocation2 + $0x10] sm:$0xff]
    %v120 = vld [vmem:[#allocation2 + $0x18] sm:$0xf]
    %v121 = vld [vmem:[#allocation2 + $0x1c] sm:$0xff]
    %v122 = vld [vmem:[#allocation2 + $0x24] sm:$0xff]
    %v123 = vld [vmem:[#allocation2 + $0x2c] sm:$0xff]
    %v124 = vld [vmem:[#allocation2 + $0x34] sm:$0xf]
    %v125 = vld [vmem:[#allocation2 + $0x38] sm:$0xff]
    %v126 = vld [vmem:[#allocation2 + $0x40] sm:$0xff]
    %v127 = vld [vmem:[#allocation2 + $0x48] sm:$0xff]
    %v128 = vld [vmem:[#allocation2 + $0x50] sm:$0xf]
    %v129 = vld [vmem:[#allocation2 + $0x54] sm:$0xff]
    %v130 = vld [vmem:[#allocation2 + $0x5c] sm:$0xff]
    %v131 = vld [vmem:[#allocation2 + $0x64] sm:$0xff]
    %v132 = vld [vmem:[#allocation2 + $0x6c] sm:$0xf]
    %v133 = vld [vmem:[#allocation5] sm:$0xff]
    %v134 = vld [vmem:[#allocation5 + $0x8] sm:$0xff]
    %v135 = vld [vmem:[#allocation5 + $0x10] sm:$0xff]
    %v136 = vld [vmem:[#allocation5 + $0x18] sm:$0xff]
    %v137 = vld [vmem:[#allocation5 + $0x20] sm:$0xff]
    %v138 = vld [vmem:[#allocation5 + $0x28] sm:$0xff]
    %v139 = vld [vmem:[#allocation5 + $0x30] sm:$0xff]
    %v140 = vld [vmem:[#allocation5 + $0x38] sm:$0xff]
    %v141 = vld [vmem:[#allocation5 + $0x40] sm:$0xff]
    %v142 = vld [vmem:[#allocation5 + $0x48] sm:$0xff]
    %v143 = vld [vmem:[#allocation5 + $0x50] sm:$0xff]
    %v144 = vld [vmem:[#allocation5 + $0x58] sm:$0xff]
    %v145 = vld [vmem:[#allocation5 + $0x60] sm:$0xff]
    %v146 = vld [vmem:[#allocation5 + $0x68] sm:$0xff]
    %v147 = vld [vmem:[#allocation5 + $0x70] sm:$0xff]
    %v148 = vld [vmem:[#allocation5 + $0x78] sm:$0xff]
    %v149 = vld [vmem:[#allocation5 + $0x80] sm:$0xff]
    %v150 = vld [vmem:[#allocation5 + $0x88] sm:$0xff]
    %v151 = vld [vmem:[#allocation5 + $0x90] sm:$0xff]
    %v152 = vld [vmem:[#allocation5 + $0x98] sm:$0xff]
    %v153 = vld [vmem:[#allocation5 + $0xa0] sm:$0xff]
    %v154 = vld [vmem:[#allocation5 + $0xa8] sm:$0xff]
    %v155 = vld [vmem:[#allocation5 + $0xb0] sm:$0xff]
    %v156 = vld [vmem:[#allocation5 + $0xb8] sm:$0xff]
    %v157 = vld [vmem:[#allocation5 + $0xc0] sm:$0xff]
    %v158 = vld [vmem:[#allocation5 + $0xc8] sm:$0xff]
    %v159 = vld [vmem:[#allocation5 + $0xd0] sm:$0xff]
    %v160 = vld [vmem:[#allocation5 + $0xd8] sm:$0xff]
    %v161 = vld [vmem:[#allocation5 + $0xe0] sm:$0xff]
    %v162 = vld [vmem:[#allocation5 + $0xe8] sm:$0xff]
    %v163 = vld [vmem:[#allocation5 + $0xf0] sm:$0xff]
    %v164 = vld [vmem:[#allocation5 + $0xf8] sm:$0xff]
    %v165 = vld [vmem:[#allocation5 + $0x100] sm:$0xff]
    %v166 = vld [vmem:[#allocation5 + $0x108] sm:$0xff]
    %v167 = vld [vmem:[#allocation5 + $0x110] sm:$0xff]
    %v168 = vld [vmem:[#allocation5 + $0x118] sm:$0xff]
    %v169 = vld [vmem:[#allocation5 + $0x120] sm:$0xff]
    %v170 = vld [vmem:[#allocation5 + $0x128] sm:$0xff]
    %v171 = vld [vmem:[#allocation5 + $0x130] sm:$0xff]
    %v172 = vld [vmem:[#allocation5 + $0x138] sm:$0xff]
    %v173 = vld [vmem:[#allocation5 + $0x140] sm:$0xff]
    %v174 = vld [vmem:[#allocation5 + $0x148] sm:$0xff]
    %v175 = vld [vmem:[#allocation5 + $0x150] sm:$0xff]
    %v176 = vld [vmem:[#allocation5 + $0x158] sm:$0xff]
    %v177 = vld [vmem:[#allocation5 + $0x160] sm:$0xff]
    %v178 = vld [vmem:[#allocation5 + $0x168] sm:$0xff]
    %v179 = vld [vmem:[#allocation5 + $0x170] sm:$0xff]
    %v180 = vld [vmem:[#allocation5 + $0x178] sm:$0xff]
    %v181 = vld [vmem:[#allocation5 + $0x180] sm:$0xff]
    %v182 = vld [vmem:[#allocation5 + $0x188] sm:$0xff]
    %v183 = vld [vmem:[#allocation5 + $0x190] sm:$0xff]
    %v184 = vld [vmem:[#allocation5 + $0x198] sm:$0xff]
    %v185 = vld [vmem:[#allocation5 + $0x1a0] sm:$0xff]
    %v186 = vld [vmem:[#allocation5 + $0x1a8] sm:$0xff]
    %v187 = vld [vmem:[#allocation5 + $0x1b0] sm:$0xff]
    %v188 = vld [vmem:[#allocation5 + $0x1b8] sm:$0xff]
    %v189 = vld [vmem:[#allocation5 + $0x1c0] sm:$0xff]
    %v190 = vld [vmem:[#allocation5 + $0x1c8] sm:$0xff]
    %v191 = vld [vmem:[#allocation5 + $0x1d0] sm:$0xff]
    %v192 = vld [vmem:[#allocation5 + $0x1d8] sm:$0xff]
    %v193 = vld [vmem:[#allocation5 + $0x1e0] sm:$0xff]
    %v194 = vld [vmem:[#allocation5 + $0x1e8] sm:$0xff]
    %v195 = vld [vmem:[#allocation5 + $0x1f0] sm:$0xff]
    %v196 = vld [vmem:[#allocation5 + $0x1f8] sm:$0xff]
    %v197 = vld [vmem:[#allocation5 + $0x200] sm:$0xff]
    %v198 = vld [vmem:[#allocation5 + $0x208] sm:$0xff]
    %v199 = vld [vmem:[#allocation5 + $0x210] sm:$0xff]
    %v200 = vld [vmem:[#allocation5 + $0x218] sm:$0xff]
    %v201 = vld [vmem:[#allocation5 + $0x220] sm:$0xff]
    %v202 = vld [vmem:[#allocation5 + $0x228] sm:$0xff]
    %v203 = vld [vmem:[#allocation5 + $0x230] sm:$0xff]
    %v204 = vld [vmem:[#allocation5 + $0x238] sm:$0xff]
    %v205 = vld [vmem:[#allocation5 + $0x240] sm:$0xff]
    %v206 = vld [vmem:[#allocation5 + $0x248] sm:$0xff]
    %v207 = vld [vmem:[#allocation5 + $0x250] sm:$0xff]
    %v208 = vld [vmem:[#allocation5 + $0x258] sm:$0xff]
    %v209 = vld [vmem:[#allocation5 + $0x260] sm:$0xff]
    %v210 = vld [vmem:[#allocation5 + $0x268] sm:$0xff]
    %v211 = vld [vmem:[#allocation5 + $0x270] sm:$0xff]
    %v212 = vld [vmem:[#allocation5 + $0x278] sm:$0xff]
    %v213 = vld [vmem:[#allocation5 + $0x280] sm:$0xff]
    %v214 = vld [vmem:[#allocation5 + $0x288] sm:$0xff]
    %v215 = vld [vmem:[#allocation5 + $0x290] sm:$0xff]
    %v216 = vld [vmem:[#allocation5 + $0x298] sm:$0xff]
    %v217 = vld [vmem:[#allocation5 + $0x2a0] sm:$0xff]
    %v218 = vld [vmem:[#allocation5 + $0x2a8] sm:$0xff]
    %v219 = vld [vmem:[#allocation5 + $0x2b0] sm:$0xff]
    %v220 = vld [vmem:[#allocation5 + $0x2b8] sm:$0xff]
    %v221 = vld [vmem:[#allocation5 + $0x2c0] sm:$0xff]
    %v222 = vld [vmem:[#allocation5 + $0x2c8] sm:$0xff]
    %v223 = vld [vmem:[#allocation5 + $0x2d0] sm:$0xff]
    %v224 = vld [vmem:[#allocation5 + $0x2d8] sm:$0xff]
    %v225 = vld [vmem:[#allocation5 + $0x2e0] sm:$0xff]
    %v226 = vld [vmem:[#allocation5 + $0x2e8] sm:$0xff]
    %v227 = vld [vmem:[#allocation5 + $0x2f0] sm:$0xff]
    %v228 = vld [vmem:[#allocation5 + $0x2f8] sm:$0xff]
    %v229 = vld [vmem:[#allocation5 + $0x300] sm:$0xff]
    %v230 = vld [vmem:[#allocation5 + $0x308] sm:$0xff]
    %v231 = vld [vmem:[#allocation5 + $0x310] sm:$0xff]
    %v232 = vld [vmem:[#allocation5 + $0x318] sm:$0xff]
    %v233 = vld [vmem:[#allocation5 + $0x320] sm:$0xff]
    %v234 = vld [vmem:[#allocation5 + $0x328] sm:$0xff]
    %v235 = vld [vmem:[#allocation5 + $0x330] sm:$0xff]
    %v236 = vld [vmem:[#allocation5 + $0x338] sm:$0xff]
    %v237 = vld [vmem:[#allocation5 + $0x340] sm:$0xff]
    %v238 = vld [vmem:[#allocation5 + $0x348] sm:$0xff]
    %v239 = vld [vmem:[#allocation5 + $0x350] sm:$0xff]
    %v240 = vld [vmem:[#allocation5 + $0x358] sm:$0xff]
    %v241 = vld [vmem:[#allocation5 + $0x360] sm:$0xff]
    %v242 = vld [vmem:[#allocation5 + $0x368] sm:$0xff]
    %v243 = vld [vmem:[#allocation5 + $0x370] sm:$0xff]
    %v244 = vld [vmem:[#allocation5 + $0x378] sm:$0xff]
    %v245 = vld [vmem:[#allocation5 + $0x380] sm:$0xff]
    %v246 = vld [vmem:[#allocation5 + $0x388] sm:$0xff]
    %v247 = vld [vmem:[#allocation5 + $0x390] sm:$0xff]
    %v248 = vld [vmem:[#allocation5 + $0x398] sm:$0xff]
    %v249 = vld [vmem:[#allocation5 + $0x3a0] sm:$0xff]
    %v250 = vld [vmem:[#allocation5 + $0x3a8] sm:$0xff]
    %v251 = vld [vmem:[#allocation5 + $0x3b0] sm:$0xff]
    %v252 = vld [vmem:[#allocation5 + $0x3b8] sm:$0xff]
    %v253 = vld [vmem:[#allocation5 + $0x3c0] sm:$0xff]
    %v254 = vld [vmem:[#allocation5 + $0x3c8] sm:$0xff]
    %v255 = vld [vmem:[#allocation5 + $0x3d0] sm:$0xff]
    %v256 = vld [vmem:[#allocation5 + $0x3d8] sm:$0xff]
    %v257 = vld [vmem:[#allocation5 + $0x3e0] sm:$0xff]
    %v258 = vld [vmem:[#allocation5 + $0x3e8] sm:$0xff]
    %v259 = vld [vmem:[#allocation5 + $0x3f0] sm:$0xff]
    %v260 = vld [vmem:[#allocation5 + $0x3f8] sm:$0xff]
    %v261 = vld [vmem:[#allocation5 + $0x400] sm:$0xff]
    %v262 = vld [vmem:[#allocation5 + $0x408] sm:$0xff]
    %v263 = vld [vmem:[#allocation5 + $0x410] sm:$0xff]
    %v264 = vld [vmem:[#allocation5 + $0x418] sm:$0xff]
    %v265 = vld [vmem:[#allocation5 + $0x420] sm:$0xff]
    %v266 = vld [vmem:[#allocation5 + $0x428] sm:$0xff]
    %v267 = vld [vmem:[#allocation5 + $0x430] sm:$0xff]
    %v268 = vld [vmem:[#allocation5 + $0x438] sm:$0xff]
    %v269 = vld [vmem:[#allocation5 + $0x440] sm:$0xff]
    %v270 = vld [vmem:[#allocation5 + $0x448] sm:$0xff]
    %v271 = vld [vmem:[#allocation5 + $0x450] sm:$0xff]
    %v272 = vld [vmem:[#allocation5 + $0x458] sm:$0xff]
    %v273 = vld [vmem:[#allocation5 + $0x460] sm:$0xff]
    %v274 = vld [vmem:[#allocation5 + $0x468] sm:$0xff]
    %v275 = vld [vmem:[#allocation5 + $0x470] sm:$0xff]
    %v276 = vld [vmem:[#allocation5 + $0x478] sm:$0xff]
    %v277 = vld [vmem:[#allocation5 + $0x480] sm:$0xff]
    %v278 = vld [vmem:[#allocation5 + $0x488] sm:$0xff]
    %v279 = vld [vmem:[#allocation5 + $0x490] sm:$0xff]
    %v280 = vld [vmem:[#allocation5 + $0x498] sm:$0xff]
    %v281 = vld [vmem:[#allocation5 + $0x4a0] sm:$0xff]
    %v282 = vld [vmem:[#allocation5 + $0x4a8] sm:$0xff]
    %v283 = vld [vmem:[#allocation5 + $0x4b0] sm:$0xff]
    %v284 = vld [vmem:[#allocation5 + $0x4b8] sm:$0xff]
    %v285 = vld [vmem:[#allocation5 + $0x4c0] sm:$0xff]
    %v286 = vld [vmem:[#allocation5 + $0x4c8] sm:$0xff]
    %v287 = vld [vmem:[#allocation5 + $0x4d0] sm:$0xff]
    %v288 = vld [vmem:[#allocation5 + $0x4d8] sm:$0xff]
    %v289 = vld [vmem:[#allocation5 + $0x4e0] sm:$0xff]
    %v290 = vld [vmem:[#allocation5 + $0x4e8] sm:$0xff]
    %v291 = vld [vmem:[#allocation5 + $0x4f0] sm:$0xff]
    %v292 = vld [vmem:[#allocation5 + $0x4f8] sm:$0xff]
    %v293 = vld [vmem:[#allocation5 + $0x500] sm:$0xff]
    %v294 = vld [vmem:[#allocation5 + $0x508] sm:$0xff]
    %v295 = vld [vmem:[#allocation5 + $0x510] sm:$0xff]
    %v296 = vld [vmem:[#allocation5 + $0x518] sm:$0xff]
    %v297 = vld [vmem:[#allocation5 + $0x520] sm:$0xff]
    %v298 = vld [vmem:[#allocation5 + $0x528] sm:$0xff]
    %v299 = vld [vmem:[#allocation5 + $0x530] sm:$0xff]
    %v300 = vld [vmem:[#allocation5 + $0x538] sm:$0xff]
    %v301 = vld [vmem:[#allocation5 + $0x540] sm:$0xff]
    %v302 = vld [vmem:[#allocation5 + $0x548] sm:$0xff]
    %v303 = vld [vmem:[#allocation5 + $0x550] sm:$0xff]
    %v304 = vld [vmem:[#allocation5 + $0x558] sm:$0xff]
    %v305 = vld [vmem:[#allocation5 + $0x560] sm:$0xff]
    %v306 = vld [vmem:[#allocation5 + $0x568] sm:$0xff]
    %v307 = vld [vmem:[#allocation5 + $0x570] sm:$0xff]
    %v308 = vld [vmem:[#allocation5 + $0x578] sm:$0xff]
    %v309 = vld [vmem:[#allocation5 + $0x580] sm:$0xff]
    %v310 = vld [vmem:[#allocation5 + $0x588] sm:$0xff]
    %v311 = vld [vmem:[#allocation5 + $0x590] sm:$0xff]
    %v312 = vld [vmem:[#allocation5 + $0x598] sm:$0xff]
    %v313 = vld [vmem:[#allocation5 + $0x5a0] sm:$0xff]
    %v314 = vld [vmem:[#allocation5 + $0x5a8] sm:$0xff]
    %v315 = vld [vmem:[#allocation5 + $0x5b0] sm:$0xff]
    %v316 = vld [vmem:[#allocation5 + $0x5b8] sm:$0xff]
    %v317 = vld [vmem:[#allocation5 + $0x5c0] sm:$0xff]
    %v318 = vld [vmem:[#allocation5 + $0x5c8] sm:$0xff]
    %v319 = vld [vmem:[#allocation5 + $0x5d0] sm:$0xff]
    %v320 = vld [vmem:[#allocation5 + $0x5d8] sm:$0xff]
    %v321 = vld [vmem:[#allocation5 + $0x5e0] sm:$0xff]
    %v322 = vld [vmem:[#allocation5 + $0x5e8] sm:$0xff]
    %v323 = vld [vmem:[#allocation5 + $0x5f0] sm:$0xff]
    %v324 = vld [vmem:[#allocation5 + $0x5f8] sm:$0xff]
    %v325 = vld [vmem:[#allocation5 + $0x600] sm:$0xff]
    %v326 = vld [vmem:[#allocation5 + $0x608] sm:$0xff]
    %v327 = vld [vmem:[#allocation5 + $0x610] sm:$0xff]
    %v328 = vld [vmem:[#allocation5 + $0x618] sm:$0xff]
    %v329 = vld [vmem:[#allocation5 + $0x620] sm:$0xff]
    %v330 = vld [vmem:[#allocation5 + $0x628] sm:$0xff]
    %v331 = vld [vmem:[#allocation5 + $0x630] sm:$0xff]
    %v332 = vld [vmem:[#allocation5 + $0x638] sm:$0xff]
    %v333 = vld [vmem:[#allocation5 + $0x640] sm:$0xff]
    %v334 = vld [vmem:[#allocation5 + $0x648] sm:$0xff]
    %v335 = vld [vmem:[#allocation5 + $0x650] sm:$0xff]
    %v336 = vld [vmem:[#allocation5 + $0x658] sm:$0xff]
    %v337 = vld [vmem:[#allocation5 + $0x660] sm:$0xff]
    %v338 = vld [vmem:[#allocation5 + $0x668] sm:$0xff]
    %v339 = vld [vmem:[#allocation5 + $0x670] sm:$0xff]
    %v340 = vld [vmem:[#allocation5 + $0x678] sm:$0xff]
    %v341 = vld [vmem:[#allocation5 + $0x680] sm:$0xff]
    %v342 = vld [vmem:[#allocation5 + $0x688] sm:$0xff]
    %v343 = vld [vmem:[#allocation5 + $0x690] sm:$0xff]
    %v344 = vld [vmem:[#allocation5 + $0x698] sm:$0xff]
    %v345 = vld [vmem:[#allocation5 + $0x6a0] sm:$0xff]
    %v346 = vld [vmem:[#allocation5 + $0x6a8] sm:$0xff]
    %v347 = vld [vmem:[#allocation5 + $0x6b0] sm:$0xff]
    %v348 = vld [vmem:[#allocation5 + $0x6b8] sm:$0xff]
    %v349 = vld [vmem:[#allocation5 + $0x6c0] sm:$0xff]
    %v350 = vld [vmem:[#allocation5 + $0x6c8] sm:$0xff]
    %v351 = vld [vmem:[#allocation5 + $0x6d0] sm:$0xff]
    %v352 = vld [vmem:[#allocation5 + $0x6d8] sm:$0xff]
    %v353 = vld [vmem:[#allocation5 + $0x6e0] sm:$0xff]
    %v354 = vld [vmem:[#allocation5 + $0x6e8] sm:$0xff]
    %v355 = vld [vmem:[#allocation5 + $0x6f0] sm:$0xff]
    %v356 = vld [vmem:[#allocation5 + $0x6f8] sm:$0xff]
    %v357 = vld [vmem:[#allocation5 + $0x700] sm:$0xff]
    %v358 = vld [vmem:[#allocation5 + $0x708] sm:$0xff]
    %v359 = vld [vmem:[#allocation5 + $0x710] sm:$0xff]
    %v360 = vld [vmem:[#allocation5 + $0x718] sm:$0xff]
    %v361 = vld [vmem:[#allocation5 + $0x720] sm:$0xff]
    %v362 = vld [vmem:[#allocation5 + $0x728] sm:$0xff]
    %v363 = vld [vmem:[#allocation5 + $0x730] sm:$0xff]
    %v364 = vld [vmem:[#allocation5 + $0x738] sm:$0xff]
    %v365 = vld [vmem:[#allocation5 + $0x740] sm:$0xff]
    %v366 = vld [vmem:[#allocation5 + $0x748] sm:$0xff]
    %v367 = vld [vmem:[#allocation5 + $0x750] sm:$0xff]
    %v368 = vld [vmem:[#allocation5 + $0x758] sm:$0xff]
    %v369 = vld [vmem:[#allocation5 + $0x760] sm:$0xff]
    %v370 = vld [vmem:[#allocation5 + $0x768] sm:$0xff]
    %v371 = vld [vmem:[#allocation5 + $0x770] sm:$0xff]
    %v372 = vld [vmem:[#allocation5 + $0x778] sm:$0xff]
    %v373 = vld [vmem:[#allocation5 + $0x780] sm:$0xff]
    %v374 = vld [vmem:[#allocation5 + $0x788] sm:$0xff]
    %v375 = vld [vmem:[#allocation5 + $0x790] sm:$0xff]
    %v376 = vld [vmem:[#allocation5 + $0x798] sm:$0xff]
    %v377 = vld [vmem:[#allocation5 + $0x7a0] sm:$0xff]
    %v378 = vld [vmem:[#allocation5 + $0x7a8] sm:$0xff]
    %v379 = vld [vmem:[#allocation5 + $0x7b0] sm:$0xff]
    %v380 = vld [vmem:[#allocation5 + $0x7b8] sm:$0xff]
    %v381 = vld [vmem:[#allocation5 + $0x7c0] sm:$0xff]
    %v382 = vld [vmem:[#allocation5 + $0x7c8] sm:$0xff]
    %v383 = vld [vmem:[#allocation5 + $0x7d0] sm:$0xff]
    %v384 = vld [vmem:[#allocation5 + $0x7d8] sm:$0xff]
    %v385 = vld [vmem:[#allocation5 + $0x7e0] sm:$0xff]
    %v386 = vld [vmem:[#allocation5 + $0x7e8] sm:$0xff]
    %v387 = vld [vmem:[#allocation5 + $0x7f0] sm:$0xff]
    %v388 = vld [vmem:[#allocation5 + $0x7f8] sm:$0xff]
    %v389 = vld [vmem:[#allocation5 + $0x800] sm:$0xff]
    %v390 = vld [vmem:[#allocation5 + $0x808] sm:$0xff]
    %v391 = vld [vmem:[#allocation5 + $0x810] sm:$0xff]
    %v392 = vld [vmem:[#allocation5 + $0x818] sm:$0xff]
    %v393 = vld [vmem:[#allocation5 + $0x820] sm:$0xff]
    %v394 = vld [vmem:[#allocation5 + $0x828] sm:$0xff]
    %v395 = vld [vmem:[#allocation5 + $0x830] sm:$0xff]
    %v396 = vld [vmem:[#allocation5 + $0x838] sm:$0xff]
    %v397 = vld [vmem:[#allocation5 + $0x840] sm:$0xff]
    %v398 = vld [vmem:[#allocation5 + $0x848] sm:$0xff]
    %v399 = vld [vmem:[#allocation5 + $0x850] sm:$0xff]
    %v400 = vld [vmem:[#allocation5 + $0x858] sm:$0xff]
    %v401 = vld [vmem:[#allocation5 + $0x860] sm:$0xff]
    %v402 = vld [vmem:[#allocation5 + $0x868] sm:$0xff]
    %v403 = vld [vmem:[#allocation5 + $0x870] sm:$0xff]
    %v404 = vld [vmem:[#allocation5 + $0x878] sm:$0xff]
    %v405 = vld [vmem:[#allocation5 + $0x880] sm:$0xff]
    %v406 = vld [vmem:[#allocation5 + $0x888] sm:$0xff]
    %v407 = vld [vmem:[#allocation5 + $0x890] sm:$0xff]
    %v408 = vld [vmem:[#allocation5 + $0x898] sm:$0xff]
    %v409 = vld [vmem:[#allocation5 + $0x8a0] sm:$0xff]
    %v410 = vld [vmem:[#allocation5 + $0x8a8] sm:$0xff]
    %v411 = vld [vmem:[#allocation5 + $0x8b0] sm:$0xff]
    %v412 = vld [vmem:[#allocation5 + $0x8b8] sm:$0xff]
    %v413 = vld [vmem:[#allocation5 + $0x8c0] sm:$0xff]
    %v414 = vld [vmem:[#allocation5 + $0x8c8] sm:$0xff]
    %v415 = vld [vmem:[#allocation5 + $0x8d0] sm:$0xff]
    %v416 = vld [vmem:[#allocation5 + $0x8d8] sm:$0xff]
    %v417 = vld [vmem:[#allocation5 + $0x8e0] sm:$0xff]
    %v418 = vld [vmem:[#allocation5 + $0x8e8] sm:$0xff]
    %v419 = vld [vmem:[#allocation5 + $0x8f0] sm:$0xff]
    %v420 = vld [vmem:[#allocation5 + $0x8f8] sm:$0xff]
    %v421 = vld [vmem:[#allocation5 + $0x900] sm:$0xff]
    %v422 = vld [vmem:[#allocation5 + $0x908] sm:$0xff]
    %v423 = vld [vmem:[#allocation5 + $0x910] sm:$0xff]
    %v424 = vld [vmem:[#allocation5 + $0x918] sm:$0xff]
    %v425 = vld [vmem:[#allocation5 + $0x920] sm:$0xff]
    %v426 = vld [vmem:[#allocation5 + $0x928] sm:$0xff]
    %v427 = vld [vmem:[#allocation5 + $0x930] sm:$0xff]
    %v428 = vld [vmem:[#allocation5 + $0x938] sm:$0xff]
    %v429 = vld [vmem:[#allocation5 + $0x940] sm:$0xff]
    %v430 = vld [vmem:[#allocation5 + $0x948] sm:$0xff]
    %v431 = vld [vmem:[#allocation5 + $0x950] sm:$0xff]
    %v432 = vld [vmem:[#allocation5 + $0x958] sm:$0xff]
    %v433 = vld [vmem:[#allocation5 + $0x960] sm:$0xff]
    %v434 = vld [vmem:[#allocation5 + $0x968] sm:$0xff]
    %v435 = vld [vmem:[#allocation5 + $0x970] sm:$0xff]
    %v436 = vld [vmem:[#allocation5 + $0x978] sm:$0xff]
    %v437 = vld [vmem:[#allocation5 + $0x980] sm:$0xff]
    %v438 = vld [vmem:[#allocation5 + $0x988] sm:$0xff]
    %v439 = vld [vmem:[#allocation5 + $0x990] sm:$0xff]
    %v440 = vld [vmem:[#allocation5 + $0x998] sm:$0xff]
    %v441 = vld [vmem:[#allocation5 + $0x9a0] sm:$0xff]
    %v442 = vld [vmem:[#allocation5 + $0x9a8] sm:$0xff]
    %v443 = vld [vmem:[#allocation5 + $0x9b0] sm:$0xff]
    %v444 = vld [vmem:[#allocation5 + $0x9b8] sm:$0xff]
    %v445 = vld [vmem:[#allocation5 + $0x9c0] sm:$0xff]
    %v446 = vld [vmem:[#allocation5 + $0x9c8] sm:$0xff]
    %v447 = vld [vmem:[#allocation5 + $0x9d0] sm:$0xff]
    %v448 = vld [vmem:[#allocation5 + $0x9d8] sm:$0xff]
    %v449 = vld [vmem:[#allocation5 + $0x9e0] sm:$0xff]
    %v450 = vld [vmem:[#allocation5 + $0x9e8] sm:$0xff]
    %v451 = vld [vmem:[#allocation5 + $0x9f0] sm:$0xff]
    %v452 = vld [vmem:[#allocation5 + $0x9f8] sm:$0xff]
    %v453 = vld [vmem:[#allocation5 + $0xa00] sm:$0xff]
    %v454 = vld [vmem:[#allocation5 + $0xa08] sm:$0xff]
    %v455 = vld [vmem:[#allocation5 + $0xa10] sm:$0xff]
    %v456 = vld [vmem:[#allocation5 + $0xa18] sm:$0xff]
    %v457 = vld [vmem:[#allocation5 + $0xa20] sm:$0xff]
    %v458 = vld [vmem:[#allocation5 + $0xa28] sm:$0xff]
    %v459 = vld [vmem:[#allocation5 + $0xa30] sm:$0xff]
    %v460 = vld [vmem:[#allocation5 + $0xa38] sm:$0xff]
    %v461 = vld [vmem:[#allocation5 + $0xa40] sm:$0xff]
    %v462 = vld [vmem:[#allocation5 + $0xa48] sm:$0xff]
    %v463 = vld [vmem:[#allocation5 + $0xa50] sm:$0xff]
    %v464 = vld [vmem:[#allocation5 + $0xa58] sm:$0xff]
    %v465 = vld [vmem:[#allocation5 + $0xa60] sm:$0xff]
    %v466 = vld [vmem:[#allocation5 + $0xa68] sm:$0xff]
    %v467 = vld [vmem:[#allocation5 + $0xa70] sm:$0xff]
    %v468 = vld [vmem:[#allocation5 + $0xa78] sm:$0xff]
    %v469 = vld [vmem:[#allocation5 + $0xa80] sm:$0xff]
    %v470 = vld [vmem:[#allocation5 + $0xa88] sm:$0xff]
    %v471 = vld [vmem:[#allocation5 + $0xa90] sm:$0xff]
    %v472 = vld [vmem:[#allocation5 + $0xa98] sm:$0xff]
    %v473 = vld [vmem:[#allocation5 + $0xaa0] sm:$0xff]
    %v474 = vld [vmem:[#allocation5 + $0xaa8] sm:$0xff]
    %v475 = vld [vmem:[#allocation5 + $0xab0] sm:$0xff]
    %v476 = vld [vmem:[#allocation5 + $0xab8] sm:$0xff]
    %v477 = vld [vmem:[#allocation5 + $0xac0] sm:$0xff]
    %v478 = vld [vmem:[#allocation5 + $0xac8] sm:$0xff]
    %v479 = vld [vmem:[#allocation5 + $0xad0] sm:$0xff]
    %v480 = vld [vmem:[#allocation5 + $0xad8] sm:$0xff]
    %v481 = vld [vmem:[#allocation5 + $0xae0] sm:$0xff]
    %v482 = vld [vmem:[#allocation5 + $0xae8] sm:$0xff]
    %v483 = vld [vmem:[#allocation5 + $0xaf0] sm:$0xff]
    %v484 = vld [vmem:[#allocation5 + $0xaf8] sm:$0xff]
    %v485 = vld [vmem:[#allocation5 + $0xb00] sm:$0xff]
    %v486 = vld [vmem:[#allocation5 + $0xb08] sm:$0xff]
    %v487 = vld [vmem:[#allocation5 + $0xb10] sm:$0xff]
    %v488 = vld [vmem:[#allocation5 + $0xb18] sm:$0xff]
    %v489 = vld [vmem:[#allocation5 + $0xb20] sm:$0xff]
    %v490 = vld [vmem:[#allocation5 + $0xb28] sm:$0xff]
    %v491 = vld [vmem:[#allocation5 + $0xb30] sm:$0xff]
    %v492 = vld [vmem:[#allocation5 + $0xb38] sm:$0xff]
    %v493 = vld [vmem:[#allocation5 + $0xb40] sm:$0xff]
    %v494 = vld [vmem:[#allocation5 + $0xb48] sm:$0xff]
    %v495 = vld [vmem:[#allocation5 + $0xb50] sm:$0xff]
    %v496 = vld [vmem:[#allocation5 + $0xb58] sm:$0xff]
    %v497 = vld [vmem:[#allocation5 + $0xb60] sm:$0xff]
    %v498 = vld [vmem:[#allocation5 + $0xb68] sm:$0xff]
    %v499 = vld [vmem:[#allocation5 + $0xb70] sm:$0xff]
    %v500 = vld [vmem:[#allocation5 + $0xb78] sm:$0xff]
    %v501 = vld [vmem:[#allocation5 + $0xb80] sm:$0xff]
    %v502 = vld [vmem:[#allocation5 + $0xb88] sm:$0xff]
    %v503 = vld [vmem:[#allocation5 + $0xb90] sm:$0xff]
    %v504 = vld [vmem:[#allocation5 + $0xb98] sm:$0xff]
    %v505 = vld [vmem:[#allocation5 + $0xba0] sm:$0xff]
    %v506 = vld [vmem:[#allocation5 + $0xba8] sm:$0xff]
    %v507 = vld [vmem:[#allocation5 + $0xbb0] sm:$0xff]
    %v508 = vld [vmem:[#allocation5 + $0xbb8] sm:$0xff]
    %v509 = vld [vmem:[#allocation5 + $0xbc0] sm:$0xff]
    %v510 = vld [vmem:[#allocation5 + $0xbc8] sm:$0xff]
    %v511 = vld [vmem:[#allocation5 + $0xbd0] sm:$0xff]
    %v512 = vld [vmem:[#allocation5 + $0xbd8] sm:$0xff]
    %v513 = vld [vmem:[#allocation5 + $0xbe0] sm:$0xff]
    %v514 = vld [vmem:[#allocation5 + $0xbe8] sm:$0xff]
    %v515 = vld [vmem:[#allocation5 + $0xbf0] sm:$0xff]
    %v516 = vld [vmem:[#allocation5 + $0xbf8] sm:$0xff]
    %v517 = vld [vmem:[#allocation5 + $0xc00] sm:$0xff]
    %v518 = vld [vmem:[#allocation5 + $0xc08] sm:$0xff]
    %v519 = vld [vmem:[#allocation5 + $0xc10] sm:$0xff]
    %v520 = vld [vmem:[#allocation5 + $0xc18] sm:$0xff]
    %v521 = vld [vmem:[#allocation5 + $0xc20] sm:$0xff]
    %v522 = vld [vmem:[#allocation5 + $0xc28] sm:$0xff]
    %v523 = vld [vmem:[#allocation5 + $0xc30] sm:$0xff]
    %v524 = vld [vmem:[#allocation5 + $0xc38] sm:$0xff]
    %v525 = vld [vmem:[#allocation7] sm:$0xff]
    %v527 = vlaneseq
    %v528 = vshrl.u32 %v527, 7
    %v529 = vsub.s32 0, %v528
    %v530 = vrot.slane %v525, %v529
    %v531 = vlaneseq
    %v532 = vshrl.u32 %v531, 7
    %v533 = vsub.s32 1, %v532
    %v534 = vrot.slane %v525, %v533
    %v535 = vlaneseq
    %v536 = vshrl.u32 %v535, 7
    %v537 = vsub.s32 2, %v536
    %v538 = vrot.slane %v525, %v537
    %v539 = vlaneseq
    %v540 = vshrl.u32 %v539, 7
    %v541 = vsub.s32 3, %v540
    %v542 = vrot.slane %v525, %v541
    %v543 = vlaneseq
    %v544 = vshrl.u32 %v543, 7
    %v545 = vsub.s32 4, %v544
    %v546 = vrot.slane %v525, %v545
    %v547 = vlaneseq
    %v548 = vshrl.u32 %v547, 7
    %v549 = vsub.s32 5, %v548
    %v550 = vrot.slane %v525, %v549
    %v551 = vlaneseq
    %v552 = vshrl.u32 %v551, 7
    %v553 = vsub.s32 6, %v552
    %v554 = vrot.slane %v525, %v553
    %v555 = vlaneseq
    %v556 = vshrl.u32 %v555, 7
    %v557 = vsub.s32 7, %v556
    %v558 = vrot.slane %v525, %v557
    %v583 = vunpack.c.l.b16 %v117
    %v584 = vunpack.c.h.b16 %v117
    %v585 = vunpack.c.l.b16 %v118
    %v586 = vunpack.c.h.b16 %v118
    %v587 = vunpack.c.l.b16 %v119
    %v588 = vunpack.c.h.b16 %v119
    %v589 = vunpack.c.l.b16 %v120
    %v590 = vunpack.c.l.b16 %v121
    %v591 = vunpack.c.h.b16 %v121
    %v592 = vunpack.c.l.b16 %v122
    %v593 = vunpack.c.h.b16 %v122
    %v594 = vunpack.c.l.b16 %v123
    %v595 = vunpack.c.h.b16 %v123
    %v596 = vunpack.c.l.b16 %v124
    %v597 = vunpack.c.l.b16 %v125
    %v598 = vunpack.c.h.b16 %v125
    %v599 = vunpack.c.l.b16 %v126
    %v600 = vunpack.c.h.b16 %v126
    %v601 = vunpack.c.l.b16 %v127
    %v602 = vunpack.c.h.b16 %v127
    %v603 = vunpack.c.l.b16 %v128
    %v604 = vunpack.c.l.b16 %v129
    %v605 = vunpack.c.h.b16 %v129
    %v606 = vunpack.c.l.b16 %v130
    %v607 = vunpack.c.h.b16 %v130
    %v608 = vunpack.c.l.b16 %v131
    %v609 = vunpack.c.h.b16 %v131
    %v610 = vunpack.c.l.b16 %v132
    %v611 = vpack.c.b16 %v590, %v583
    %v612 = vpack.c.b16 %v591, %v584
    %v613 = vpack.c.b16 %v592, %v585
    %v614 = vpack.c.b16 %v593, %v586
    %v615 = vpack.c.b16 %v594, %v587
    %v616 = vpack.c.b16 %v595, %v588
    %v617 = vpack.c.b16 %v596, %v589
    %v618 = vpack.c.b16 %v604, %v597
    %v619 = vpack.c.b16 %v605, %v598
    %v620 = vpack.c.b16 %v606, %v599
    %v621 = vpack.c.b16 %v607, %v600
    %v622 = vpack.c.b16 %v608, %v601
    %v623 = vpack.c.b16 %v609, %v602
    %v624 = vpack.c.b16 %v610, %v603
    %v1029 = vunpack.c.l.b16 %v133
    %v1030 = vunpack.c.h.b16 %v133
    %v1031 = vunpack.c.l.b16 %v134
    %v1032 = vunpack.c.h.b16 %v134
    %v1033 = vunpack.c.l.b16 %v135
    %v1034 = vunpack.c.h.b16 %v135
    %v1035 = vunpack.c.l.b16 %v136
    %v1036 = vunpack.c.h.b16 %v136
    %v1037 = vunpack.c.l.b16 %v137
    %v1038 = vunpack.c.h.b16 %v137
    %v1039 = vunpack.c.l.b16 %v138
    %v1040 = vunpack.c.h.b16 %v138
    %v1041 = vunpack.c.l.b16 %v139
    %v1042 = vunpack.c.h.b16 %v139
    %v1043 = vunpack.c.l.b16 %v140
    %v1044 = vunpack.c.h.b16 %v140
    %v1045 = vunpack.c.l.b16 %v141
    %v1046 = vunpack.c.h.b16 %v141
    %v1047 = vunpack.c.l.b16 %v142
    %v1048 = vunpack.c.h.b16 %v142
    %v1049 = vunpack.c.l.b16 %v143
    %v1050 = vunpack.c.h.b16 %v143
    %v1051 = vunpack.c.l.b16 %v144
    %v1052 = vunpack.c.h.b16 %v144
    %v1053 = vunpack.c.l.b16 %v145
    %v1054 = vunpack.c.h.b16 %v145
    %v1055 = vunpack.c.l.b16 %v146
    %v1056 = vunpack.c.h.b16 %v146
    %v1057 = vunpack.c.l.b16 %v147
    %v1058 = vunpack.c.h.b16 %v147
    %v1059 = vunpack.c.l.b16 %v148
    %v1060 = vunpack.c.h.b16 %v148
    %v1061 = vunpack.c.l.b16 %v149
    %v1062 = vunpack.c.h.b16 %v149
    %v1063 = vunpack.c.l.b16 %v150
    %v1064 = vunpack.c.h.b16 %v150
    %v1065 = vunpack.c.l.b16 %v151
    %v1066 = vunpack.c.h.b16 %v151
    %v1067 = vunpack.c.l.b16 %v152
    %v1068 = vunpack.c.h.b16 %v152
    %v1069 = vunpack.c.l.b16 %v153
    %v1070 = vunpack.c.h.b16 %v153
    %v1071 = vunpack.c.l.b16 %v154
    %v1072 = vunpack.c.h.b16 %v154
    %v1073 = vunpack.c.l.b16 %v155
    %v1074 = vunpack.c.h.b16 %v155
    %v1075 = vunpack.c.l.b16 %v156
    %v1076 = vunpack.c.h.b16 %v156
    %v1077 = vunpack.c.l.b16 %v157
    %v1078 = vunpack.c.h.b16 %v157
    %v1079 = vunpack.c.l.b16 %v158
    %v1080 = vunpack.c.h.b16 %v158
    %v1081 = vunpack.c.l.b16 %v159
    %v1082 = vunpack.c.h.b16 %v159
    %v1083 = vunpack.c.l.b16 %v160
    %v1084 = vunpack.c.h.b16 %v160
    %v1085 = vunpack.c.l.b16 %v161
    %v1086 = vunpack.c.h.b16 %v161
    %v1087 = vunpack.c.l.b16 %v162
    %v1088 = vunpack.c.h.b16 %v162
    %v1089 = vunpack.c.l.b16 %v163
    %v1090 = vunpack.c.h.b16 %v163
    %v1091 = vunpack.c.l.b16 %v164
    %v1092 = vunpack.c.h.b16 %v164
    %v1093 = vunpack.c.l.b16 %v165
    %v1094 = vunpack.c.h.b16 %v165
    %v1095 = vunpack.c.l.b16 %v166
    %v1096 = vunpack.c.h.b16 %v166
    %v1097 = vunpack.c.l.b16 %v167
    %v1098 = vunpack.c.h.b16 %v167
    %v1099 = vunpack.c.l.b16 %v168
    %v1100 = vunpack.c.h.b16 %v168
    %v1101 = vunpack.c.l.b16 %v169
    %v1102 = vunpack.c.h.b16 %v169
    %v1103 = vunpack.c.l.b16 %v170
    %v1104 = vunpack.c.h.b16 %v170
    %v1105 = vunpack.c.l.b16 %v171
    %v1106 = vunpack.c.h.b16 %v171
    %v1107 = vunpack.c.l.b16 %v172
    %v1108 = vunpack.c.h.b16 %v172
    %v1109 = vunpack.c.l.b16 %v173
    %v1110 = vunpack.c.h.b16 %v173
    %v1111 = vunpack.c.l.b16 %v174
    %v1112 = vunpack.c.h.b16 %v174
    %v1113 = vunpack.c.l.b16 %v175
    %v1114 = vunpack.c.h.b16 %v175
    %v1115 = vunpack.c.l.b16 %v176
    %v1116 = vunpack.c.h.b16 %v176
    %v1117 = vunpack.c.l.b16 %v177
    %v1118 = vunpack.c.h.b16 %v177
    %v1119 = vunpack.c.l.b16 %v178
    %v1120 = vunpack.c.h.b16 %v178
    %v1121 = vunpack.c.l.b16 %v179
    %v1122 = vunpack.c.h.b16 %v179
    %v1123 = vunpack.c.l.b16 %v180
    %v1124 = vunpack.c.h.b16 %v180
    %v1125 = vunpack.c.l.b16 %v181
    %v1126 = vunpack.c.h.b16 %v181
    %v1127 = vunpack.c.l.b16 %v182
    %v1128 = vunpack.c.h.b16 %v182
    %v1129 = vunpack.c.l.b16 %v183
    %v1130 = vunpack.c.h.b16 %v183
    %v1131 = vunpack.c.l.b16 %v184
    %v1132 = vunpack.c.h.b16 %v184
    %v1133 = vunpack.c.l.b16 %v185
    %v1134 = vunpack.c.h.b16 %v185
    %v1135 = vunpack.c.l.b16 %v186
    %v1136 = vunpack.c.h.b16 %v186
    %v1137 = vunpack.c.l.b16 %v187
    %v1138 = vunpack.c.h.b16 %v187
    %v1139 = vunpack.c.l.b16 %v188
    %v1140 = vunpack.c.h.b16 %v188
    %v1141 = vunpack.c.l.b16 %v189
    %v1142 = vunpack.c.h.b16 %v189
    %v1143 = vunpack.c.l.b16 %v190
    %v1144 = vunpack.c.h.b16 %v190
    %v1145 = vunpack.c.l.b16 %v191
    %v1146 = vunpack.c.h.b16 %v191
    %v1147 = vunpack.c.l.b16 %v192
    %v1148 = vunpack.c.h.b16 %v192
    %v1149 = vunpack.c.l.b16 %v193
    %v1150 = vunpack.c.h.b16 %v193
    %v1151 = vunpack.c.l.b16 %v194
    %v1152 = vunpack.c.h.b16 %v194
    %v1153 = vunpack.c.l.b16 %v195
    %v1154 = vunpack.c.h.b16 %v195
    %v1155 = vunpack.c.l.b16 %v196
    %v1156 = vunpack.c.h.b16 %v196
    %v1157 = vunpack.c.l.b16 %v197
    %v1158 = vunpack.c.h.b16 %v197
    %v1159 = vunpack.c.l.b16 %v198
    %v1160 = vunpack.c.h.b16 %v198
    %v1161 = vunpack.c.l.b16 %v199
    %v1162 = vunpack.c.h.b16 %v199
    %v1163 = vunpack.c.l.b16 %v200
    %v1164 = vunpack.c.h.b16 %v200
    %v1165 = vunpack.c.l.b16 %v201
    %v1166 = vunpack.c.h.b16 %v201
    %v1167 = vunpack.c.l.b16 %v202
    %v1168 = vunpack.c.h.b16 %v202
    %v1169 = vunpack.c.l.b16 %v203
    %v1170 = vunpack.c.h.b16 %v203
    %v1171 = vunpack.c.l.b16 %v204
    %v1172 = vunpack.c.h.b16 %v204
    %v1173 = vunpack.c.l.b16 %v205
    %v1174 = vunpack.c.h.b16 %v205
    %v1175 = vunpack.c.l.b16 %v206
    %v1176 = vunpack.c.h.b16 %v206
    %v1177 = vunpack.c.l.b16 %v207
    %v1178 = vunpack.c.h.b16 %v207
    %v1179 = vunpack.c.l.b16 %v208
    %v1180 = vunpack.c.h.b16 %v208
    %v1181 = vunpack.c.l.b16 %v209
    %v1182 = vunpack.c.h.b16 %v209
    %v1183 = vunpack.c.l.b16 %v210
    %v1184 = vunpack.c.h.b16 %v210
    %v1185 = vunpack.c.l.b16 %v211
    %v1186 = vunpack.c.h.b16 %v211
    %v1187 = vunpack.c.l.b16 %v212
    %v1188 = vunpack.c.h.b16 %v212
    %v1189 = vunpack.c.l.b16 %v213
    %v1190 = vunpack.c.h.b16 %v213
    %v1191 = vunpack.c.l.b16 %v214
    %v1192 = vunpack.c.h.b16 %v214
    %v1193 = vunpack.c.l.b16 %v215
    %v1194 = vunpack.c.h.b16 %v215
    %v1195 = vunpack.c.l.b16 %v216
    %v1196 = vunpack.c.h.b16 %v216
    %v1197 = vunpack.c.l.b16 %v217
    %v1198 = vunpack.c.h.b16 %v217
    %v1199 = vunpack.c.l.b16 %v218
    %v1200 = vunpack.c.h.b16 %v218
    %v1201 = vunpack.c.l.b16 %v219
    %v1202 = vunpack.c.h.b16 %v219
    %v1203 = vunpack.c.l.b16 %v220
    %v1204 = vunpack.c.h.b16 %v220
    %v1205 = vunpack.c.l.b16 %v221
    %v1206 = vunpack.c.h.b16 %v221
    %v1207 = vunpack.c.l.b16 %v222
    %v1208 = vunpack.c.h.b16 %v222
    %v1209 = vunpack.c.l.b16 %v223
    %v1210 = vunpack.c.h.b16 %v223
    %v1211 = vunpack.c.l.b16 %v224
    %v1212 = vunpack.c.h.b16 %v224
    %v1213 = vunpack.c.l.b16 %v225
    %v1214 = vunpack.c.h.b16 %v225
    %v1215 = vunpack.c.l.b16 %v226
    %v1216 = vunpack.c.h.b16 %v226
    %v1217 = vunpack.c.l.b16 %v227
    %v1218 = vunpack.c.h.b16 %v227
    %v1219 = vunpack.c.l.b16 %v228
    %v1220 = vunpack.c.h.b16 %v228
    %v1221 = vunpack.c.l.b16 %v229
    %v1222 = vunpack.c.h.b16 %v229
    %v1223 = vunpack.c.l.b16 %v230
    %v1224 = vunpack.c.h.b16 %v230
    %v1225 = vunpack.c.l.b16 %v231
    %v1226 = vunpack.c.h.b16 %v231
    %v1227 = vunpack.c.l.b16 %v232
    %v1228 = vunpack.c.h.b16 %v232
    %v1229 = vunpack.c.l.b16 %v233
    %v1230 = vunpack.c.h.b16 %v233
    %v1231 = vunpack.c.l.b16 %v234
    %v1232 = vunpack.c.h.b16 %v234
    %v1233 = vunpack.c.l.b16 %v235
    %v1234 = vunpack.c.h.b16 %v235
    %v1235 = vunpack.c.l.b16 %v236
    %v1236 = vunpack.c.h.b16 %v236
    %v1237 = vunpack.c.l.b16 %v237
    %v1238 = vunpack.c.h.b16 %v237
    %v1239 = vunpack.c.l.b16 %v238
    %v1240 = vunpack.c.h.b16 %v238
    %v1241 = vunpack.c.l.b16 %v239
    %v1242 = vunpack.c.h.b16 %v239
    %v1243 = vunpack.c.l.b16 %v240
    %v1244 = vunpack.c.h.b16 %v240
    %v1245 = vunpack.c.l.b16 %v241
    %v1246 = vunpack.c.h.b16 %v241
    %v1247 = vunpack.c.l.b16 %v242
    %v1248 = vunpack.c.h.b16 %v242
    %v1249 = vunpack.c.l.b16 %v243
    %v1250 = vunpack.c.h.b16 %v243
    %v1251 = vunpack.c.l.b16 %v244
    %v1252 = vunpack.c.h.b16 %v244
    %v1253 = vunpack.c.l.b16 %v245
    %v1254 = vunpack.c.h.b16 %v245
    %v1255 = vunpack.c.l.b16 %v246
    %v1256 = vunpack.c.h.b16 %v246
    %v1257 = vunpack.c.l.b16 %v247
    %v1258 = vunpack.c.h.b16 %v247
    %v1259 = vunpack.c.l.b16 %v248
    %v1260 = vunpack.c.h.b16 %v248
    %v1261 = vunpack.c.l.b16 %v249
    %v1262 = vunpack.c.h.b16 %v249
    %v1263 = vunpack.c.l.b16 %v250
    %v1264 = vunpack.c.h.b16 %v250
    %v1265 = vunpack.c.l.b16 %v251
    %v1266 = vunpack.c.h.b16 %v251
    %v1267 = vunpack.c.l.b16 %v252
    %v1268 = vunpack.c.h.b16 %v252
    %v1269 = vunpack.c.l.b16 %v253
    %v1270 = vunpack.c.h.b16 %v253
    %v1271 = vunpack.c.l.b16 %v254
    %v1272 = vunpack.c.h.b16 %v254
    %v1273 = vunpack.c.l.b16 %v255
    %v1274 = vunpack.c.h.b16 %v255
    %v1275 = vunpack.c.l.b16 %v256
    %v1276 = vunpack.c.h.b16 %v256
    %v1277 = vunpack.c.l.b16 %v257
    %v1278 = vunpack.c.h.b16 %v257
    %v1279 = vunpack.c.l.b16 %v258
    %v1280 = vunpack.c.h.b16 %v258
    %v1281 = vunpack.c.l.b16 %v259
    %v1282 = vunpack.c.h.b16 %v259
    %v1283 = vunpack.c.l.b16 %v260
    %v1284 = vunpack.c.h.b16 %v260
    %v1285 = vunpack.c.l.b16 %v261
    %v1286 = vunpack.c.h.b16 %v261
    %v1287 = vunpack.c.l.b16 %v262
    %v1288 = vunpack.c.h.b16 %v262
    %v1289 = vunpack.c.l.b16 %v263
    %v1290 = vunpack.c.h.b16 %v263
    %v1291 = vunpack.c.l.b16 %v264
    %v1292 = vunpack.c.h.b16 %v264
    %v1293 = vunpack.c.l.b16 %v265
    %v1294 = vunpack.c.h.b16 %v265
    %v1295 = vunpack.c.l.b16 %v266
    %v1296 = vunpack.c.h.b16 %v266
    %v1297 = vunpack.c.l.b16 %v267
    %v1298 = vunpack.c.h.b16 %v267
    %v1299 = vunpack.c.l.b16 %v268
    %v1300 = vunpack.c.h.b16 %v268
    %v1301 = vunpack.c.l.b16 %v269
    %v1302 = vunpack.c.h.b16 %v269
    %v1303 = vunpack.c.l.b16 %v270
    %v1304 = vunpack.c.h.b16 %v270
    %v1305 = vunpack.c.l.b16 %v271
    %v1306 = vunpack.c.h.b16 %v271
    %v1307 = vunpack.c.l.b16 %v272
    %v1308 = vunpack.c.h.b16 %v272
    %v1309 = vunpack.c.l.b16 %v273
    %v1310 = vunpack.c.h.b16 %v273
    %v1311 = vunpack.c.l.b16 %v274
    %v1312 = vunpack.c.h.b16 %v274
    %v1313 = vunpack.c.l.b16 %v275
    %v1314 = vunpack.c.h.b16 %v275
    %v1315 = vunpack.c.l.b16 %v276
    %v1316 = vunpack.c.h.b16 %v276
    %v1317 = vunpack.c.l.b16 %v277
    %v1318 = vunpack.c.h.b16 %v277
    %v1319 = vunpack.c.l.b16 %v278
    %v1320 = vunpack.c.h.b16 %v278
    %v1321 = vunpack.c.l.b16 %v279
    %v1322 = vunpack.c.h.b16 %v279
    %v1323 = vunpack.c.l.b16 %v280
    %v1324 = vunpack.c.h.b16 %v280
    %v1325 = vunpack.c.l.b16 %v281
    %v1326 = vunpack.c.h.b16 %v281
    %v1327 = vunpack.c.l.b16 %v282
    %v1328 = vunpack.c.h.b16 %v282
    %v1329 = vunpack.c.l.b16 %v283
    %v1330 = vunpack.c.h.b16 %v283
    %v1331 = vunpack.c.l.b16 %v284
    %v1332 = vunpack.c.h.b16 %v284
    %v1333 = vunpack.c.l.b16 %v285
    %v1334 = vunpack.c.h.b16 %v285
    %v1335 = vunpack.c.l.b16 %v286
    %v1336 = vunpack.c.h.b16 %v286
    %v1337 = vunpack.c.l.b16 %v287
    %v1338 = vunpack.c.h.b16 %v287
    %v1339 = vunpack.c.l.b16 %v288
    %v1340 = vunpack.c.h.b16 %v288
    %v1341 = vunpack.c.l.b16 %v289
    %v1342 = vunpack.c.h.b16 %v289
    %v1343 = vunpack.c.l.b16 %v290
    %v1344 = vunpack.c.h.b16 %v290
    %v1345 = vunpack.c.l.b16 %v291
    %v1346 = vunpack.c.h.b16 %v291
    %v1347 = vunpack.c.l.b16 %v292
    %v1348 = vunpack.c.h.b16 %v292
    %v1349 = vunpack.c.l.b16 %v293
    %v1350 = vunpack.c.h.b16 %v293
    %v1351 = vunpack.c.l.b16 %v294
    %v1352 = vunpack.c.h.b16 %v294
    %v1353 = vunpack.c.l.b16 %v295
    %v1354 = vunpack.c.h.b16 %v295
    %v1355 = vunpack.c.l.b16 %v296
    %v1356 = vunpack.c.h.b16 %v296
    %v1357 = vunpack.c.l.b16 %v297
    %v1358 = vunpack.c.h.b16 %v297
    %v1359 = vunpack.c.l.b16 %v298
    %v1360 = vunpack.c.h.b16 %v298
    %v1361 = vunpack.c.l.b16 %v299
    %v1362 = vunpack.c.h.b16 %v299
    %v1363 = vunpack.c.l.b16 %v300
    %v1364 = vunpack.c.h.b16 %v300
    %v1365 = vunpack.c.l.b16 %v301
    %v1366 = vunpack.c.h.b16 %v301
    %v1367 = vunpack.c.l.b16 %v302
    %v1368 = vunpack.c.h.b16 %v302
    %v1369 = vunpack.c.l.b16 %v303
    %v1370 = vunpack.c.h.b16 %v303
    %v1371 = vunpack.c.l.b16 %v304
    %v1372 = vunpack.c.h.b16 %v304
    %v1373 = vunpack.c.l.b16 %v305
    %v1374 = vunpack.c.h.b16 %v305
    %v1375 = vunpack.c.l.b16 %v306
    %v1376 = vunpack.c.h.b16 %v306
    %v1377 = vunpack.c.l.b16 %v307
    %v1378 = vunpack.c.h.b16 %v307
    %v1379 = vunpack.c.l.b16 %v308
    %v1380 = vunpack.c.h.b16 %v308
    %v1381 = vunpack.c.l.b16 %v309
    %v1382 = vunpack.c.h.b16 %v309
    %v1383 = vunpack.c.l.b16 %v310
    %v1384 = vunpack.c.h.b16 %v310
    %v1385 = vunpack.c.l.b16 %v311
    %v1386 = vunpack.c.h.b16 %v311
    %v1387 = vunpack.c.l.b16 %v312
    %v1388 = vunpack.c.h.b16 %v312
    %v1389 = vunpack.c.l.b16 %v313
    %v1390 = vunpack.c.h.b16 %v313
    %v1391 = vunpack.c.l.b16 %v314
    %v1392 = vunpack.c.h.b16 %v314
    %v1393 = vunpack.c.l.b16 %v315
    %v1394 = vunpack.c.h.b16 %v315
    %v1395 = vunpack.c.l.b16 %v316
    %v1396 = vunpack.c.h.b16 %v316
    %v1397 = vunpack.c.l.b16 %v317
    %v1398 = vunpack.c.h.b16 %v317
    %v1399 = vunpack.c.l.b16 %v318
    %v1400 = vunpack.c.h.b16 %v318
    %v1401 = vunpack.c.l.b16 %v319
    %v1402 = vunpack.c.h.b16 %v319
    %v1403 = vunpack.c.l.b16 %v320
    %v1404 = vunpack.c.h.b16 %v320
    %v1405 = vunpack.c.l.b16 %v321
    %v1406 = vunpack.c.h.b16 %v321
    %v1407 = vunpack.c.l.b16 %v322
    %v1408 = vunpack.c.h.b16 %v322
    %v1409 = vunpack.c.l.b16 %v323
    %v1410 = vunpack.c.h.b16 %v323
    %v1411 = vunpack.c.l.b16 %v324
    %v1412 = vunpack.c.h.b16 %v324
    %v1413 = vunpack.c.l.b16 %v325
    %v1414 = vunpack.c.h.b16 %v325
    %v1415 = vunpack.c.l.b16 %v326
    %v1416 = vunpack.c.h.b16 %v326
    %v1417 = vunpack.c.l.b16 %v327
    %v1418 = vunpack.c.h.b16 %v327
    %v1419 = vunpack.c.l.b16 %v328
    %v1420 = vunpack.c.h.b16 %v328
    %v1421 = vunpack.c.l.b16 %v329
    %v1422 = vunpack.c.h.b16 %v329
    %v1423 = vunpack.c.l.b16 %v330
    %v1424 = vunpack.c.h.b16 %v330
    %v1425 = vunpack.c.l.b16 %v331
    %v1426 = vunpack.c.h.b16 %v331
    %v1427 = vunpack.c.l.b16 %v332
    %v1428 = vunpack.c.h.b16 %v332
    %v1429 = vunpack.c.l.b16 %v333
    %v1430 = vunpack.c.h.b16 %v333
    %v1431 = vunpack.c.l.b16 %v334
    %v1432 = vunpack.c.h.b16 %v334
    %v1433 = vunpack.c.l.b16 %v335
    %v1434 = vunpack.c.h.b16 %v335
    %v1435 = vunpack.c.l.b16 %v336
    %v1436 = vunpack.c.h.b16 %v336
    %v1437 = vunpack.c.l.b16 %v337
    %v1438 = vunpack.c.h.b16 %v337
    %v1439 = vunpack.c.l.b16 %v338
    %v1440 = vunpack.c.h.b16 %v338
    %v1441 = vunpack.c.l.b16 %v339
    %v1442 = vunpack.c.h.b16 %v339
    %v1443 = vunpack.c.l.b16 %v340
    %v1444 = vunpack.c.h.b16 %v340
    %v1445 = vunpack.c.l.b16 %v341
    %v1446 = vunpack.c.h.b16 %v341
    %v1447 = vunpack.c.l.b16 %v342
    %v1448 = vunpack.c.h.b16 %v342
    %v1449 = vunpack.c.l.b16 %v343
    %v1450 = vunpack.c.h.b16 %v343
    %v1451 = vunpack.c.l.b16 %v344
    %v1452 = vunpack.c.h.b16 %v344
    %v1453 = vunpack.c.l.b16 %v345
    %v1454 = vunpack.c.h.b16 %v345
    %v1455 = vunpack.c.l.b16 %v346
    %v1456 = vunpack.c.h.b16 %v346
    %v1457 = vunpack.c.l.b16 %v347
    %v1458 = vunpack.c.h.b16 %v347
    %v1459 = vunpack.c.l.b16 %v348
    %v1460 = vunpack.c.h.b16 %v348
    %v1461 = vunpack.c.l.b16 %v349
    %v1462 = vunpack.c.h.b16 %v349
    %v1463 = vunpack.c.l.b16 %v350
    %v1464 = vunpack.c.h.b16 %v350
    %v1465 = vunpack.c.l.b16 %v351
    %v1466 = vunpack.c.h.b16 %v351
    %v1467 = vunpack.c.l.b16 %v352
    %v1468 = vunpack.c.h.b16 %v352
    %v1469 = vunpack.c.l.b16 %v353
    %v1470 = vunpack.c.h.b16 %v353
    %v1471 = vunpack.c.l.b16 %v354
    %v1472 = vunpack.c.h.b16 %v354
    %v1473 = vunpack.c.l.b16 %v355
    %v1474 = vunpack.c.h.b16 %v355
    %v1475 = vunpack.c.l.b16 %v356
    %v1476 = vunpack.c.h.b16 %v356
    %v1477 = vunpack.c.l.b16 %v357
    %v1478 = vunpack.c.h.b16 %v357
    %v1479 = vunpack.c.l.b16 %v358
    %v1480 = vunpack.c.h.b16 %v358
    %v1481 = vunpack.c.l.b16 %v359
    %v1482 = vunpack.c.h.b16 %v359
    %v1483 = vunpack.c.l.b16 %v360
    %v1484 = vunpack.c.h.b16 %v360
    %v1485 = vunpack.c.l.b16 %v361
    %v1486 = vunpack.c.h.b16 %v361
    %v1487 = vunpack.c.l.b16 %v362
    %v1488 = vunpack.c.h.b16 %v362
    %v1489 = vunpack.c.l.b16 %v363
    %v1490 = vunpack.c.h.b16 %v363
    %v1491 = vunpack.c.l.b16 %v364
    %v1492 = vunpack.c.h.b16 %v364
    %v1493 = vunpack.c.l.b16 %v365
    %v1494 = vunpack.c.h.b16 %v365
    %v1495 = vunpack.c.l.b16 %v366
    %v1496 = vunpack.c.h.b16 %v366
    %v1497 = vunpack.c.l.b16 %v367
    %v1498 = vunpack.c.h.b16 %v367
    %v1499 = vunpack.c.l.b16 %v368
    %v1500 = vunpack.c.h.b16 %v368
    %v1501 = vunpack.c.l.b16 %v369
    %v1502 = vunpack.c.h.b16 %v369
    %v1503 = vunpack.c.l.b16 %v370
    %v1504 = vunpack.c.h.b16 %v370
    %v1505 = vunpack.c.l.b16 %v371
    %v1506 = vunpack.c.h.b16 %v371
    %v1507 = vunpack.c.l.b16 %v372
    %v1508 = vunpack.c.h.b16 %v372
    %v1509 = vunpack.c.l.b16 %v373
    %v1510 = vunpack.c.h.b16 %v373
    %v1511 = vunpack.c.l.b16 %v374
    %v1512 = vunpack.c.h.b16 %v374
    %v1513 = vunpack.c.l.b16 %v375
    %v1514 = vunpack.c.h.b16 %v375
    %v1515 = vunpack.c.l.b16 %v376
    %v1516 = vunpack.c.h.b16 %v376
    %v1517 = vunpack.c.l.b16 %v377
    %v1518 = vunpack.c.h.b16 %v377
    %v1519 = vunpack.c.l.b16 %v378
    %v1520 = vunpack.c.h.b16 %v378
    %v1521 = vunpack.c.l.b16 %v379
    %v1522 = vunpack.c.h.b16 %v379
    %v1523 = vunpack.c.l.b16 %v380
    %v1524 = vunpack.c.h.b16 %v380
    %v1525 = vunpack.c.l.b16 %v381
    %v1526 = vunpack.c.h.b16 %v381
    %v1527 = vunpack.c.l.b16 %v382
    %v1528 = vunpack.c.h.b16 %v382
    %v1529 = vunpack.c.l.b16 %v383
    %v1530 = vunpack.c.h.b16 %v383
    %v1531 = vunpack.c.l.b16 %v384
    %v1532 = vunpack.c.h.b16 %v384
    %v1533 = vunpack.c.l.b16 %v385
    %v1534 = vunpack.c.h.b16 %v385
    %v1535 = vunpack.c.l.b16 %v386
    %v1536 = vunpack.c.h.b16 %v386
    %v1537 = vunpack.c.l.b16 %v387
    %v1538 = vunpack.c.h.b16 %v387
    %v1539 = vunpack.c.l.b16 %v388
    %v1540 = vunpack.c.h.b16 %v388
    %v1541 = vunpack.c.l.b16 %v389
    %v1542 = vunpack.c.h.b16 %v389
    %v1543 = vunpack.c.l.b16 %v390
    %v1544 = vunpack.c.h.b16 %v390
    %v1545 = vunpack.c.l.b16 %v391
    %v1546 = vunpack.c.h.b16 %v391
    %v1547 = vunpack.c.l.b16 %v392
    %v1548 = vunpack.c.h.b16 %v392
    %v1549 = vunpack.c.l.b16 %v393
    %v1550 = vunpack.c.h.b16 %v393
    %v1551 = vunpack.c.l.b16 %v394
    %v1552 = vunpack.c.h.b16 %v394
    %v1553 = vunpack.c.l.b16 %v395
    %v1554 = vunpack.c.h.b16 %v395
    %v1555 = vunpack.c.l.b16 %v396
    %v1556 = vunpack.c.h.b16 %v396
    %v1557 = vunpack.c.l.b16 %v397
    %v1558 = vunpack.c.h.b16 %v397
    %v1559 = vunpack.c.l.b16 %v398
    %v1560 = vunpack.c.h.b16 %v398
    %v1561 = vunpack.c.l.b16 %v399
    %v1562 = vunpack.c.h.b16 %v399
    %v1563 = vunpack.c.l.b16 %v400
    %v1564 = vunpack.c.h.b16 %v400
    %v1565 = vunpack.c.l.b16 %v401
    %v1566 = vunpack.c.h.b16 %v401
    %v1567 = vunpack.c.l.b16 %v402
    %v1568 = vunpack.c.h.b16 %v402
    %v1569 = vunpack.c.l.b16 %v403
    %v1570 = vunpack.c.h.b16 %v403
    %v1571 = vunpack.c.l.b16 %v404
    %v1572 = vunpack.c.h.b16 %v404
    %v1573 = vunpack.c.l.b16 %v405
    %v1574 = vunpack.c.h.b16 %v405
    %v1575 = vunpack.c.l.b16 %v406
    %v1576 = vunpack.c.h.b16 %v406
    %v1577 = vunpack.c.l.b16 %v407
    %v1578 = vunpack.c.h.b16 %v407
    %v1579 = vunpack.c.l.b16 %v408
    %v1580 = vunpack.c.h.b16 %v408
    %v1581 = vunpack.c.l.b16 %v409
    %v1582 = vunpack.c.h.b16 %v409
    %v1583 = vunpack.c.l.b16 %v410
    %v1584 = vunpack.c.h.b16 %v410
    %v1585 = vunpack.c.l.b16 %v411
    %v1586 = vunpack.c.h.b16 %v411
    %v1587 = vunpack.c.l.b16 %v412
    %v1588 = vunpack.c.h.b16 %v412
    %v1589 = vunpack.c.l.b16 %v413
    %v1590 = vunpack.c.h.b16 %v413
    %v1591 = vunpack.c.l.b16 %v414
    %v1592 = vunpack.c.h.b16 %v414
    %v1593 = vunpack.c.l.b16 %v415
    %v1594 = vunpack.c.h.b16 %v415
    %v1595 = vunpack.c.l.b16 %v416
    %v1596 = vunpack.c.h.b16 %v416
    %v1597 = vunpack.c.l.b16 %v417
    %v1598 = vunpack.c.h.b16 %v417
    %v1599 = vunpack.c.l.b16 %v418
    %v1600 = vunpack.c.h.b16 %v418
    %v1601 = vunpack.c.l.b16 %v419
    %v1602 = vunpack.c.h.b16 %v419
    %v1603 = vunpack.c.l.b16 %v420
    %v1604 = vunpack.c.h.b16 %v420
    %v1605 = vunpack.c.l.b16 %v421
    %v1606 = vunpack.c.h.b16 %v421
    %v1607 = vunpack.c.l.b16 %v422
    %v1608 = vunpack.c.h.b16 %v422
    %v1609 = vunpack.c.l.b16 %v423
    %v1610 = vunpack.c.h.b16 %v423
    %v1611 = vunpack.c.l.b16 %v424
    %v1612 = vunpack.c.h.b16 %v424
    %v1613 = vunpack.c.l.b16 %v425
    %v1614 = vunpack.c.h.b16 %v425
    %v1615 = vunpack.c.l.b16 %v426
    %v1616 = vunpack.c.h.b16 %v426
    %v1617 = vunpack.c.l.b16 %v427
    %v1618 = vunpack.c.h.b16 %v427
    %v1619 = vunpack.c.l.b16 %v428
    %v1620 = vunpack.c.h.b16 %v428
    %v1621 = vunpack.c.l.b16 %v429
    %v1622 = vunpack.c.h.b16 %v429
    %v1623 = vunpack.c.l.b16 %v430
    %v1624 = vunpack.c.h.b16 %v430
    %v1625 = vunpack.c.l.b16 %v431
    %v1626 = vunpack.c.h.b16 %v431
    %v1627 = vunpack.c.l.b16 %v432
    %v1628 = vunpack.c.h.b16 %v432
    %v1629 = vunpack.c.l.b16 %v433
    %v1630 = vunpack.c.h.b16 %v433
    %v1631 = vunpack.c.l.b16 %v434
    %v1632 = vunpack.c.h.b16 %v434
    %v1633 = vunpack.c.l.b16 %v435
    %v1634 = vunpack.c.h.b16 %v435
    %v1635 = vunpack.c.l.b16 %v436
    %v1636 = vunpack.c.h.b16 %v436
    %v1637 = vunpack.c.l.b16 %v437
    %v1638 = vunpack.c.h.b16 %v437
    %v1639 = vunpack.c.l.b16 %v438
    %v1640 = vunpack.c.h.b16 %v438
    %v1641 = vunpack.c.l.b16 %v439
    %v1642 = vunpack.c.h.b16 %v439
    %v1643 = vunpack.c.l.b16 %v440
    %v1644 = vunpack.c.h.b16 %v440
    %v1645 = vunpack.c.l.b16 %v441
    %v1646 = vunpack.c.h.b16 %v441
    %v1647 = vunpack.c.l.b16 %v442
    %v1648 = vunpack.c.h.b16 %v442
    %v1649 = vunpack.c.l.b16 %v443
    %v1650 = vunpack.c.h.b16 %v443
    %v1651 = vunpack.c.l.b16 %v444
    %v1652 = vunpack.c.h.b16 %v444
    %v1653 = vunpack.c.l.b16 %v445
    %v1654 = vunpack.c.h.b16 %v445
    %v1655 = vunpack.c.l.b16 %v446
    %v1656 = vunpack.c.h.b16 %v446
    %v1657 = vunpack.c.l.b16 %v447
    %v1658 = vunpack.c.h.b16 %v447
    %v1659 = vunpack.c.l.b16 %v448
    %v1660 = vunpack.c.h.b16 %v448
    %v1661 = vunpack.c.l.b16 %v449
    %v1662 = vunpack.c.h.b16 %v449
    %v1663 = vunpack.c.l.b16 %v450
    %v1664 = vunpack.c.h.b16 %v450
    %v1665 = vunpack.c.l.b16 %v451
    %v1666 = vunpack.c.h.b16 %v451
    %v1667 = vunpack.c.l.b16 %v452
    %v1668 = vunpack.c.h.b16 %v452
    %v1669 = vunpack.c.l.b16 %v453
    %v1670 = vunpack.c.h.b16 %v453
    %v1671 = vunpack.c.l.b16 %v454
    %v1672 = vunpack.c.h.b16 %v454
    %v1673 = vunpack.c.l.b16 %v455
    %v1674 = vunpack.c.h.b16 %v455
    %v1675 = vunpack.c.l.b16 %v456
    %v1676 = vunpack.c.h.b16 %v456
    %v1677 = vunpack.c.l.b16 %v457
    %v1678 = vunpack.c.h.b16 %v457
    %v1679 = vunpack.c.l.b16 %v458
    %v1680 = vunpack.c.h.b16 %v458
    %v1681 = vunpack.c.l.b16 %v459
    %v1682 = vunpack.c.h.b16 %v459
    %v1683 = vunpack.c.l.b16 %v460
    %v1684 = vunpack.c.h.b16 %v460
    %v1685 = vunpack.c.l.b16 %v461
    %v1686 = vunpack.c.h.b16 %v461
    %v1687 = vunpack.c.l.b16 %v462
    %v1688 = vunpack.c.h.b16 %v462
    %v1689 = vunpack.c.l.b16 %v463
    %v1690 = vunpack.c.h.b16 %v463
    %v1691 = vunpack.c.l.b16 %v464
    %v1692 = vunpack.c.h.b16 %v464
    %v1693 = vunpack.c.l.b16 %v465
    %v1694 = vunpack.c.h.b16 %v465
    %v1695 = vunpack.c.l.b16 %v466
    %v1696 = vunpack.c.h.b16 %v466
    %v1697 = vunpack.c.l.b16 %v467
    %v1698 = vunpack.c.h.b16 %v467
    %v1699 = vunpack.c.l.b16 %v468
    %v1700 = vunpack.c.h.b16 %v468
    %v1701 = vunpack.c.l.b16 %v469
    %v1702 = vunpack.c.h.b16 %v469
    %v1703 = vunpack.c.l.b16 %v470
    %v1704 = vunpack.c.h.b16 %v470
    %v1705 = vunpack.c.l.b16 %v471
    %v1706 = vunpack.c.h.b16 %v471
    %v1707 = vunpack.c.l.b16 %v472
    %v1708 = vunpack.c.h.b16 %v472
    %v1709 = vunpack.c.l.b16 %v473
    %v1710 = vunpack.c.h.b16 %v473
    %v1711 = vunpack.c.l.b16 %v474
    %v1712 = vunpack.c.h.b16 %v474
    %v1713 = vunpack.c.l.b16 %v475
    %v1714 = vunpack.c.h.b16 %v475
    %v1715 = vunpack.c.l.b16 %v476
    %v1716 = vunpack.c.h.b16 %v476
    %v1717 = vunpack.c.l.b16 %v477
    %v1718 = vunpack.c.h.b16 %v477
    %v1719 = vunpack.c.l.b16 %v478
    %v1720 = vunpack.c.h.b16 %v478
    %v1721 = vunpack.c.l.b16 %v479
    %v1722 = vunpack.c.h.b16 %v479
    %v1723 = vunpack.c.l.b16 %v480
    %v1724 = vunpack.c.h.b16 %v480
    %v1725 = vunpack.c.l.b16 %v481
    %v1726 = vunpack.c.h.b16 %v481
    %v1727 = vunpack.c.l.b16 %v482
    %v1728 = vunpack.c.h.b16 %v482
    %v1729 = vunpack.c.l.b16 %v483
    %v1730 = vunpack.c.h.b16 %v483
    %v1731 = vunpack.c.l.b16 %v484
    %v1732 = vunpack.c.h.b16 %v484
    %v1733 = vunpack.c.l.b16 %v485
    %v1734 = vunpack.c.h.b16 %v485
    %v1735 = vunpack.c.l.b16 %v486
    %v1736 = vunpack.c.h.b16 %v486
    %v1737 = vunpack.c.l.b16 %v487
    %v1738 = vunpack.c.h.b16 %v487
    %v1739 = vunpack.c.l.b16 %v488
    %v1740 = vunpack.c.h.b16 %v488
    %v1741 = vunpack.c.l.b16 %v489
    %v1742 = vunpack.c.h.b16 %v489
    %v1743 = vunpack.c.l.b16 %v490
    %v1744 = vunpack.c.h.b16 %v490
    %v1745 = vunpack.c.l.b16 %v491
    %v1746 = vunpack.c.h.b16 %v491
    %v1747 = vunpack.c.l.b16 %v492
    %v1748 = vunpack.c.h.b16 %v492
    %v1749 = vunpack.c.l.b16 %v493
    %v1750 = vunpack.c.h.b16 %v493
    %v1751 = vunpack.c.l.b16 %v494
    %v1752 = vunpack.c.h.b16 %v494
    %v1753 = vunpack.c.l.b16 %v495
    %v1754 = vunpack.c.h.b16 %v495
    %v1755 = vunpack.c.l.b16 %v496
    %v1756 = vunpack.c.h.b16 %v496
    %v1757 = vunpack.c.l.b16 %v497
    %v1758 = vunpack.c.h.b16 %v497
    %v1759 = vunpack.c.l.b16 %v498
    %v1760 = vunpack.c.h.b16 %v498
    %v1761 = vunpack.c.l.b16 %v499
    %v1762 = vunpack.c.h.b16 %v499
    %v1763 = vunpack.c.l.b16 %v500
    %v1764 = vunpack.c.h.b16 %v500
    %v1765 = vunpack.c.l.b16 %v501
    %v1766 = vunpack.c.h.b16 %v501
    %v1767 = vunpack.c.l.b16 %v502
    %v1768 = vunpack.c.h.b16 %v502
    %v1769 = vunpack.c.l.b16 %v503
    %v1770 = vunpack.c.h.b16 %v503
    %v1771 = vunpack.c.l.b16 %v504
    %v1772 = vunpack.c.h.b16 %v504
    %v1773 = vunpack.c.l.b16 %v505
    %v1774 = vunpack.c.h.b16 %v505
    %v1775 = vunpack.c.l.b16 %v506
    %v1776 = vunpack.c.h.b16 %v506
    %v1777 = vunpack.c.l.b16 %v507
    %v1778 = vunpack.c.h.b16 %v507
    %v1779 = vunpack.c.l.b16 %v508
    %v1780 = vunpack.c.h.b16 %v508
    %v1781 = vunpack.c.l.b16 %v509
    %v1782 = vunpack.c.h.b16 %v509
    %v1783 = vunpack.c.l.b16 %v510
    %v1784 = vunpack.c.h.b16 %v510
    %v1785 = vunpack.c.l.b16 %v511
    %v1786 = vunpack.c.h.b16 %v511
    %v1787 = vunpack.c.l.b16 %v512
    %v1788 = vunpack.c.h.b16 %v512
    %v1789 = vunpack.c.l.b16 %v513
    %v1790 = vunpack.c.h.b16 %v513
    %v1791 = vunpack.c.l.b16 %v514
    %v1792 = vunpack.c.h.b16 %v514
    %v1793 = vunpack.c.l.b16 %v515
    %v1794 = vunpack.c.h.b16 %v515
    %v1795 = vunpack.c.l.b16 %v516
    %v1796 = vunpack.c.h.b16 %v516
    %v1797 = vunpack.c.l.b16 %v517
    %v1798 = vunpack.c.h.b16 %v517
    %v1799 = vunpack.c.l.b16 %v518
    %v1800 = vunpack.c.h.b16 %v518
    %v1801 = vunpack.c.l.b16 %v519
    %v1802 = vunpack.c.h.b16 %v519
    %v1803 = vunpack.c.l.b16 %v520
    %v1804 = vunpack.c.h.b16 %v520
    %v1805 = vunpack.c.l.b16 %v521
    %v1806 = vunpack.c.h.b16 %v521
    %v1807 = vunpack.c.l.b16 %v522
    %v1808 = vunpack.c.h.b16 %v522
    %v1809 = vunpack.c.l.b16 %v523
    %v1810 = vunpack.c.h.b16 %v523
    %v1811 = vunpack.c.l.b16 %v524
    %v1812 = vunpack.c.h.b16 %v524
    %v1813 = vpack.c.b16 %v1037, %v1029
    %v1814 = vpack.c.b16 %v1038, %v1030
    %v1815 = vpack.c.b16 %v1039, %v1031
    %v1816 = vpack.c.b16 %v1040, %v1032
    %v1817 = vpack.c.b16 %v1041, %v1033
    %v1818 = vpack.c.b16 %v1042, %v1034
    %v1819 = vpack.c.b16 %v1043, %v1035
    %v1820 = vpack.c.b16 %v1044, %v1036
    %v1821 = vpack.c.b16 %v1053, %v1045
    %v1822 = vpack.c.b16 %v1054, %v1046
    %v1823 = vpack.c.b16 %v1055, %v1047
    %v1824 = vpack.c.b16 %v1056, %v1048
    %v1825 = vpack.c.b16 %v1057, %v1049
    %v1826 = vpack.c.b16 %v1058, %v1050
    %v1827 = vpack.c.b16 %v1059, %v1051
    %v1828 = vpack.c.b16 %v1060, %v1052
    %v1829 = vpack.c.b16 %v1069, %v1061
    %v1830 = vpack.c.b16 %v1070, %v1062
    %v1831 = vpack.c.b16 %v1071, %v1063
    %v1832 = vpack.c.b16 %v1072, %v1064
    %v1833 = vpack.c.b16 %v1073, %v1065
    %v1834 = vpack.c.b16 %v1074, %v1066
    %v1835 = vpack.c.b16 %v1075, %v1067
    %v1836 = vpack.c.b16 %v1076, %v1068
    %v1837 = vpack.c.b16 %v1085, %v1077
    %v1838 = vpack.c.b16 %v1086, %v1078
    %v1839 = vpack.c.b16 %v1087, %v1079
    %v1840 = vpack.c.b16 %v1088, %v1080
    %v1841 = vpack.c.b16 %v1089, %v1081
    %v1842 = vpack.c.b16 %v1090, %v1082
    %v1843 = vpack.c.b16 %v1091, %v1083
    %v1844 = vpack.c.b16 %v1092, %v1084
    %v1845 = vpack.c.b16 %v1101, %v1093
    %v1846 = vpack.c.b16 %v1102, %v1094
    %v1847 = vpack.c.b16 %v1103, %v1095
    %v1848 = vpack.c.b16 %v1104, %v1096
    %v1849 = vpack.c.b16 %v1105, %v1097
    %v1850 = vpack.c.b16 %v1106, %v1098
    %v1851 = vpack.c.b16 %v1107, %v1099
    %v1852 = vpack.c.b16 %v1108, %v1100
    %v1853 = vpack.c.b16 %v1117, %v1109
    %v1854 = vpack.c.b16 %v1118, %v1110
    %v1855 = vpack.c.b16 %v1119, %v1111
    %v1856 = vpack.c.b16 %v1120, %v1112
    %v1857 = vpack.c.b16 %v1121, %v1113
    %v1858 = vpack.c.b16 %v1122, %v1114
    %v1859 = vpack.c.b16 %v1123, %v1115
    %v1860 = vpack.c.b16 %v1124, %v1116
    %v1861 = vpack.c.b16 %v1133, %v1125
    %v1862 = vpack.c.b16 %v1134, %v1126
    %v1863 = vpack.c.b16 %v1135, %v1127
    %v1864 = vpack.c.b16 %v1136, %v1128
    %v1865 = vpack.c.b16 %v1137, %v1129
    %v1866 = vpack.c.b16 %v1138, %v1130
    %v1867 = vpack.c.b16 %v1139, %v1131
    %v1868 = vpack.c.b16 %v1140, %v1132
    %v1869 = vpack.c.b16 %v1149, %v1141
    %v1870 = vpack.c.b16 %v1150, %v1142
    %v1871 = vpack.c.b16 %v1151, %v1143
    %v1872 = vpack.c.b16 %v1152, %v1144
    %v1873 = vpack.c.b16 %v1153, %v1145
    %v1874 = vpack.c.b16 %v1154, %v1146
    %v1875 = vpack.c.b16 %v1155, %v1147
    %v1876 = vpack.c.b16 %v1156, %v1148
    %v1877 = vpack.c.b16 %v1165, %v1157
    %v1878 = vpack.c.b16 %v1166, %v1158
    %v1879 = vpack.c.b16 %v1167, %v1159
    %v1880 = vpack.c.b16 %v1168, %v1160
    %v1881 = vpack.c.b16 %v1169, %v1161
    %v1882 = vpack.c.b16 %v1170, %v1162
    %v1883 = vpack.c.b16 %v1171, %v1163
    %v1884 = vpack.c.b16 %v1172, %v1164
    %v1885 = vpack.c.b16 %v1181, %v1173
    %v1886 = vpack.c.b16 %v1182, %v1174
    %v1887 = vpack.c.b16 %v1183, %v1175
    %v1888 = vpack.c.b16 %v1184, %v1176
    %v1889 = vpack.c.b16 %v1185, %v1177
    %v1890 = vpack.c.b16 %v1186, %v1178
    %v1891 = vpack.c.b16 %v1187, %v1179
    %v1892 = vpack.c.b16 %v1188, %v1180
    %v1893 = vpack.c.b16 %v1197, %v1189
    %v1894 = vpack.c.b16 %v1198, %v1190
    %v1895 = vpack.c.b16 %v1199, %v1191
    %v1896 = vpack.c.b16 %v1200, %v1192
    %v1897 = vpack.c.b16 %v1201, %v1193
    %v1898 = vpack.c.b16 %v1202, %v1194
    %v1899 = vpack.c.b16 %v1203, %v1195
    %v1900 = vpack.c.b16 %v1204, %v1196
    %v1901 = vpack.c.b16 %v1213, %v1205
    %v1902 = vpack.c.b16 %v1214, %v1206
    %v1903 = vpack.c.b16 %v1215, %v1207
    %v1904 = vpack.c.b16 %v1216, %v1208
    %v1905 = vpack.c.b16 %v1217, %v1209
    %v1906 = vpack.c.b16 %v1218, %v1210
    %v1907 = vpack.c.b16 %v1219, %v1211
    %v1908 = vpack.c.b16 %v1220, %v1212
    %v1909 = vpack.c.b16 %v1229, %v1221
    %v1910 = vpack.c.b16 %v1230, %v1222
    %v1911 = vpack.c.b16 %v1231, %v1223
    %v1912 = vpack.c.b16 %v1232, %v1224
    %v1913 = vpack.c.b16 %v1233, %v1225
    %v1914 = vpack.c.b16 %v1234, %v1226
    %v1915 = vpack.c.b16 %v1235, %v1227
    %v1916 = vpack.c.b16 %v1236, %v1228
    %v1917 = vpack.c.b16 %v1245, %v1237
    %v1918 = vpack.c.b16 %v1246, %v1238
    %v1919 = vpack.c.b16 %v1247, %v1239
    %v1920 = vpack.c.b16 %v1248, %v1240
    %v1921 = vpack.c.b16 %v1249, %v1241
    %v1922 = vpack.c.b16 %v1250, %v1242
    %v1923 = vpack.c.b16 %v1251, %v1243
    %v1924 = vpack.c.b16 %v1252, %v1244
    %v1925 = vpack.c.b16 %v1261, %v1253
    %v1926 = vpack.c.b16 %v1262, %v1254
    %v1927 = vpack.c.b16 %v1263, %v1255
    %v1928 = vpack.c.b16 %v1264, %v1256
    %v1929 = vpack.c.b16 %v1265, %v1257
    %v1930 = vpack.c.b16 %v1266, %v1258
    %v1931 = vpack.c.b16 %v1267, %v1259
    %v1932 = vpack.c.b16 %v1268, %v1260
    %v1933 = vpack.c.b16 %v1277, %v1269
    %v1934 = vpack.c.b16 %v1278, %v1270
    %v1935 = vpack.c.b16 %v1279, %v1271
    %v1936 = vpack.c.b16 %v1280, %v1272
    %v1937 = vpack.c.b16 %v1281, %v1273
    %v1938 = vpack.c.b16 %v1282, %v1274
    %v1939 = vpack.c.b16 %v1283, %v1275
    %v1940 = vpack.c.b16 %v1284, %v1276
    %v1941 = vpack.c.b16 %v1293, %v1285
    %v1942 = vpack.c.b16 %v1294, %v1286
    %v1943 = vpack.c.b16 %v1295, %v1287
    %v1944 = vpack.c.b16 %v1296, %v1288
    %v1945 = vpack.c.b16 %v1297, %v1289
    %v1946 = vpack.c.b16 %v1298, %v1290
    %v1947 = vpack.c.b16 %v1299, %v1291
    %v1948 = vpack.c.b16 %v1300, %v1292
    %v1949 = vpack.c.b16 %v1309, %v1301
    %v1950 = vpack.c.b16 %v1310, %v1302
    %v1951 = vpack.c.b16 %v1311, %v1303
    %v1952 = vpack.c.b16 %v1312, %v1304
    %v1953 = vpack.c.b16 %v1313, %v1305
    %v1954 = vpack.c.b16 %v1314, %v1306
    %v1955 = vpack.c.b16 %v1315, %v1307
    %v1956 = vpack.c.b16 %v1316, %v1308
    %v1957 = vpack.c.b16 %v1325, %v1317
    %v1958 = vpack.c.b16 %v1326, %v1318
    %v1959 = vpack.c.b16 %v1327, %v1319
    %v1960 = vpack.c.b16 %v1328, %v1320
    %v1961 = vpack.c.b16 %v1329, %v1321
    %v1962 = vpack.c.b16 %v1330, %v1322
    %v1963 = vpack.c.b16 %v1331, %v1323
    %v1964 = vpack.c.b16 %v1332, %v1324
    %v1965 = vpack.c.b16 %v1341, %v1333
    %v1966 = vpack.c.b16 %v1342, %v1334
    %v1967 = vpack.c.b16 %v1343, %v1335
    %v1968 = vpack.c.b16 %v1344, %v1336
    %v1969 = vpack.c.b16 %v1345, %v1337
    %v1970 = vpack.c.b16 %v1346, %v1338
    %v1971 = vpack.c.b16 %v1347, %v1339
    %v1972 = vpack.c.b16 %v1348, %v1340
    %v1973 = vpack.c.b16 %v1357, %v1349
    %v1974 = vpack.c.b16 %v1358, %v1350
    %v1975 = vpack.c.b16 %v1359, %v1351
    %v1976 = vpack.c.b16 %v1360, %v1352
    %v1977 = vpack.c.b16 %v1361, %v1353
    %v1978 = vpack.c.b16 %v1362, %v1354
    %v1979 = vpack.c.b16 %v1363, %v1355
    %v1980 = vpack.c.b16 %v1364, %v1356
    %v1981 = vpack.c.b16 %v1373, %v1365
    %v1982 = vpack.c.b16 %v1374, %v1366
    %v1983 = vpack.c.b16 %v1375, %v1367
    %v1984 = vpack.c.b16 %v1376, %v1368
    %v1985 = vpack.c.b16 %v1377, %v1369
    %v1986 = vpack.c.b16 %v1378, %v1370
    %v1987 = vpack.c.b16 %v1379, %v1371
    %v1988 = vpack.c.b16 %v1380, %v1372
    %v1989 = vpack.c.b16 %v1389, %v1381
    %v1990 = vpack.c.b16 %v1390, %v1382
    %v1991 = vpack.c.b16 %v1391, %v1383
    %v1992 = vpack.c.b16 %v1392, %v1384
    %v1993 = vpack.c.b16 %v1393, %v1385
    %v1994 = vpack.c.b16 %v1394, %v1386
    %v1995 = vpack.c.b16 %v1395, %v1387
    %v1996 = vpack.c.b16 %v1396, %v1388
    %v1997 = vpack.c.b16 %v1405, %v1397
    %v1998 = vpack.c.b16 %v1406, %v1398
    %v1999 = vpack.c.b16 %v1407, %v1399
    %v2000 = vpack.c.b16 %v1408, %v1400
    %v2001 = vpack.c.b16 %v1409, %v1401
    %v2002 = vpack.c.b16 %v1410, %v1402
    %v2003 = vpack.c.b16 %v1411, %v1403
    %v2004 = vpack.c.b16 %v1412, %v1404
    %v2005 = vpack.c.b16 %v1421, %v1413
    %v2006 = vpack.c.b16 %v1422, %v1414
    %v2007 = vpack.c.b16 %v1423, %v1415
    %v2008 = vpack.c.b16 %v1424, %v1416
    %v2009 = vpack.c.b16 %v1425, %v1417
    %v2010 = vpack.c.b16 %v1426, %v1418
    %v2011 = vpack.c.b16 %v1427, %v1419
    %v2012 = vpack.c.b16 %v1428, %v1420
    %v2013 = vpack.c.b16 %v1437, %v1429
    %v2014 = vpack.c.b16 %v1438, %v1430
    %v2015 = vpack.c.b16 %v1439, %v1431
    %v2016 = vpack.c.b16 %v1440, %v1432
    %v2017 = vpack.c.b16 %v1441, %v1433
    %v2018 = vpack.c.b16 %v1442, %v1434
    %v2019 = vpack.c.b16 %v1443, %v1435
    %v2020 = vpack.c.b16 %v1444, %v1436
    %v2021 = vpack.c.b16 %v1453, %v1445
    %v2022 = vpack.c.b16 %v1454, %v1446
    %v2023 = vpack.c.b16 %v1455, %v1447
    %v2024 = vpack.c.b16 %v1456, %v1448
    %v2025 = vpack.c.b16 %v1457, %v1449
    %v2026 = vpack.c.b16 %v1458, %v1450
    %v2027 = vpack.c.b16 %v1459, %v1451
    %v2028 = vpack.c.b16 %v1460, %v1452
    %v2029 = vpack.c.b16 %v1469, %v1461
    %v2030 = vpack.c.b16 %v1470, %v1462
    %v2031 = vpack.c.b16 %v1471, %v1463
    %v2032 = vpack.c.b16 %v1472, %v1464
    %v2033 = vpack.c.b16 %v1473, %v1465
    %v2034 = vpack.c.b16 %v1474, %v1466
    %v2035 = vpack.c.b16 %v1475, %v1467
    %v2036 = vpack.c.b16 %v1476, %v1468
    %v2037 = vpack.c.b16 %v1485, %v1477
    %v2038 = vpack.c.b16 %v1486, %v1478
    %v2039 = vpack.c.b16 %v1487, %v1479
    %v2040 = vpack.c.b16 %v1488, %v1480
    %v2041 = vpack.c.b16 %v1489, %v1481
    %v2042 = vpack.c.b16 %v1490, %v1482
    %v2043 = vpack.c.b16 %v1491, %v1483
    %v2044 = vpack.c.b16 %v1492, %v1484
    %v2045 = vpack.c.b16 %v1501, %v1493
    %v2046 = vpack.c.b16 %v1502, %v1494
    %v2047 = vpack.c.b16 %v1503, %v1495
    %v2048 = vpack.c.b16 %v1504, %v1496
    %v2049 = vpack.c.b16 %v1505, %v1497
    %v2050 = vpack.c.b16 %v1506, %v1498
    %v2051 = vpack.c.b16 %v1507, %v1499
    %v2052 = vpack.c.b16 %v1508, %v1500
    %v2053 = vpack.c.b16 %v1517, %v1509
    %v2054 = vpack.c.b16 %v1518, %v1510
    %v2055 = vpack.c.b16 %v1519, %v1511
    %v2056 = vpack.c.b16 %v1520, %v1512
    %v2057 = vpack.c.b16 %v1521, %v1513
    %v2058 = vpack.c.b16 %v1522, %v1514
    %v2059 = vpack.c.b16 %v1523, %v1515
    %v2060 = vpack.c.b16 %v1524, %v1516
    %v2061 = vpack.c.b16 %v1533, %v1525
    %v2062 = vpack.c.b16 %v1534, %v1526
    %v2063 = vpack.c.b16 %v1535, %v1527
    %v2064 = vpack.c.b16 %v1536, %v1528
    %v2065 = vpack.c.b16 %v1537, %v1529
    %v2066 = vpack.c.b16 %v1538, %v1530
    %v2067 = vpack.c.b16 %v1539, %v1531
    %v2068 = vpack.c.b16 %v1540, %v1532
    %v2069 = vpack.c.b16 %v1549, %v1541
    %v2070 = vpack.c.b16 %v1550, %v1542
    %v2071 = vpack.c.b16 %v1551, %v1543
    %v2072 = vpack.c.b16 %v1552, %v1544
    %v2073 = vpack.c.b16 %v1553, %v1545
    %v2074 = vpack.c.b16 %v1554, %v1546
    %v2075 = vpack.c.b16 %v1555, %v1547
    %v2076 = vpack.c.b16 %v1556, %v1548
    %v2077 = vpack.c.b16 %v1565, %v1557
    %v2078 = vpack.c.b16 %v1566, %v1558
    %v2079 = vpack.c.b16 %v1567, %v1559
    %v2080 = vpack.c.b16 %v1568, %v1560
    %v2081 = vpack.c.b16 %v1569, %v1561
    %v2082 = vpack.c.b16 %v1570, %v1562
    %v2083 = vpack.c.b16 %v1571, %v1563
    %v2084 = vpack.c.b16 %v1572, %v1564
    %v2085 = vpack.c.b16 %v1581, %v1573
    %v2086 = vpack.c.b16 %v1582, %v1574
    %v2087 = vpack.c.b16 %v1583, %v1575
    %v2088 = vpack.c.b16 %v1584, %v1576
    %v2089 = vpack.c.b16 %v1585, %v1577
    %v2090 = vpack.c.b16 %v1586, %v1578
    %v2091 = vpack.c.b16 %v1587, %v1579
    %v2092 = vpack.c.b16 %v1588, %v1580
    %v2093 = vpack.c.b16 %v1597, %v1589
    %v2094 = vpack.c.b16 %v1598, %v1590
    %v2095 = vpack.c.b16 %v1599, %v1591
    %v2096 = vpack.c.b16 %v1600, %v1592
    %v2097 = vpack.c.b16 %v1601, %v1593
    %v2098 = vpack.c.b16 %v1602, %v1594
    %v2099 = vpack.c.b16 %v1603, %v1595
    %v2100 = vpack.c.b16 %v1604, %v1596
    %v2101 = vpack.c.b16 %v1613, %v1605
    %v2102 = vpack.c.b16 %v1614, %v1606
    %v2103 = vpack.c.b16 %v1615, %v1607
    %v2104 = vpack.c.b16 %v1616, %v1608
    %v2105 = vpack.c.b16 %v1617, %v1609
    %v2106 = vpack.c.b16 %v1618, %v1610
    %v2107 = vpack.c.b16 %v1619, %v1611
    %v2108 = vpack.c.b16 %v1620, %v1612
    %v2109 = vpack.c.b16 %v1629, %v1621
    %v2110 = vpack.c.b16 %v1630, %v1622
    %v2111 = vpack.c.b16 %v1631, %v1623
    %v2112 = vpack.c.b16 %v1632, %v1624
    %v2113 = vpack.c.b16 %v1633, %v1625
    %v2114 = vpack.c.b16 %v1634, %v1626
    %v2115 = vpack.c.b16 %v1635, %v1627
    %v2116 = vpack.c.b16 %v1636, %v1628
    %v2117 = vpack.c.b16 %v1645, %v1637
    %v2118 = vpack.c.b16 %v1646, %v1638
    %v2119 = vpack.c.b16 %v1647, %v1639
    %v2120 = vpack.c.b16 %v1648, %v1640
    %v2121 = vpack.c.b16 %v1649, %v1641
    %v2122 = vpack.c.b16 %v1650, %v1642
    %v2123 = vpack.c.b16 %v1651, %v1643
    %v2124 = vpack.c.b16 %v1652, %v1644
    %v2125 = vpack.c.b16 %v1661, %v1653
    %v2126 = vpack.c.b16 %v1662, %v1654
    %v2127 = vpack.c.b16 %v1663, %v1655
    %v2128 = vpack.c.b16 %v1664, %v1656
    %v2129 = vpack.c.b16 %v1665, %v1657
    %v2130 = vpack.c.b16 %v1666, %v1658
    %v2131 = vpack.c.b16 %v1667, %v1659
    %v2132 = vpack.c.b16 %v1668, %v1660
    %v2133 = vpack.c.b16 %v1677, %v1669
    %v2134 = vpack.c.b16 %v1678, %v1670
    %v2135 = vpack.c.b16 %v1679, %v1671
    %v2136 = vpack.c.b16 %v1680, %v1672
    %v2137 = vpack.c.b16 %v1681, %v1673
    %v2138 = vpack.c.b16 %v1682, %v1674
    %v2139 = vpack.c.b16 %v1683, %v1675
    %v2140 = vpack.c.b16 %v1684, %v1676
    %v2141 = vpack.c.b16 %v1693, %v1685
    %v2142 = vpack.c.b16 %v1694, %v1686
    %v2143 = vpack.c.b16 %v1695, %v1687
    %v2144 = vpack.c.b16 %v1696, %v1688
    %v2145 = vpack.c.b16 %v1697, %v1689
    %v2146 = vpack.c.b16 %v1698, %v1690
    %v2147 = vpack.c.b16 %v1699, %v1691
    %v2148 = vpack.c.b16 %v1700, %v1692
    %v2149 = vpack.c.b16 %v1709, %v1701
    %v2150 = vpack.c.b16 %v1710, %v1702
    %v2151 = vpack.c.b16 %v1711, %v1703
    %v2152 = vpack.c.b16 %v1712, %v1704
    %v2153 = vpack.c.b16 %v1713, %v1705
    %v2154 = vpack.c.b16 %v1714, %v1706
    %v2155 = vpack.c.b16 %v1715, %v1707
    %v2156 = vpack.c.b16 %v1716, %v1708
    %v2157 = vpack.c.b16 %v1725, %v1717
    %v2158 = vpack.c.b16 %v1726, %v1718
    %v2159 = vpack.c.b16 %v1727, %v1719
    %v2160 = vpack.c.b16 %v1728, %v1720
    %v2161 = vpack.c.b16 %v1729, %v1721
    %v2162 = vpack.c.b16 %v1730, %v1722
    %v2163 = vpack.c.b16 %v1731, %v1723
    %v2164 = vpack.c.b16 %v1732, %v1724
    %v2165 = vpack.c.b16 %v1741, %v1733
    %v2166 = vpack.c.b16 %v1742, %v1734
    %v2167 = vpack.c.b16 %v1743, %v1735
    %v2168 = vpack.c.b16 %v1744, %v1736
    %v2169 = vpack.c.b16 %v1745, %v1737
    %v2170 = vpack.c.b16 %v1746, %v1738
    %v2171 = vpack.c.b16 %v1747, %v1739
    %v2172 = vpack.c.b16 %v1748, %v1740
    %v2173 = vpack.c.b16 %v1757, %v1749
    %v2174 = vpack.c.b16 %v1758, %v1750
    %v2175 = vpack.c.b16 %v1759, %v1751
    %v2176 = vpack.c.b16 %v1760, %v1752
    %v2177 = vpack.c.b16 %v1761, %v1753
    %v2178 = vpack.c.b16 %v1762, %v1754
    %v2179 = vpack.c.b16 %v1763, %v1755
    %v2180 = vpack.c.b16 %v1764, %v1756
    %v2181 = vpack.c.b16 %v1773, %v1765
    %v2182 = vpack.c.b16 %v1774, %v1766
    %v2183 = vpack.c.b16 %v1775, %v1767
    %v2184 = vpack.c.b16 %v1776, %v1768
    %v2185 = vpack.c.b16 %v1777, %v1769
    %v2186 = vpack.c.b16 %v1778, %v1770
    %v2187 = vpack.c.b16 %v1779, %v1771
    %v2188 = vpack.c.b16 %v1780, %v1772
    %v2189 = vpack.c.b16 %v1789, %v1781
    %v2190 = vpack.c.b16 %v1790, %v1782
    %v2191 = vpack.c.b16 %v1791, %v1783
    %v2192 = vpack.c.b16 %v1792, %v1784
    %v2193 = vpack.c.b16 %v1793, %v1785
    %v2194 = vpack.c.b16 %v1794, %v1786
    %v2195 = vpack.c.b16 %v1795, %v1787
    %v2196 = vpack.c.b16 %v1796, %v1788
    %v2197 = vpack.c.b16 %v1805, %v1797
    %v2198 = vpack.c.b16 %v1806, %v1798
    %v2199 = vpack.c.b16 %v1807, %v1799
    %v2200 = vpack.c.b16 %v1808, %v1800
    %v2201 = vpack.c.b16 %v1809, %v1801
    %v2202 = vpack.c.b16 %v1810, %v1802
    %v2203 = vpack.c.b16 %v1811, %v1803
    %v2204 = vpack.c.b16 %v1812, %v1804
    %vm2597 = vcmask 130048
    %v2599 = vsel %vm2597, %v617, 0
    %v2602 = vsel %vm2597, %v624, 0
    %2604 = vmatprep.subr.bf16.mxu0 %v1814
    %2605 = vmatpush1.bf16.msra.mxu0 %v1813
    %2606 = vmatprep.subr.bf16.mxu0 %v1822
    %2607 = vmatpush1.bf16.msra.mxu0 %v1821
    %2608 = vmatprep.subr.bf16.mxu0 %v1830
    %2609 = vmatpush1.bf16.msra.mxu0 %v1829
    %2610 = vmatprep.subr.bf16.mxu0 %v1838
    %2611 = vmatpush1.bf16.msra.mxu0 %v1837
    %2612 = vmatprep.subr.bf16.mxu0 %v1846
    %2613 = vmatpush1.bf16.msra.mxu0 %v1845
    %2614 = vmatprep.subr.bf16.mxu0 %v1854
    %2615 = vmatpush1.bf16.msra.mxu0 %v1853
    %2616 = vmatprep.subr.bf16.mxu0 %v1862
    %2617 = vmatpush1.bf16.msra.mxu0 %v1861
    %2618 = vmatprep.subr.bf16.mxu0 %v1870
    %2619 = vmatpush1.bf16.msra.mxu0 %v1869
    %2620 = vmatprep.subr.bf16.mxu0 %v1878
    %2621 = vmatpush1.bf16.msra.mxu0 %v1877
    %2622 = vmatprep.subr.bf16.mxu0 %v1886
    %2623 = vmatpush1.bf16.msra.mxu0 %v1885
    %2624 = vmatprep.subr.bf16.mxu0 %v1894
    %2625 = vmatpush1.bf16.msra.mxu0 %v1893
    %2626 = vmatprep.subr.bf16.mxu0 %v1902
    %2627 = vmatpush1.bf16.msra.mxu0 %v1901
    %2628 = vmatprep.subr.bf16.mxu0 %v1910
    %2629 = vmatpush1.bf16.msra.mxu0 %v1909
    %2630 = vmatprep.subr.bf16.mxu0 %v1918
    %2631 = vmatpush1.bf16.msra.mxu0 %v1917
    %2632 = vmatprep.subr.bf16.mxu0 %v1926
    %2633 = vmatpush1.bf16.msra.mxu0 %v1925
    %2634 = vmatprep.subr.bf16.mxu0 %v1934
    %2635 = vmatpush1.bf16.msra.mxu0 %v1933
    %2636 = vmatprep.mubr.bf16.mxu0 %v612
    %2637 = vmatmul.mubr.bf16.gmra.mrb[0].mxu0 %v611
    %v2638 = vpop.f32.mrb[0].mxu0
    %v2639 = vadd.f32 %v530, %v2638
    %v2640 = vpop.f32.mrb[0].mxu0
    %v2641 = vadd.f32 %v534, %v2640
    %v2642 = vpop.f32.mrb[0].mxu0
    %v2643 = vadd.f32 %v530, %v2642
    %v2644 = vpop.f32.mrb[0].mxu0
    %v2645 = vadd.f32 %v534, %v2644
    %2646 = vmatprep.mubr.bf16.mxu0 %v619
    %2647 = vmatmul.mubr.bf16.gmra.mrb[0].mxu0 %v618
    %v2648 = vpop.f32.mrb[0].mxu0
    %v2649 = vadd.f32 %v530, %v2648
    %v2650 = vpop.f32.mrb[0].mxu0
    %v2651 = vadd.f32 %v534, %v2650
    %v2652 = vpop.f32.mrb[0].mxu0
    %v2653 = vadd.f32 %v530, %v2652
    %v2654 = vpop.f32.mrb[0].mxu0
    %v2655 = vadd.f32 %v534, %v2654
    %2656 = vdwg.mxu0
    %2657 = vmatprep.subr.bf16.mxu0 %v1942
    %2658 = vmatpush1.bf16.msra.mxu0 %v1941
    %2659 = vmatprep.subr.bf16.mxu0 %v1950
    %2660 = vmatpush1.bf16.msra.mxu0 %v1949
    %2661 = vmatprep.subr.bf16.mxu0 %v1958
    %2662 = vmatpush1.bf16.msra.mxu0 %v1957
    %2663 = vmatprep.subr.bf16.mxu0 %v1966
    %2664 = vmatpush1.bf16.msra.mxu0 %v1965
    %2665 = vmatprep.subr.bf16.mxu0 %v1974
    %2666 = vmatpush1.bf16.msra.mxu0 %v1973
    %2667 = vmatprep.subr.bf16.mxu0 %v1982
    %2668 = vmatpush1.bf16.msra.mxu0 %v1981
    %2669 = vmatprep.subr.bf16.mxu0 %v1990
    %2670 = vmatpush1.bf16.msra.mxu0 %v1989
    %2671 = vmatprep.subr.bf16.mxu0 %v1998
    %2672 = vmatpush1.bf16.msra.mxu0 %v1997
    %2673 = vmatprep.subr.bf16.mxu0 %v2006
    %2674 = vmatpush1.bf16.msra.mxu0 %v2005
    %2675 = vmatprep.subr.bf16.mxu0 %v2014
    %2676 = vmatpush1.bf16.msra.mxu0 %v2013
    %2677 = vmatprep.subr.bf16.mxu0 %v2022
    %2678 = vmatpush1.bf16.msra.mxu0 %v2021
    %2679 = vmatprep.subr.bf16.mxu0 %v2030
    %2680 = vmatpush1.bf16.msra.mxu0 %v2029
    %2681 = vmatprep.subr.bf16.mxu0 %v2038
    %2682 = vmatpush1.bf16.msra.mxu0 %v2037
    %2683 = vmatprep.subr.bf16.mxu0 %v2046
    %2684 = vmatpush1.bf16.msra.mxu0 %v2045
    %2685 = vmatprep.subr.bf16.mxu0 %v2054
    %2686 = vmatpush1.bf16.msra.mxu0 %v2053
    %2687 = vmatprep.subr.bf16.mxu0 %v2062
    %2688 = vmatpush1.bf16.msra.mxu0 %v2061
    %2689 = vmatprep.mubr.bf16.mxu0 %v614
    %2690 = vmatmul.mubr.bf16.gmra.mrb[0].mxu0 %v613
    %v2691 = vpop.f32.mrb[0].mxu0
    %v2692 = vadd.f32 %v2639, %v2691
    %v2693 = vpop.f32.mrb[0].mxu0
    %v2694 = vadd.f32 %v2641, %v2693
    %v2695 = vpop.f32.mrb[0].mxu0
    %v2696 = vadd.f32 %v2643, %v2695
    %v2697 = vpop.f32.mrb[0].mxu0
    %v2698 = vadd.f32 %v2645, %v2697
    %2699 = vmatprep.mubr.bf16.mxu0 %v621
    %2700 = vmatmul.mubr.bf16.gmra.mrb[0].mxu0 %v620
    %v2701 = vpop.f32.mrb[0].mxu0
    %v2702 = vadd.f32 %v2649, %v2701
    %v2703 = vpop.f32.mrb[0].mxu0
    %v2704 = vadd.f32 %v2651, %v2703
    %v2705 = vpop.f32.mrb[0].mxu0
    %v2706 = vadd.f32 %v2653, %v2705
    %v2707 = vpop.f32.mrb[0].mxu0
    %v2708 = vadd.f32 %v2655, %v2707
    %2709 = vdwg.mxu0
    %2710 = vmatprep.subr.bf16.mxu0 %v2070
    %2711 = vmatpush1.bf16.msra.mxu0 %v2069
    %2712 = vmatprep.subr.bf16.mxu0 %v2078
    %2713 = vmatpush1.bf16.msra.mxu0 %v2077
    %2714 = vmatprep.subr.bf16.mxu0 %v2086
    %2715 = vmatpush1.bf16.msra.mxu0 %v2085
    %2716 = vmatprep.subr.bf16.mxu0 %v2094
    %2717 = vmatpush1.bf16.msra.mxu0 %v2093
    %2718 = vmatprep.subr.bf16.mxu0 %v2102
    %2719 = vmatpush1.bf16.msra.mxu0 %v2101
    %2720 = vmatprep.subr.bf16.mxu0 %v2110
    %2721 = vmatpush1.bf16.msra.mxu0 %v2109
    %2722 = vmatprep.subr.bf16.mxu0 %v2118
    %2723 = vmatpush1.bf16.msra.mxu0 %v2117
    %2724 = vmatprep.subr.bf16.mxu0 %v2126
    %2725 = vmatpush1.bf16.msra.mxu0 %v2125
    %2726 = vmatprep.subr.bf16.mxu0 %v2134
    %2727 = vmatpush1.bf16.msra.mxu0 %v2133
    %2728 = vmatprep.subr.bf16.mxu0 %v2142
    %2729 = vmatpush1.bf16.msra.mxu0 %v2141
    %2730 = vmatprep.subr.bf16.mxu0 %v2150
    %2731 = vmatpush1.bf16.msra.mxu0 %v2149
    %2732 = vmatprep.subr.bf16.mxu0 %v2158
    %2733 = vmatpush1.bf16.msra.mxu0 %v2157
    %2734 = vmatprep.subr.bf16.mxu0 %v2166
    %2735 = vmatpush1.bf16.msra.mxu0 %v2165
    %2736 = vmatprep.subr.bf16.mxu0 %v2174
    %2737 = vmatpush1.bf16.msra.mxu0 %v2173
    %2738 = vmatprep.subr.bf16.mxu0 %v2182
    %2739 = vmatpush1.bf16.msra.mxu0 %v2181
    %2740 = vmatprep.subr.bf16.mxu0 %v2190
    %2741 = vmatpush1.bf16.msra.mxu0 %v2189
    %2742 = vmatprep.mubr.bf16.mxu0 %v616
    %2743 = vmatmul.mubr.bf16.gmra.mrb[0].mxu0 %v615
    %v2744 = vpop.f32.mrb[0].mxu0
    %v2745 = vadd.f32 %v2692, %v2744
    %v2746 = vpop.f32.mrb[0].mxu0
    %v2747 = vadd.f32 %v2694, %v2746
    %v2748 = vpop.f32.mrb[0].mxu0
    %v2749 = vadd.f32 %v2696, %v2748
    %v2750 = vpop.f32.mrb[0].mxu0
    %v2751 = vadd.f32 %v2698, %v2750
    %2752 = vmatprep.mubr.bf16.mxu0 %v623
    %2753 = vmatmul.mubr.bf16.gmra.mrb[0].mxu0 %v622
    %v2754 = vpop.f32.mrb[0].mxu0
    %v2755 = vadd.f32 %v2702, %v2754
    %v2756 = vpop.f32.mrb[0].mxu0
    %v2757 = vadd.f32 %v2704, %v2756
    %v2758 = vpop.f32.mrb[0].mxu0
    %v2759 = vadd.f32 %v2706, %v2758
    %v2760 = vpop.f32.mrb[0].mxu0
    %v2761 = vadd.f32 %v2708, %v2760
    %2762 = vdwg.mxu0
    %2763 = vmatprep.subr.bf16.mxu0 %v2198
    %2764 = vmatpush1.bf16.msra.mxu0 %v2197
    %2765 = vmatprep.subr.bf16.mxu0 0
    %2766 = vmatpush1.bf16.msra.mxu0 0
    %2767 = vmatprep.subr.bf16.mxu0 0
    %2768 = vmatpush1.bf16.msra.mxu0 0
    %2769 = vmatprep.subr.bf16.mxu0 0
    %2770 = vmatpush1.bf16.msra.mxu0 0
    %2771 = vmatprep.subr.bf16.mxu0 0
    %2772 = vmatpush1.bf16.msra.mxu0 0
    %2773 = vmatprep.subr.bf16.mxu0 0
    %2774 = vmatpush1.bf16.msra.mxu0 0
    %2775 = vmatprep.subr.bf16.mxu0 0
    %2776 = vmatpush1.bf16.msra.mxu0 0
    %2777 = vmatprep.subr.bf16.mxu0 0
    %2778 = vmatpush1.bf16.msra.mxu0 0
    %2779 = vmatprep.subr.bf16.mxu0 0
    %2780 = vmatpush1.bf16.msra.mxu0 0
    %2781 = vmatprep.subr.bf16.mxu0 0
    %2782 = vmatpush1.bf16.msra.mxu0 0
    %2783 = vmatprep.subr.bf16.mxu0 0
    %2784 = vmatpush1.bf16.msra.mxu0 0
    %2785 = vmatprep.subr.bf16.mxu0 0
    %2786 = vmatpush1.bf16.msra.mxu0 0
    %2787 = vmatprep.subr.bf16.mxu0 0
    %2788 = vmatpush1.bf16.msra.mxu0 0
    %2789 = vmatprep.subr.bf16.mxu0 0
    %2790 = vmatpush1.bf16.msra.mxu0 0
    %2791 = vmatprep.subr.bf16.mxu0 0
    %2792 = vmatpush1.bf16.msra.mxu0 0
    %2793 = vmatprep.subr.bf16.mxu0 0
    %2794 = vmatpush1.bf16.msra.mxu0 0
    %2795 = vmatprep.mubr.bf16.mxu0 0
    %2796 = vmatmul.mubr.bf16.gmra.mrb[0].mxu0 %v2599
    %v2797 = vpop.f32.mrb[0].mxu0
    %v2798 = vadd.f32 %v2745, %v2797
    %v2799 = vpop.f32.mrb[0].mxu0
    %v2800 = vadd.f32 %v2747, %v2799
    %v2801 = vpop.f32.mrb[0].mxu0
    %v2802 = vadd.f32 %v2749, %v2801
    %v2803 = vpop.f32.mrb[0].mxu0
    %v2804 = vadd.f32 %v2751, %v2803
    %2805 = vmatprep.mubr.bf16.mxu0 0
    %2806 = vmatmul.mubr.bf16.gmra.mrb[0].mxu0 %v2602
    %v2807 = vpop.f32.mrb[0].mxu0
    %v2808 = vadd.f32 %v2755, %v2807
    %v2809 = vpop.f32.mrb[0].mxu0
    %v2810 = vadd.f32 %v2757, %v2809
    %v2811 = vpop.f32.mrb[0].mxu0
    %v2812 = vadd.f32 %v2759, %v2811
    %v2813 = vpop.f32.mrb[0].mxu0
    %v2814 = vadd.f32 %v2761, %v2813
    %2815 = vdwg.mxu0
    %2816 = vmatprep.subr.bf16.mxu0 %v1816
    %2817 = vmatpush1.bf16.msra.mxu0 %v1815
    %2818 = vmatprep.subr.bf16.mxu0 %v1824
    %2819 = vmatpush1.bf16.msra.mxu0 %v1823
    %2820 = vmatprep.subr.bf16.mxu0 %v1832
    %2821 = vmatpush1.bf16.msra.mxu0 %v1831
    %2822 = vmatprep.subr.bf16.mxu0 %v1840
    %2823 = vmatpush1.bf16.msra.mxu0 %v1839
    %2824 = vmatprep.subr.bf16.mxu0 %v1848
    %2825 = vmatpush1.bf16.msra.mxu0 %v1847
    %2826 = vmatprep.subr.bf16.mxu0 %v1856
    %2827 = vmatpush1.bf16.msra.mxu0 %v1855
    %2828 = vmatprep.subr.bf16.mxu0 %v1864
    %2829 = vmatpush1.bf16.msra.mxu0 %v1863
    %2830 = vmatprep.subr.bf16.mxu0 %v1872
    %2831 = vmatpush1.bf16.msra.mxu0 %v1871
    %2832 = vmatprep.subr.bf16.mxu0 %v1880
    %2833 = vmatpush1.bf16.msra.mxu0 %v1879
    %2834 = vmatprep.subr.bf16.mxu0 %v1888
    %2835 = vmatpush1.bf16.msra.mxu0 %v1887
    %2836 = vmatprep.subr.bf16.mxu0 %v1896
    %2837 = vmatpush1.bf16.msra.mxu0 %v1895
    %2838 = vmatprep.subr.bf16.mxu0 %v1904
    %2839 = vmatpush1.bf16.msra.mxu0 %v1903
    %2840 = vmatprep.subr.bf16.mxu0 %v1912
    %2841 = vmatpush1.bf16.msra.mxu0 %v1911
    %2842 = vmatprep.subr.bf16.mxu0 %v1920
    %2843 = vmatpush1.bf16.msra.mxu0 %v1919
    %2844 = vmatprep.subr.bf16.mxu0 %v1928
    %2845 = vmatpush1.bf16.msra.mxu0 %v1927
    %2846 = vmatprep.subr.bf16.mxu0 %v1936
    %2847 = vmatpush1.bf16.msra.mxu0 %v1935
    %2848 = vmatprep.mubr.bf16.mxu0 %v612
    %2849 = vmatmul.mubr.bf16.gmra.mrb[0].mxu0 %v611
    %v2850 = vpop.f32.mrb[0].mxu0
    %v2851 = vadd.f32 %v538, %v2850
    %v2852 = vpop.f32.mrb[0].mxu0
    %v2853 = vadd.f32 %v542, %v2852
    %v2854 = vpop.f32.mrb[0].mxu0
    %v2855 = vadd.f32 %v538, %v2854
    %v2856 = vpop.f32.mrb[0].mxu0
    %v2857 = vadd.f32 %v542, %v2856
    %2858 = vmatprep.mubr.bf16.mxu0 %v619
    %2859 = vmatmul.mubr.bf16.gmra.mrb[0].mxu0 %v618
    %v2860 = vpop.f32.mrb[0].mxu0
    %v2861 = vadd.f32 %v538, %v2860
    %v2862 = vpop.f32.mrb[0].mxu0
    %v2863 = vadd.f32 %v542, %v2862
    %v2864 = vpop.f32.mrb[0].mxu0
    %v2865 = vadd.f32 %v538, %v2864
    %v2866 = vpop.f32.mrb[0].mxu0
    %v2867 = vadd.f32 %v542, %v2866
    %2868 = vdwg.mxu0
    %2869 = vmatprep.subr.bf16.mxu0 %v1944
    %2870 = vmatpush1.bf16.msra.mxu0 %v1943
    %2871 = vmatprep.subr.bf16.mxu0 %v1952
    %2872 = vmatpush1.bf16.msra.mxu0 %v1951
    %2873 = vmatprep.subr.bf16.mxu0 %v1960
    %2874 = vmatpush1.bf16.msra.mxu0 %v1959
    %2875 = vmatprep.subr.bf16.mxu0 %v1968
    %2876 = vmatpush1.bf16.msra.mxu0 %v1967
    %2877 = vmatprep.subr.bf16.mxu0 %v1976
    %2878 = vmatpush1.bf16.msra.mxu0 %v1975
    %2879 = vmatprep.subr.bf16.mxu0 %v1984
    %2880 = vmatpush1.bf16.msra.mxu0 %v1983
    %2881 = vmatprep.subr.bf16.mxu0 %v1992
    %2882 = vmatpush1.bf16.msra.mxu0 %v1991
    %2883 = vmatprep.subr.bf16.mxu0 %v2000
    %2884 = vmatpush1.bf16.msra.mxu0 %v1999
    %2885 = vmatprep.subr.bf16.mxu0 %v2008
    %2886 = vmatpush1.bf16.msra.mxu0 %v2007
    %2887 = vmatprep.subr.bf16.mxu0 %v2016
    %2888 = vmatpush1.bf16.msra.mxu0 %v2015
    %2889 = vmatprep.subr.bf16.mxu0 %v2024
    %2890 = vmatpush1.bf16.msra.mxu0 %v2023
    %2891 = vmatprep.subr.bf16.mxu0 %v2032
    %2892 = vmatpush1.bf16.msra.mxu0 %v2031
    %2893 = vmatprep.subr.bf16.mxu0 %v2040
    %2894 = vmatpush1.bf16.msra.mxu0 %v2039
    %2895 = vmatprep.subr.bf16.mxu0 %v2048
    %2896 = vmatpush1.bf16.msra.mxu0 %v2047
    %2897 = vmatprep.subr.bf16.mxu0 %v2056
    %2898 = vmatpush1.bf16.msra.mxu0 %v2055
    %2899 = vmatprep.subr.bf16.mxu0 %v2064
    %2900 = vmatpush1.bf16.msra.mxu0 %v2063
    %2901 = vmatprep.mubr.bf16.mxu0 %v614
    %2902 = vmatmul.mubr.bf16.gmra.mrb[0].mxu0 %v613
    %v2903 = vpop.f32.mrb[0].mxu0
    %v2904 = vadd.f32 %v2851, %v2903
    %v2905 = vpop.f32.mrb[0].mxu0
    %v2906 = vadd.f32 %v2853, %v2905
    %v2907 = vpop.f32.mrb[0].mxu0
    %v2908 = vadd.f32 %v2855, %v2907
    %v2909 = vpop.f32.mrb[0].mxu0
    %v2910 = vadd.f32 %v2857, %v2909
    %2911 = vmatprep.mubr.bf16.mxu0 %v621
    %2912 = vmatmul.mubr.bf16.gmra.mrb[0].mxu0 %v620
    %v2913 = vpop.f32.mrb[0].mxu0
    %v2914 = vadd.f32 %v2861, %v2913
    %v2915 = vpop.f32.mrb[0].mxu0
    %v2916 = vadd.f32 %v2863, %v2915
    %v2917 = vpop.f32.mrb[0].mxu0
    %v2918 = vadd.f32 %v2865, %v2917
    %v2919 = vpop.f32.mrb[0].mxu0
    %v2920 = vadd.f32 %v2867, %v2919
    %2921 = vdwg.mxu0
    %2922 = vmatprep.subr.bf16.mxu0 %v2072
    %2923 = vmatpush1.bf16.msra.mxu0 %v2071
    %2924 = vmatprep.subr.bf16.mxu0 %v2080
    %2925 = vmatpush1.bf16.msra.mxu0 %v2079
    %2926 = vmatprep.subr.bf16.mxu0 %v2088
    %2927 = vmatpush1.bf16.msra.mxu0 %v2087
    %2928 = vmatprep.subr.bf16.mxu0 %v2096
    %2929 = vmatpush1.bf16.msra.mxu0 %v2095
    %2930 = vmatprep.subr.bf16.mxu0 %v2104
    %2931 = vmatpush1.bf16.msra.mxu0 %v2103
    %2932 = vmatprep.subr.bf16.mxu0 %v2112
    %2933 = vmatpush1.bf16.msra.mxu0 %v2111
    %2934 = vmatprep.subr.bf16.mxu0 %v2120
    %2935 = vmatpush1.bf16.msra.mxu0 %v2119
    %2936 = vmatprep.subr.bf16.mxu0 %v2128
    %2937 = vmatpush1.bf16.msra.mxu0 %v2127
    %2938 = vmatprep.subr.bf16.mxu0 %v2136
    %2939 = vmatpush1.bf16.msra.mxu0 %v2135
    %2940 = vmatprep.subr.bf16.mxu0 %v2144
    %2941 = vmatpush1.bf16.msra.mxu0 %v2143
    %2942 = vmatprep.subr.bf16.mxu0 %v2152
    %2943 = vmatpush1.bf16.msra.mxu0 %v2151
    %2944 = vmatprep.subr.bf16.mxu0 %v2160
    %2945 = vmatpush1.bf16.msra.mxu0 %v2159
    %2946 = vmatprep.subr.bf16.mxu0 %v2168
    %2947 = vmatpush1.bf16.msra.mxu0 %v2167
    %2948 = vmatprep.subr.bf16.mxu0 %v2176
    %2949 = vmatpush1.bf16.msra.mxu0 %v2175
    %2950 = vmatprep.subr.bf16.mxu0 %v2184
    %2951 = vmatpush1.bf16.msra.mxu0 %v2183
    %2952 = vmatprep.subr.bf16.mxu0 %v2192
    %2953 = vmatpush1.bf16.msra.mxu0 %v2191
    %2954 = vmatprep.mubr.bf16.mxu0 %v616
    %2955 = vmatmul.mubr.bf16.gmra.mrb[0].mxu0 %v615
    %v2956 = vpop.f32.mrb[0].mxu0
    %v2957 = vadd.f32 %v2904, %v2956
    %v2958 = vpop.f32.mrb[0].mxu0
    %v2959 = vadd.f32 %v2906, %v2958
    %v2960 = vpop.f32.mrb[0].mxu0
    %v2961 = vadd.f32 %v2908, %v2960
    %v2962 = vpop.f32.mrb[0].mxu0
    %v2963 = vadd.f32 %v2910, %v2962
    %2964 = vmatprep.mubr.bf16.mxu0 %v623
    %2965 = vmatmul.mubr.bf16.gmra.mrb[0].mxu0 %v622
    %v2966 = vpop.f32.mrb[0].mxu0
    %v2967 = vadd.f32 %v2914, %v2966
    %v2968 = vpop.f32.mrb[0].mxu0
    %v2969 = vadd.f32 %v2916, %v2968
    %v2970 = vpop.f32.mrb[0].mxu0
    %v2971 = vadd.f32 %v2918, %v2970
    %v2972 = vpop.f32.mrb[0].mxu0
    %v2973 = vadd.f32 %v2920, %v2972
    %2974 = vdwg.mxu0
    %2975 = vmatprep.subr.bf16.mxu0 %v2200
    %2976 = vmatpush1.bf16.msra.mxu0 %v2199
    %2977 = vmatprep.subr.bf16.mxu0 0
    %2978 = vmatpush1.bf16.msra.mxu0 0
    %2979 = vmatprep.subr.bf16.mxu0 0
    %2980 = vmatpush1.bf16.msra.mxu0 0
    %2981 = vmatprep.subr.bf16.mxu0 0
    %2982 = vmatpush1.bf16.msra.mxu0 0
    %2983 = vmatprep.subr.bf16.mxu0 0
    %2984 = vmatpush1.bf16.msra.mxu0 0
    %2985 = vmatprep.subr.bf16.mxu0 0
    %2986 = vmatpush1.bf16.msra.mxu0 0
    %2987 = vmatprep.subr.bf16.mxu0 0
    %2988 = vmatpush1.bf16.msra.mxu0 0
    %2989 = vmatprep.subr.bf16.mxu0 0
    %2990 = vmatpush1.bf16.msra.mxu0 0
    %2991 = vmatprep.subr.bf16.mxu0 0
    %2992 = vmatpush1.bf16.msra.mxu0 0
    %2993 = vmatprep.subr.bf16.mxu0 0
    %2994 = vmatpush1.bf16.msra.mxu0 0
    %2995 = vmatprep.subr.bf16.mxu0 0
    %2996 = vmatpush1.bf16.msra.mxu0 0
    %2997 = vmatprep.subr.bf16.mxu0 0
    %2998 = vmatpush1.bf16.msra.mxu0 0
    %2999 = vmatprep.subr.bf16.mxu0 0
    %3000 = vmatpush1.bf16.msra.mxu0 0
    %3001 = vmatprep.subr.bf16.mxu0 0
    %3002 = vmatpush1.bf16.msra.mxu0 0
    %3003 = vmatprep.subr.bf16.mxu0 0
    %3004 = vmatpush1.bf16.msra.mxu0 0
    %3005 = vmatprep.subr.bf16.mxu0 0
    %3006 = vmatpush1.bf16.msra.mxu0 0
    %3007 = vmatprep.mubr.bf16.mxu0 0
    %3008 = vmatmul.mubr.bf16.gmra.mrb[0].mxu0 %v2599
    %v3009 = vpop.f32.mrb[0].mxu0
    %v3010 = vadd.f32 %v2957, %v3009
    %v3011 = vpop.f32.mrb[0].mxu0
    %v3012 = vadd.f32 %v2959, %v3011
    %v3013 = vpop.f32.mrb[0].mxu0
    %v3014 = vadd.f32 %v2961, %v3013
    %v3015 = vpop.f32.mrb[0].mxu0
    %v3016 = vadd.f32 %v2963, %v3015
    %3017 = vmatprep.mubr.bf16.mxu0 0
    %3018 = vmatmul.mubr.bf16.gmra.mrb[0].mxu0 %v2602
    %v3019 = vpop.f32.mrb[0].mxu0
    %v3020 = vadd.f32 %v2967, %v3019
    %v3021 = vpop.f32.mrb[0].mxu0
    %v3022 = vadd.f32 %v2969, %v3021
    %v3023 = vpop.f32.mrb[0].mxu0
    %v3024 = vadd.f32 %v2971, %v3023
    %v3025 = vpop.f32.mrb[0].mxu0
    %v3026 = vadd.f32 %v2973, %v3025
    %3027 = vdwg.mxu0
    %3028 = vmatprep.subr.bf16.mxu0 %v1818
    %3029 = vmatpush1.bf16.msra.mxu0 %v1817
    %3030 = vmatprep.subr.bf16.mxu0 %v1826
    %3031 = vmatpush1.bf16.msra.mxu0 %v1825
    %3032 = vmatprep.subr.bf16.mxu0 %v1834
    %3033 = vmatpush1.bf16.msra.mxu0 %v1833
    %3034 = vmatprep.subr.bf16.mxu0 %v1842
    %3035 = vmatpush1.bf16.msra.mxu0 %v1841
    %3036 = vmatprep.subr.bf16.mxu0 %v1850
    %3037 = vmatpush1.bf16.msra.mxu0 %v1849
    %3038 = vmatprep.subr.bf16.mxu0 %v1858
    %3039 = vmatpush1.bf16.msra.mxu0 %v1857
    %3040 = vmatprep.subr.bf16.mxu0 %v1866
    %3041 = vmatpush1.bf16.msra.mxu0 %v1865
    %3042 = vmatprep.subr.bf16.mxu0 %v1874
    %3043 = vmatpush1.bf16.msra.mxu0 %v1873
    %3044 = vmatprep.subr.bf16.mxu0 %v1882
    %3045 = vmatpush1.bf16.msra.mxu0 %v1881
    %3046 = vmatprep.subr.bf16.mxu0 %v1890
    %3047 = vmatpush1.bf16.msra.mxu0 %v1889
    %3048 = vmatprep.subr.bf16.mxu0 %v1898
    %3049 = vmatpush1.bf16.msra.mxu0 %v1897
    %3050 = vmatprep.subr.bf16.mxu0 %v1906
    %3051 = vmatpush1.bf16.msra.mxu0 %v1905
    %3052 = vmatprep.subr.bf16.mxu0 %v1914
    %3053 = vmatpush1.bf16.msra.mxu0 %v1913
    %3054 = vmatprep.subr.bf16.mxu0 %v1922
    %3055 = vmatpush1.bf16.msra.mxu0 %v1921
    %3056 = vmatprep.subr.bf16.mxu0 %v1930
    %3057 = vmatpush1.bf16.msra.mxu0 %v1929
    %3058 = vmatprep.subr.bf16.mxu0 %v1938
    %3059 = vmatpush1.bf16.msra.mxu0 %v1937
    %3060 = vmatprep.mubr.bf16.mxu0 %v612
    %3061 = vmatmul.mubr.bf16.gmra.mrb[0].mxu0 %v611
    %v3062 = vpop.f32.mrb[0].mxu0
    %v3063 = vadd.f32 %v546, %v3062
    %v3064 = vpop.f32.mrb[0].mxu0
    %v3065 = vadd.f32 %v550, %v3064
    %v3066 = vpop.f32.mrb[0].mxu0
    %v3067 = vadd.f32 %v546, %v3066
    %v3068 = vpop.f32.mrb[0].mxu0
    %v3069 = vadd.f32 %v550, %v3068
    %3070 = vmatprep.mubr.bf16.mxu0 %v619
    %3071 = vmatmul.mubr.bf16.gmra.mrb[0].mxu0 %v618
    %v3072 = vpop.f32.mrb[0].mxu0
    %v3073 = vadd.f32 %v546, %v3072
    %v3074 = vpop.f32.mrb[0].mxu0
    %v3075 = vadd.f32 %v550, %v3074
    %v3076 = vpop.f32.mrb[0].mxu0
    %v3077 = vadd.f32 %v546, %v3076
    %v3078 = vpop.f32.mrb[0].mxu0
    %v3079 = vadd.f32 %v550, %v3078
    %3080 = vdwg.mxu0
    %3081 = vmatprep.subr.bf16.mxu0 %v1946
    %3082 = vmatpush1.bf16.msra.mxu0 %v1945
    %3083 = vmatprep.subr.bf16.mxu0 %v1954
    %3084 = vmatpush1.bf16.msra.mxu0 %v1953
    %3085 = vmatprep.subr.bf16.mxu0 %v1962
    %3086 = vmatpush1.bf16.msra.mxu0 %v1961
    %3087 = vmatprep.subr.bf16.mxu0 %v1970
    %3088 = vmatpush1.bf16.msra.mxu0 %v1969
    %3089 = vmatprep.subr.bf16.mxu0 %v1978
    %3090 = vmatpush1.bf16.msra.mxu0 %v1977
    %3091 = vmatprep.subr.bf16.mxu0 %v1986
    %3092 = vmatpush1.bf16.msra.mxu0 %v1985
    %3093 = vmatprep.subr.bf16.mxu0 %v1994
    %3094 = vmatpush1.bf16.msra.mxu0 %v1993
    %3095 = vmatprep.subr.bf16.mxu0 %v2002
    %3096 = vmatpush1.bf16.msra.mxu0 %v2001
    %3097 = vmatprep.subr.bf16.mxu0 %v2010
    %3098 = vmatpush1.bf16.msra.mxu0 %v2009
    %3099 = vmatprep.subr.bf16.mxu0 %v2018
    %3100 = vmatpush1.bf16.msra.mxu0 %v2017
    %3101 = vmatprep.subr.bf16.mxu0 %v2026
    %3102 = vmatpush1.bf16.msra.mxu0 %v2025
    %3103 = vmatprep.subr.bf16.mxu0 %v2034
    %3104 = vmatpush1.bf16.msra.mxu0 %v2033
    %3105 = vmatprep.subr.bf16.mxu0 %v2042
    %3106 = vmatpush1.bf16.msra.mxu0 %v2041
    %3107 = vmatprep.subr.bf16.mxu0 %v2050
    %3108 = vmatpush1.bf16.msra.mxu0 %v2049
    %3109 = vmatprep.subr.bf16.mxu0 %v2058
    %3110 = vmatpush1.bf16.msra.mxu0 %v2057
    %3111 = vmatprep.subr.bf16.mxu0 %v2066
    %3112 = vmatpush1.bf16.msra.mxu0 %v2065
    %3113 = vmatprep.mubr.bf16.mxu0 %v614
    %3114 = vmatmul.mubr.bf16.gmra.mrb[0].mxu0 %v613
    %v3115 = vpop.f32.mrb[0].mxu0
    %v3116 = vadd.f32 %v3063, %v3115
    %v3117 = vpop.f32.mrb[0].mxu0
    %v3118 = vadd.f32 %v3065, %v3117
    %v3119 = vpop.f32.mrb[0].mxu0
    %v3120 = vadd.f32 %v3067, %v3119
    %v3121 = vpop.f32.mrb[0].mxu0
    %v3122 = vadd.f32 %v3069, %v3121
    %3123 = vmatprep.mubr.bf16.mxu0 %v621
    %3124 = vmatmul.mubr.bf16.gmra.mrb[0].mxu0 %v620
    %v3125 = vpop.f32.mrb[0].mxu0
    %v3126 = vadd.f32 %v3073, %v3125
    %v3127 = vpop.f32.mrb[0].mxu0
    %v3128 = vadd.f32 %v3075, %v3127
    %v3129 = vpop.f32.mrb[0].mxu0
    %v3130 = vadd.f32 %v3077, %v3129
    %v3131 = vpop.f32.mrb[0].mxu0
    %v3132 = vadd.f32 %v3079, %v3131
    %3133 = vdwg.mxu0
    %3134 = vmatprep.subr.bf16.mxu0 %v2074
    %3135 = vmatpush1.bf16.msra.mxu0 %v2073
    %3136 = vmatprep.subr.bf16.mxu0 %v2082
    %3137 = vmatpush1.bf16.msra.mxu0 %v2081
    %3138 = vmatprep.subr.bf16.mxu0 %v2090
    %3139 = vmatpush1.bf16.msra.mxu0 %v2089
    %3140 = vmatprep.subr.bf16.mxu0 %v2098
    %3141 = vmatpush1.bf16.msra.mxu0 %v2097
    %3142 = vmatprep.subr.bf16.mxu0 %v2106
    %3143 = vmatpush1.bf16.msra.mxu0 %v2105
    %3144 = vmatprep.subr.bf16.mxu0 %v2114
    %3145 = vmatpush1.bf16.msra.mxu0 %v2113
    %3146 = vmatprep.subr.bf16.mxu0 %v2122
    %3147 = vmatpush1.bf16.msra.mxu0 %v2121
    %3148 = vmatprep.subr.bf16.mxu0 %v2130
    %3149 = vmatpush1.bf16.msra.mxu0 %v2129
    %3150 = vmatprep.subr.bf16.mxu0 %v2138
    %3151 = vmatpush1.bf16.msra.mxu0 %v2137
    %3152 = vmatprep.subr.bf16.mxu0 %v2146
    %3153 = vmatpush1.bf16.msra.mxu0 %v2145
    %3154 = vmatprep.subr.bf16.mxu0 %v2154
    %3155 = vmatpush1.bf16.msra.mxu0 %v2153
    %3156 = vmatprep.subr.bf16.mxu0 %v2162
    %3157 = vmatpush1.bf16.msra.mxu0 %v2161
    %3158 = vmatprep.subr.bf16.mxu0 %v2170
    %3159 = vmatpush1.bf16.msra.mxu0 %v2169
    %3160 = vmatprep.subr.bf16.mxu0 %v2178
    %3161 = vmatpush1.bf16.msra.mxu0 %v2177
    %3162 = vmatprep.subr.bf16.mxu0 %v2186
    %3163 = vmatpush1.bf16.msra.mxu0 %v2185
    %3164 = vmatprep.subr.bf16.mxu0 %v2194
    %3165 = vmatpush1.bf16.msra.mxu0 %v2193
    %3166 = vmatprep.mubr.bf16.mxu0 %v616
    %3167 = vmatmul.mubr.bf16.gmra.mrb[0].mxu0 %v615
    %v3168 = vpop.f32.mrb[0].mxu0
    %v3169 = vadd.f32 %v3116, %v3168
    %v3170 = vpop.f32.mrb[0].mxu0
    %v3171 = vadd.f32 %v3118, %v3170
    %v3172 = vpop.f32.mrb[0].mxu0
    %v3173 = vadd.f32 %v3120, %v3172
    %v3174 = vpop.f32.mrb[0].mxu0
    %v3175 = vadd.f32 %v3122, %v3174
    %3176 = vmatprep.mubr.bf16.mxu0 %v623
    %3177 = vmatmul.mubr.bf16.gmra.mrb[0].mxu0 %v622
    %v3178 = vpop.f32.mrb[0].mxu0
    %v3179 = vadd.f32 %v3126, %v3178
    %v3180 = vpop.f32.mrb[0].mxu0
    %v3181 = vadd.f32 %v3128, %v3180
    %v3182 = vpop.f32.mrb[0].mxu0
    %v3183 = vadd.f32 %v3130, %v3182
    %v3184 = vpop.f32.mrb[0].mxu0
    %v3185 = vadd.f32 %v3132, %v3184
    %3186 = vdwg.mxu0
    %3187 = vmatprep.subr.bf16.mxu0 %v2202
    %3188 = vmatpush1.bf16.msra.mxu0 %v2201
    %3189 = vmatprep.subr.bf16.mxu0 0
    %3190 = vmatpush1.bf16.msra.mxu0 0
    %3191 = vmatprep.subr.bf16.mxu0 0
    %3192 = vmatpush1.bf16.msra.mxu0 0
    %3193 = vmatprep.subr.bf16.mxu0 0
    %3194 = vmatpush1.bf16.msra.mxu0 0
    %3195 = vmatprep.subr.bf16.mxu0 0
    %3196 = vmatpush1.bf16.msra.mxu0 0
    %3197 = vmatprep.subr.bf16.mxu0 0
    %3198 = vmatpush1.bf16.msra.mxu0 0
    %3199 = vmatprep.subr.bf16.mxu0 0
    %3200 = vmatpush1.bf16.msra.mxu0 0
    %3201 = vmatprep.subr.bf16.mxu0 0
    %3202 = vmatpush1.bf16.msra.mxu0 0
    %3203 = vmatprep.subr.bf16.mxu0 0
    %3204 = vmatpush1.bf16.msra.mxu0 0
    %3205 = vmatprep.subr.bf16.mxu0 0
    %3206 = vmatpush1.bf16.msra.mxu0 0
    %3207 = vmatprep.subr.bf16.mxu0 0
    %3208 = vmatpush1.bf16.msra.mxu0 0
    %3209 = vmatprep.subr.bf16.mxu0 0
    %3210 = vmatpush1.bf16.msra.mxu0 0
    %3211 = vmatprep.subr.bf16.mxu0 0
    %3212 = vmatpush1.bf16.msra.mxu0 0
    %3213 = vmatprep.subr.bf16.mxu0 0
    %3214 = vmatpush1.bf16.msra.mxu0 0
    %3215 = vmatprep.subr.bf16.mxu0 0
    %3216 = vmatpush1.bf16.msra.mxu0 0
    %3217 = vmatprep.subr.bf16.mxu0 0
    %3218 = vmatpush1.bf16.msra.mxu0 0
    %3219 = vmatprep.mubr.bf16.mxu0 0
    %3220 = vmatmul.mubr.bf16.gmra.mrb[0].mxu0 %v2599
    %v3221 = vpop.f32.mrb[0].mxu0
    %v3222 = vadd.f32 %v3169, %v3221
    %v3223 = vpop.f32.mrb[0].mxu0
    %v3224 = vadd.f32 %v3171, %v3223
    %v3225 = vpop.f32.mrb[0].mxu0
    %v3226 = vadd.f32 %v3173, %v3225
    %v3227 = vpop.f32.mrb[0].mxu0
    %v3228 = vadd.f32 %v3175, %v3227
    %3229 = vmatprep.mubr.bf16.mxu0 0
    %3230 = vmatmul.mubr.bf16.gmra.mrb[0].mxu0 %v2602
    %v3231 = vpop.f32.mrb[0].mxu0
    %v3232 = vadd.f32 %v3179, %v3231
    %v3233 = vpop.f32.mrb[0].mxu0
    %v3234 = vadd.f32 %v3181, %v3233
    %v3235 = vpop.f32.mrb[0].mxu0
    %v3236 = vadd.f32 %v3183, %v3235
    %v3237 = vpop.f32.mrb[0].mxu0
    %v3238 = vadd.f32 %v3185, %v3237
    %3239 = vdwg.mxu0
    %3240 = vmatprep.subr.bf16.mxu0 %v1820
    %3241 = vmatpush1.bf16.msra.mxu0 %v1819
    %3242 = vmatprep.subr.bf16.mxu0 %v1828
    %3243 = vmatpush1.bf16.msra.mxu0 %v1827
    %3244 = vmatprep.subr.bf16.mxu0 %v1836
    %3245 = vmatpush1.bf16.msra.mxu0 %v1835
    %3246 = vmatprep.subr.bf16.mxu0 %v1844
    %3247 = vmatpush1.bf16.msra.mxu0 %v1843
    %3248 = vmatprep.subr.bf16.mxu0 %v1852
    %3249 = vmatpush1.bf16.msra.mxu0 %v1851
    %3250 = vmatprep.subr.bf16.mxu0 %v1860
    %3251 = vmatpush1.bf16.msra.mxu0 %v1859
    %3252 = vmatprep.subr.bf16.mxu0 %v1868
    %3253 = vmatpush1.bf16.msra.mxu0 %v1867
    %3254 = vmatprep.subr.bf16.mxu0 %v1876
    %3255 = vmatpush1.bf16.msra.mxu0 %v1875
    %3256 = vmatprep.subr.bf16.mxu0 %v1884
    %3257 = vmatpush1.bf16.msra.mxu0 %v1883
    %3258 = vmatprep.subr.bf16.mxu0 %v1892
    %3259 = vmatpush1.bf16.msra.mxu0 %v1891
    %3260 = vmatprep.subr.bf16.mxu0 %v1900
    %3261 = vmatpush1.bf16.msra.mxu0 %v1899
    %3262 = vmatprep.subr.bf16.mxu0 %v1908
    %3263 = vmatpush1.bf16.msra.mxu0 %v1907
    %3264 = vmatprep.subr.bf16.mxu0 %v1916
    %3265 = vmatpush1.bf16.msra.mxu0 %v1915
    %3266 = vmatprep.subr.bf16.mxu0 %v1924
    %3267 = vmatpush1.bf16.msra.mxu0 %v1923
    %3268 = vmatprep.subr.bf16.mxu0 %v1932
    %3269 = vmatpush1.bf16.msra.mxu0 %v1931
    %3270 = vmatprep.subr.bf16.mxu0 %v1940
    %3271 = vmatpush1.bf16.msra.mxu0 %v1939
    %3272 = vmatprep.mubr.bf16.mxu0 %v612
    %3273 = vmatmul.mubr.bf16.gmra.mrb[0].mxu0 %v611
    %v3274 = vpop.f32.mrb[0].mxu0
    %v3275 = vadd.f32 %v554, %v3274
    %v3276 = vpop.f32.mrb[0].mxu0
    %v3277 = vadd.f32 %v558, %v3276
    %v3278 = vpop.f32.mrb[0].mxu0
    %v3279 = vadd.f32 %v554, %v3278
    %v3280 = vpop.f32.mrb[0].mxu0
    %v3281 = vadd.f32 %v558, %v3280
    %3282 = vmatprep.mubr.bf16.mxu0 %v619
    %3283 = vmatmul.mubr.bf16.gmra.mrb[0].mxu0 %v618
    %v3284 = vpop.f32.mrb[0].mxu0
    %v3285 = vadd.f32 %v554, %v3284
    %v3286 = vpop.f32.mrb[0].mxu0
    %v3287 = vadd.f32 %v558, %v3286
    %v3288 = vpop.f32.mrb[0].mxu0
    %v3289 = vadd.f32 %v554, %v3288
    %v3290 = vpop.f32.mrb[0].mxu0
    %v3291 = vadd.f32 %v558, %v3290
    %3292 = vdwg.mxu0
    %3293 = vmatprep.subr.bf16.mxu0 %v1948
    %3294 = vmatpush1.bf16.msra.mxu0 %v1947
    %3295 = vmatprep.subr.bf16.mxu0 %v1956
    %3296 = vmatpush1.bf16.msra.mxu0 %v1955
    %3297 = vmatprep.subr.bf16.mxu0 %v1964
    %3298 = vmatpush1.bf16.msra.mxu0 %v1963
    %3299 = vmatprep.subr.bf16.mxu0 %v1972
    %3300 = vmatpush1.bf16.msra.mxu0 %v1971
    %3301 = vmatprep.subr.bf16.mxu0 %v1980
    %3302 = vmatpush1.bf16.msra.mxu0 %v1979
    %3303 = vmatprep.subr.bf16.mxu0 %v1988
    %3304 = vmatpush1.bf16.msra.mxu0 %v1987
    %3305 = vmatprep.subr.bf16.mxu0 %v1996
    %3306 = vmatpush1.bf16.msra.mxu0 %v1995
    %3307 = vmatprep.subr.bf16.mxu0 %v2004
    %3308 = vmatpush1.bf16.msra.mxu0 %v2003
    %3309 = vmatprep.subr.bf16.mxu0 %v2012
    %3310 = vmatpush1.bf16.msra.mxu0 %v2011
    %3311 = vmatprep.subr.bf16.mxu0 %v2020
    %3312 = vmatpush1.bf16.msra.mxu0 %v2019
    %3313 = vmatprep.subr.bf16.mxu0 %v2028
    %3314 = vmatpush1.bf16.msra.mxu0 %v2027
    %3315 = vmatprep.subr.bf16.mxu0 %v2036
    %3316 = vmatpush1.bf16.msra.mxu0 %v2035
    %3317 = vmatprep.subr.bf16.mxu0 %v2044
    %3318 = vmatpush1.bf16.msra.mxu0 %v2043
    %3319 = vmatprep.subr.bf16.mxu0 %v2052
    %3320 = vmatpush1.bf16.msra.mxu0 %v2051
    %3321 = vmatprep.subr.bf16.mxu0 %v2060
    %3322 = vmatpush1.bf16.msra.mxu0 %v2059
    %3323 = vmatprep.subr.bf16.mxu0 %v2068
    %3324 = vmatpush1.bf16.msra.mxu0 %v2067
    %3325 = vmatprep.mubr.bf16.mxu0 %v614
    %3326 = vmatmul.mubr.bf16.gmra.mrb[0].mxu0 %v613
    %v3327 = vpop.f32.mrb[0].mxu0
    %v3328 = vadd.f32 %v3275, %v3327
    %v3329 = vpop.f32.mrb[0].mxu0
    %v3330 = vadd.f32 %v3277, %v3329
    %v3331 = vpop.f32.mrb[0].mxu0
    %v3332 = vadd.f32 %v3279, %v3331
    %v3333 = vpop.f32.mrb[0].mxu0
    %v3334 = vadd.f32 %v3281, %v3333
    %3335 = vmatprep.mubr.bf16.mxu0 %v621
    %3336 = vmatmul.mubr.bf16.gmra.mrb[0].mxu0 %v620
    %v3337 = vpop.f32.mrb[0].mxu0
    %v3338 = vadd.f32 %v3285, %v3337
    %v3339 = vpop.f32.mrb[0].mxu0
    %v3340 = vadd.f32 %v3287, %v3339
    %v3341 = vpop.f32.mrb[0].mxu0
    %v3342 = vadd.f32 %v3289, %v3341
    %v3343 = vpop.f32.mrb[0].mxu0
    %v3344 = vadd.f32 %v3291, %v3343
    %3345 = vdwg.mxu0
    %3346 = vmatprep.subr.bf16.mxu0 %v2076
    %3347 = vmatpush1.bf16.msra.mxu0 %v2075
    %3348 = vmatprep.subr.bf16.mxu0 %v2084
    %3349 = vmatpush1.bf16.msra.mxu0 %v2083
    %3350 = vmatprep.subr.bf16.mxu0 %v2092
    %3351 = vmatpush1.bf16.msra.mxu0 %v2091
    %3352 = vmatprep.subr.bf16.mxu0 %v2100
    %3353 = vmatpush1.bf16.msra.mxu0 %v2099
    %3354 = vmatprep.subr.bf16.mxu0 %v2108
    %3355 = vmatpush1.bf16.msra.mxu0 %v2107
    %3356 = vmatprep.subr.bf16.mxu0 %v2116
    %3357 = vmatpush1.bf16.msra.mxu0 %v2115
    %3358 = vmatprep.subr.bf16.mxu0 %v2124
    %3359 = vmatpush1.bf16.msra.mxu0 %v2123
    %3360 = vmatprep.subr.bf16.mxu0 %v2132
    %3361 = vmatpush1.bf16.msra.mxu0 %v2131
    %3362 = vmatprep.subr.bf16.mxu0 %v2140
    %3363 = vmatpush1.bf16.msra.mxu0 %v2139
    %3364 = vmatprep.subr.bf16.mxu0 %v2148
    %3365 = vmatpush1.bf16.msra.mxu0 %v2147
    %3366 = vmatprep.subr.bf16.mxu0 %v2156
    %3367 = vmatpush1.bf16.msra.mxu0 %v2155
    %3368 = vmatprep.subr.bf16.mxu0 %v2164
    %3369 = vmatpush1.bf16.msra.mxu0 %v2163
    %3370 = vmatprep.subr.bf16.mxu0 %v2172
    %3371 = vmatpush1.bf16.msra.mxu0 %v2171
    %3372 = vmatprep.subr.bf16.mxu0 %v2180
    %3373 = vmatpush1.bf16.msra.mxu0 %v2179
    %3374 = vmatprep.subr.bf16.mxu0 %v2188
    %3375 = vmatpush1.bf16.msra.mxu0 %v2187
    %3376 = vmatprep.subr.bf16.mxu0 %v2196
    %3377 = vmatpush1.bf16.msra.mxu0 %v2195
    %3378 = vmatprep.mubr.bf16.mxu0 %v616
    %3379 = vmatmul.mubr.bf16.gmra.mrb[0].mxu0 %v615
    %v3380 = vpop.f32.mrb[0].mxu0
    %v3381 = vadd.f32 %v3328, %v3380
    %v3382 = vpop.f32.mrb[0].mxu0
    %v3383 = vadd.f32 %v3330, %v3382
    %v3384 = vpop.f32.mrb[0].mxu0
    %v3385 = vadd.f32 %v3332, %v3384
    %v3386 = vpop.f32.mrb[0].mxu0
    %v3387 = vadd.f32 %v3334, %v3386
    %3388 = vmatprep.mubr.bf16.mxu0 %v623
    %3389 = vmatmul.mubr.bf16.gmra.mrb[0].mxu0 %v622
    %v3390 = vpop.f32.mrb[0].mxu0
    %v3391 = vadd.f32 %v3338, %v3390
    %v3392 = vpop.f32.mrb[0].mxu0
    %v3393 = vadd.f32 %v3340, %v3392
    %v3394 = vpop.f32.mrb[0].mxu0
    %v3395 = vadd.f32 %v3342, %v3394
    %v3396 = vpop.f32.mrb[0].mxu0
    %v3397 = vadd.f32 %v3344, %v3396
    %3398 = vdwg.mxu0
    %3399 = vmatprep.subr.bf16.mxu0 %v2204
    %3400 = vmatpush1.bf16.msra.mxu0 %v2203
    %3401 = vmatprep.subr.bf16.mxu0 0
    %3402 = vmatpush1.bf16.msra.mxu0 0
    %3403 = vmatprep.subr.bf16.mxu0 0
    %3404 = vmatpush1.bf16.msra.mxu0 0
    %3405 = vmatprep.subr.bf16.mxu0 0
    %3406 = vmatpush1.bf16.msra.mxu0 0
    %3407 = vmatprep.subr.bf16.mxu0 0
    %3408 = vmatpush1.bf16.msra.mxu0 0
    %3409 = vmatprep.subr.bf16.mxu0 0
    %3410 = vmatpush1.bf16.msra.mxu0 0
    %3411 = vmatprep.subr.bf16.mxu0 0
    %3412 = vmatpush1.bf16.msra.mxu0 0
    %3413 = vmatprep.subr.bf16.mxu0 0
    %3414 = vmatpush1.bf16.msra.mxu0 0
    %3415 = vmatprep.subr.bf16.mxu0 0
    %3416 = vmatpush1.bf16.msra.mxu0 0
    %3417 = vmatprep.subr.bf16.mxu0 0
    %3418 = vmatpush1.bf16.msra.mxu0 0
    %3419 = vmatprep.subr.bf16.mxu0 0
    %3420 = vmatpush1.bf16.msra.mxu0 0
    %3421 = vmatprep.subr.bf16.mxu0 0
    %3422 = vmatpush1.bf16.msra.mxu0 0
    %3423 = vmatprep.subr.bf16.mxu0 0
    %3424 = vmatpush1.bf16.msra.mxu0 0
    %3425 = vmatprep.subr.bf16.mxu0 0
    %3426 = vmatpush1.bf16.msra.mxu0 0
    %3427 = vmatprep.subr.bf16.mxu0 0
    %3428 = vmatpush1.bf16.msra.mxu0 0
    %3429 = vmatprep.subr.bf16.mxu0 0
    %3430 = vmatpush1.bf16.msra.mxu0 0
    %3431 = vmatprep.mubr.bf16.mxu0 0
    %3432 = vmatmul.mubr.bf16.gmra.mrb[0].mxu0 %v2599
    %v3433 = vpop.f32.mrb[0].mxu0
    %v3434 = vadd.f32 %v3381, %v3433
    %v3435 = vpop.f32.mrb[0].mxu0
    %v3436 = vadd.f32 %v3383, %v3435
    %v3437 = vpop.f32.mrb[0].mxu0
    %v3438 = vadd.f32 %v3385, %v3437
    %v3439 = vpop.f32.mrb[0].mxu0
    %v3440 = vadd.f32 %v3387, %v3439
    %3441 = vmatprep.mubr.bf16.mxu0 0
    %3442 = vmatmul.mubr.bf16.gmra.mrb[0].mxu0 %v2602
    %v3443 = vpop.f32.mrb[0].mxu0
    %v3444 = vadd.f32 %v3391, %v3443
    %v3445 = vpop.f32.mrb[0].mxu0
    %v3446 = vadd.f32 %v3393, %v3445
    %v3447 = vpop.f32.mrb[0].mxu0
    %v3448 = vadd.f32 %v3395, %v3447
    %v3449 = vpop.f32.mrb[0].mxu0
    %v3450 = vadd.f32 %v3397, %v3449
    %3451 = vdwg.mxu0
    %v3452 = vmax.f32 %v2798, 0.0
    %v3453 = vmax.f32 %v2800, 0.0
    %v3454 = vmax.f32 %v3010, 0.0
    %v3455 = vmax.f32 %v3012, 0.0
    %v3456 = vmax.f32 %v3222, 0.0
    %v3457 = vmax.f32 %v3224, 0.0
    %v3458 = vmax.f32 %v3434, 0.0
    %v3459 = vmax.f32 %v3436, 0.0
    %v3460 = vmax.f32 %v2802, 0.0
    %v3461 = vmax.f32 %v2804, 0.0
    %v3462 = vmax.f32 %v3014, 0.0
    %v3463 = vmax.f32 %v3016, 0.0
    %v3464 = vmax.f32 %v3226, 0.0
    %v3465 = vmax.f32 %v3228, 0.0
    %v3466 = vmax.f32 %v3438, 0.0
    %v3467 = vmax.f32 %v3440, 0.0
    %v3468 = vmax.f32 %v2808, 0.0
    %v3469 = vmax.f32 %v2810, 0.0
    %v3470 = vmax.f32 %v3020, 0.0
    %v3471 = vmax.f32 %v3022, 0.0
    %v3472 = vmax.f32 %v3232, 0.0
    %v3473 = vmax.f32 %v3234, 0.0
    %v3474 = vmax.f32 %v3444, 0.0
    %v3475 = vmax.f32 %v3446, 0.0
    %v3476 = vmax.f32 %v2812, 0.0
    %v3477 = vmax.f32 %v2814, 0.0
    %v3478 = vmax.f32 %v3024, 0.0
    %v3479 = vmax.f32 %v3026, 0.0
    %v3480 = vmax.f32 %v3236, 0.0
    %v3481 = vmax.f32 %v3238, 0.0
    %v3482 = vmax.f32 %v3448, 0.0
    %v3483 = vmax.f32 %v3450, 0.0
    %v3484 = vpack.c.bf16 %v3460, %v3452
    %v3485 = vpack.c.bf16 %v3461, %v3453
    %v3486 = vpack.c.bf16 %v3462, %v3454
    %v3487 = vpack.c.bf16 %v3463, %v3455
    %v3488 = vpack.c.bf16 %v3464, %v3456
    %v3489 = vpack.c.bf16 %v3465, %v3457
    %v3490 = vpack.c.bf16 %v3466, %v3458
    %v3491 = vpack.c.bf16 %v3467, %v3459
    %v3492 = vpack.c.bf16 %v3476, %v3468
    %v3493 = vpack.c.bf16 %v3477, %v3469
    %v3494 = vpack.c.bf16 %v3478, %v3470
    %v3495 = vpack.c.bf16 %v3479, %v3471
    %v3496 = vpack.c.bf16 %v3480, %v3472
    %v3497 = vpack.c.bf16 %v3481, %v3473
    %v3498 = vpack.c.bf16 %v3482, %v3474
    %v3499 = vpack.c.bf16 %v3483, %v3475
    %v3500 = vld [vmem:[#allocation8] sm:$0xff]
    %v3501 = vld [vmem:[#allocation8 + $0x8] sm:$0xff]
    %v3502 = vld [vmem:[#allocation8 + $0x10] sm:$0xff]
    %v3503 = vld [vmem:[#allocation8 + $0x18] sm:$0xff]
    %v3504 = vld [vmem:[#allocation8 + $0x20] sm:$0xff]
    %v3505 = vld [vmem:[#allocation8 + $0x28] sm:$0xff]
    %v3506 = vld [vmem:[#allocation8 + $0x30] sm:$0xff]
    %v3507 = vld [vmem:[#allocation8 + $0x38] sm:$0xff]
    %v3508 = vld [vmem:[#allocation8 + $0x40] sm:$0xff]
    %v3509 = vld [vmem:[#allocation8 + $0x48] sm:$0xff]
    %v3510 = vld [vmem:[#allocation8 + $0x50] sm:$0xff]
    %v3511 = vld [vmem:[#allocation8 + $0x58] sm:$0xff]
    %v3512 = vld [vmem:[#allocation8 + $0x60] sm:$0xff]
    %v3513 = vld [vmem:[#allocation8 + $0x68] sm:$0xff]
    %v3514 = vld [vmem:[#allocation8 + $0x70] sm:$0xff]
    %v3515 = vld [vmem:[#allocation8 + $0x78] sm:$0xff]
    %v3516 = vld [vmem:[#allocation8 + $0x80] sm:$0xff]
    %v3517 = vld [vmem:[#allocation8 + $0x88] sm:$0xff]
    %v3518 = vld [vmem:[#allocation8 + $0x90] sm:$0xff]
    %v3519 = vld [vmem:[#allocation8 + $0x98] sm:$0xff]
    %v3520 = vld [vmem:[#allocation8 + $0xa0] sm:$0xff]
    %v3521 = vld [vmem:[#allocation8 + $0xa8] sm:$0xff]
    %v3522 = vld [vmem:[#allocation8 + $0xb0] sm:$0xff]
    %v3523 = vld [vmem:[#allocation8 + $0xb8] sm:$0xff]
    %v3524 = vld [vmem:[#allocation8 + $0xc0] sm:$0xff]
    %v3525 = vld [vmem:[#allocation8 + $0xc8] sm:$0xff]
    %v3526 = vld [vmem:[#allocation8 + $0xd0] sm:$0xff]
    %v3527 = vld [vmem:[#allocation8 + $0xd8] sm:$0xff]
    %v3528 = vld [vmem:[#allocation8 + $0xe0] sm:$0xff]
    %v3529 = vld [vmem:[#allocation8 + $0xe8] sm:$0xff]
    %v3530 = vld [vmem:[#allocation8 + $0xf0] sm:$0xff]
    %v3531 = vld [vmem:[#allocation8 + $0xf8] sm:$0xff]
    %v3532 = vld [vmem:[#allocation8 + $0x100] sm:$0xff]
    %v3533 = vld [vmem:[#allocation8 + $0x108] sm:$0xff]
    %v3534 = vld [vmem:[#allocation8 + $0x110] sm:$0xff]
    %v3535 = vld [vmem:[#allocation8 + $0x118] sm:$0xff]
    %v3536 = vld [vmem:[#allocation8 + $0x120] sm:$0xff]
    %v3537 = vld [vmem:[#allocation8 + $0x128] sm:$0xff]
    %v3538 = vld [vmem:[#allocation8 + $0x130] sm:$0xff]
    %v3539 = vld [vmem:[#allocation8 + $0x138] sm:$0xff]
    %v3540 = vld [vmem:[#allocation8 + $0x140] sm:$0xff]
    %v3541 = vld [vmem:[#allocation8 + $0x148] sm:$0xff]
    %v3542 = vld [vmem:[#allocation8 + $0x150] sm:$0xff]
    %v3543 = vld [vmem:[#allocation8 + $0x158] sm:$0xff]
    %v3544 = vld [vmem:[#allocation8 + $0x160] sm:$0xff]
    %v3545 = vld [vmem:[#allocation8 + $0x168] sm:$0xff]
    %v3546 = vld [vmem:[#allocation8 + $0x170] sm:$0xff]
    %v3547 = vld [vmem:[#allocation8 + $0x178] sm:$0xff]
    %v3548 = vld [vmem:[#allocation8 + $0x180] sm:$0xff]
    %v3549 = vld [vmem:[#allocation8 + $0x188] sm:$0xff]
    %v3550 = vld [vmem:[#allocation8 + $0x190] sm:$0xff]
    %v3551 = vld [vmem:[#allocation8 + $0x198] sm:$0xff]
    %v3552 = vld [vmem:[#allocation8 + $0x1a0] sm:$0xff]
    %v3553 = vld [vmem:[#allocation8 + $0x1a8] sm:$0xff]
    %v3554 = vld [vmem:[#allocation8 + $0x1b0] sm:$0xff]
    %v3555 = vld [vmem:[#allocation8 + $0x1b8] sm:$0xff]
    %v3556 = vld [vmem:[#allocation8 + $0x1c0] sm:$0xff]
    %v3557 = vld [vmem:[#allocation8 + $0x1c8] sm:$0xff]
    %v3558 = vld [vmem:[#allocation8 + $0x1d0] sm:$0xff]
    %v3559 = vld [vmem:[#allocation8 + $0x1d8] sm:$0xff]
    %v3560 = vld [vmem:[#allocation8 + $0x1e0] sm:$0xff]
    %v3561 = vld [vmem:[#allocation8 + $0x1e8] sm:$0xff]
    %v3562 = vld [vmem:[#allocation8 + $0x1f0] sm:$0xff]
    %v3563 = vld [vmem:[#allocation8 + $0x1f8] sm:$0xff]
    %v3564 = vld [vmem:[#allocation8 + $0x200] sm:$0xff]
    %v3565 = vld [vmem:[#allocation8 + $0x208] sm:$0xff]
    %v3566 = vld [vmem:[#allocation8 + $0x210] sm:$0xff]
    %v3567 = vld [vmem:[#allocation8 + $0x218] sm:$0xff]
    %v3568 = vld [vmem:[#allocation8 + $0x220] sm:$0xff]
    %v3569 = vld [vmem:[#allocation8 + $0x228] sm:$0xff]
    %v3570 = vld [vmem:[#allocation8 + $0x230] sm:$0xff]
    %v3571 = vld [vmem:[#allocation8 + $0x238] sm:$0xff]
    %v3572 = vld [vmem:[#allocation8 + $0x240] sm:$0xff]
    %v3573 = vld [vmem:[#allocation8 + $0x248] sm:$0xff]
    %v3574 = vld [vmem:[#allocation8 + $0x250] sm:$0xff]
    %v3575 = vld [vmem:[#allocation8 + $0x258] sm:$0xff]
    %v3576 = vld [vmem:[#allocation8 + $0x260] sm:$0xff]
    %v3577 = vld [vmem:[#allocation8 + $0x268] sm:$0xff]
    %v3578 = vld [vmem:[#allocation8 + $0x270] sm:$0xff]
    %v3579 = vld [vmem:[#allocation8 + $0x278] sm:$0xff]
    %v3580 = vld [vmem:[#allocation8 + $0x280] sm:$0xff]
    %v3581 = vld [vmem:[#allocation8 + $0x288] sm:$0xff]
    %v3582 = vld [vmem:[#allocation8 + $0x290] sm:$0xff]
    %v3583 = vld [vmem:[#allocation8 + $0x298] sm:$0xff]
    %v3584 = vld [vmem:[#allocation8 + $0x2a0] sm:$0xff]
    %v3585 = vld [vmem:[#allocation8 + $0x2a8] sm:$0xff]
    %v3586 = vld [vmem:[#allocation8 + $0x2b0] sm:$0xff]
    %v3587 = vld [vmem:[#allocation8 + $0x2b8] sm:$0xff]
    %v3588 = vld [vmem:[#allocation8 + $0x2c0] sm:$0xff]
    %v3589 = vld [vmem:[#allocation8 + $0x2c8] sm:$0xff]
    %v3590 = vld [vmem:[#allocation8 + $0x2d0] sm:$0xff]
    %v3591 = vld [vmem:[#allocation8 + $0x2d8] sm:$0xff]
    %v3592 = vld [vmem:[#allocation8 + $0x2e0] sm:$0xff]
    %v3593 = vld [vmem:[#allocation8 + $0x2e8] sm:$0xff]
    %v3594 = vld [vmem:[#allocation8 + $0x2f0] sm:$0xff]
    %v3595 = vld [vmem:[#allocation8 + $0x2f8] sm:$0xff]
    %v3596 = vld [vmem:[#allocation8 + $0x300] sm:$0xff]
    %v3597 = vld [vmem:[#allocation8 + $0x308] sm:$0xff]
    %v3598 = vld [vmem:[#allocation8 + $0x310] sm:$0xff]
    %v3599 = vld [vmem:[#allocation8 + $0x318] sm:$0xff]
    %v3600 = vld [vmem:[#allocation8 + $0x320] sm:$0xff]
    %v3601 = vld [vmem:[#allocation8 + $0x328] sm:$0xff]
    %v3602 = vld [vmem:[#allocation8 + $0x330] sm:$0xff]
    %v3603 = vld [vmem:[#allocation8 + $0x338] sm:$0xff]
    %v3604 = vld [vmem:[#allocation8 + $0x340] sm:$0xff]
    %v3605 = vld [vmem:[#allocation8 + $0x348] sm:$0xff]
    %v3606 = vld [vmem:[#allocation8 + $0x350] sm:$0xff]
    %v3607 = vld [vmem:[#allocation8 + $0x358] sm:$0xff]
    %v3608 = vld [vmem:[#allocation8 + $0x360] sm:$0xff]
    %v3609 = vld [vmem:[#allocation8 + $0x368] sm:$0xff]
    %v3610 = vld [vmem:[#allocation8 + $0x370] sm:$0xff]
    %v3611 = vld [vmem:[#allocation8 + $0x378] sm:$0xff]
    %v3612 = vld [vmem:[#allocation8 + $0x380] sm:$0xff]
    %v3613 = vld [vmem:[#allocation8 + $0x388] sm:$0xff]
    %v3614 = vld [vmem:[#allocation8 + $0x390] sm:$0xff]
    %v3615 = vld [vmem:[#allocation8 + $0x398] sm:$0xff]
    %v3616 = vld [vmem:[#allocation8 + $0x3a0] sm:$0xff]
    %v3617 = vld [vmem:[#allocation8 + $0x3a8] sm:$0xff]
    %v3618 = vld [vmem:[#allocation8 + $0x3b0] sm:$0xff]
    %v3619 = vld [vmem:[#allocation8 + $0x3b8] sm:$0xff]
    %v3620 = vld [vmem:[#allocation8 + $0x3c0] sm:$0xff]
    %v3621 = vld [vmem:[#allocation8 + $0x3c8] sm:$0xff]
    %v3622 = vld [vmem:[#allocation8 + $0x3d0] sm:$0xff]
    %v3623 = vld [vmem:[#allocation8 + $0x3d8] sm:$0xff]
    %v3624 = vld [vmem:[#allocation8 + $0x3e0] sm:$0xff]
    %v3625 = vld [vmem:[#allocation8 + $0x3e8] sm:$0xff]
    %v3626 = vld [vmem:[#allocation8 + $0x3f0] sm:$0xff]
    %v3627 = vld [vmem:[#allocation8 + $0x3f8] sm:$0xff]
    %v3628 = vld [vmem:[#allocation8 + $0x400] sm:$0xff]
    %v3629 = vld [vmem:[#allocation8 + $0x408] sm:$0xff]
    %v3630 = vld [vmem:[#allocation8 + $0x410] sm:$0xff]
    %v3631 = vld [vmem:[#allocation8 + $0x418] sm:$0xff]
    %v3632 = vld [vmem:[#allocation8 + $0x420] sm:$0xff]
    %v3633 = vld [vmem:[#allocation8 + $0x428] sm:$0xff]
    %v3634 = vld [vmem:[#allocation8 + $0x430] sm:$0xff]
    %v3635 = vld [vmem:[#allocation8 + $0x438] sm:$0xff]
    %v3636 = vld [vmem:[#allocation8 + $0x440] sm:$0xff]
    %v3637 = vld [vmem:[#allocation8 + $0x448] sm:$0xff]
    %v3638 = vld [vmem:[#allocation8 + $0x450] sm:$0xff]
    %v3639 = vld [vmem:[#allocation8 + $0x458] sm:$0xff]
    %v3640 = vld [vmem:[#allocation8 + $0x460] sm:$0xff]
    %v3641 = vld [vmem:[#allocation8 + $0x468] sm:$0xff]
    %v3642 = vld [vmem:[#allocation8 + $0x470] sm:$0xff]
    %v3643 = vld [vmem:[#allocation8 + $0x478] sm:$0xff]
    %v3644 = vld [vmem:[#allocation8 + $0x480] sm:$0xff]
    %v3645 = vld [vmem:[#allocation8 + $0x488] sm:$0xff]
    %v3646 = vld [vmem:[#allocation8 + $0x490] sm:$0xff]
    %v3647 = vld [vmem:[#allocation8 + $0x498] sm:$0xff]
    %v3648 = vld [vmem:[#allocation8 + $0x4a0] sm:$0xff]
    %v3649 = vld [vmem:[#allocation8 + $0x4a8] sm:$0xff]
    %v3650 = vld [vmem:[#allocation8 + $0x4b0] sm:$0xff]
    %v3651 = vld [vmem:[#allocation8 + $0x4b8] sm:$0xff]
    %v3652 = vld [vmem:[#allocation8 + $0x4c0] sm:$0xff]
    %v3653 = vld [vmem:[#allocation8 + $0x4c8] sm:$0xff]
    %v3654 = vld [vmem:[#allocation8 + $0x4d0] sm:$0xff]
    %v3655 = vld [vmem:[#allocation8 + $0x4d8] sm:$0xff]
    %v3656 = vld [vmem:[#allocation8 + $0x4e0] sm:$0xff]
    %v3657 = vld [vmem:[#allocation8 + $0x4e8] sm:$0xff]
    %v3658 = vld [vmem:[#allocation8 + $0x4f0] sm:$0xff]
    %v3659 = vld [vmem:[#allocation8 + $0x4f8] sm:$0xff]
    %v3660 = vld [vmem:[#allocation8 + $0x500] sm:$0xff]
    %v3661 = vld [vmem:[#allocation8 + $0x508] sm:$0xff]
    %v3662 = vld [vmem:[#allocation8 + $0x510] sm:$0xff]
    %v3663 = vld [vmem:[#allocation8 + $0x518] sm:$0xff]
    %v3664 = vld [vmem:[#allocation8 + $0x520] sm:$0xff]
    %v3665 = vld [vmem:[#allocation8 + $0x528] sm:$0xff]
    %v3666 = vld [vmem:[#allocation8 + $0x530] sm:$0xff]
    %v3667 = vld [vmem:[#allocation8 + $0x538] sm:$0xff]
    %v3668 = vld [vmem:[#allocation8 + $0x540] sm:$0xff]
    %v3669 = vld [vmem:[#allocation8 + $0x548] sm:$0xff]
    %v3670 = vld [vmem:[#allocation8 + $0x550] sm:$0xff]
    %v3671 = vld [vmem:[#allocation8 + $0x558] sm:$0xff]
    %v3672 = vld [vmem:[#allocation8 + $0x560] sm:$0xff]
    %v3673 = vld [vmem:[#allocation8 + $0x568] sm:$0xff]
    %v3674 = vld [vmem:[#allocation8 + $0x570] sm:$0xff]
    %v3675 = vld [vmem:[#allocation8 + $0x578] sm:$0xff]
    %v3676 = vld [vmem:[#allocation8 + $0x580] sm:$0xff]
    %v3677 = vld [vmem:[#allocation8 + $0x588] sm:$0xff]
    %v3678 = vld [vmem:[#allocation8 + $0x590] sm:$0xff]
    %v3679 = vld [vmem:[#allocation8 + $0x598] sm:$0xff]
    %v3680 = vld [vmem:[#allocation8 + $0x5a0] sm:$0xff]
    %v3681 = vld [vmem:[#allocation8 + $0x5a8] sm:$0xff]
    %v3682 = vld [vmem:[#allocation8 + $0x5b0] sm:$0xff]
    %v3683 = vld [vmem:[#allocation8 + $0x5b8] sm:$0xff]
    %v3684 = vld [vmem:[#allocation8 + $0x5c0] sm:$0xff]
    %v3685 = vld [vmem:[#allocation8 + $0x5c8] sm:$0xff]
    %v3686 = vld [vmem:[#allocation8 + $0x5d0] sm:$0xff]
    %v3687 = vld [vmem:[#allocation8 + $0x5d8] sm:$0xff]
    %v3688 = vld [vmem:[#allocation8 + $0x5e0] sm:$0xff]
    %v3689 = vld [vmem:[#allocation8 + $0x5e8] sm:$0xff]
    %v3690 = vld [vmem:[#allocation8 + $0x5f0] sm:$0xff]
    %v3691 = vld [vmem:[#allocation8 + $0x5f8] sm:$0xff]
    %v3692 = vld [vmem:[#allocation8 + $0x600] sm:$0xff]
    %v3693 = vld [vmem:[#allocation8 + $0x608] sm:$0xff]
    %v3694 = vld [vmem:[#allocation8 + $0x610] sm:$0xff]
    %v3695 = vld [vmem:[#allocation8 + $0x618] sm:$0xff]
    %v3696 = vld [vmem:[#allocation8 + $0x620] sm:$0xff]
    %v3697 = vld [vmem:[#allocation8 + $0x628] sm:$0xff]
    %v3698 = vld [vmem:[#allocation8 + $0x630] sm:$0xff]
    %v3699 = vld [vmem:[#allocation8 + $0x638] sm:$0xff]
    %v3700 = vld [vmem:[#allocation8 + $0x640] sm:$0xff]
    %v3701 = vld [vmem:[#allocation8 + $0x648] sm:$0xff]
    %v3702 = vld [vmem:[#allocation8 + $0x650] sm:$0xff]
    %v3703 = vld [vmem:[#allocation8 + $0x658] sm:$0xff]
    %v3704 = vld [vmem:[#allocation8 + $0x660] sm:$0xff]
    %v3705 = vld [vmem:[#allocation8 + $0x668] sm:$0xff]
    %v3706 = vld [vmem:[#allocation8 + $0x670] sm:$0xff]
    %v3707 = vld [vmem:[#allocation8 + $0x678] sm:$0xff]
    %v3708 = vld [vmem:[#allocation8 + $0x680] sm:$0xff]
    %v3709 = vld [vmem:[#allocation8 + $0x688] sm:$0xff]
    %v3710 = vld [vmem:[#allocation8 + $0x690] sm:$0xff]
    %v3711 = vld [vmem:[#allocation8 + $0x698] sm:$0xff]
    %v3712 = vld [vmem:[#allocation8 + $0x6a0] sm:$0xff]
    %v3713 = vld [vmem:[#allocation8 + $0x6a8] sm:$0xff]
    %v3714 = vld [vmem:[#allocation8 + $0x6b0] sm:$0xff]
    %v3715 = vld [vmem:[#allocation8 + $0x6b8] sm:$0xff]
    %v3716 = vld [vmem:[#allocation8 + $0x6c0] sm:$0xff]
    %v3717 = vld [vmem:[#allocation8 + $0x6c8] sm:$0xff]
    %v3718 = vld [vmem:[#allocation8 + $0x6d0] sm:$0xff]
    %v3719 = vld [vmem:[#allocation8 + $0x6d8] sm:$0xff]
    %v3720 = vld [vmem:[#allocation8 + $0x6e0] sm:$0xff]
    %v3721 = vld [vmem:[#allocation8 + $0x6e8] sm:$0xff]
    %v3722 = vld [vmem:[#allocation8 + $0x6f0] sm:$0xff]
    %v3723 = vld [vmem:[#allocation8 + $0x6f8] sm:$0xff]
    %v3724 = vld [vmem:[#allocation8 + $0x700] sm:$0xff]
    %v3725 = vld [vmem:[#allocation8 + $0x708] sm:$0xff]
    %v3726 = vld [vmem:[#allocation8 + $0x710] sm:$0xff]
    %v3727 = vld [vmem:[#allocation8 + $0x718] sm:$0xff]
    %v3728 = vld [vmem:[#allocation8 + $0x720] sm:$0xff]
    %v3729 = vld [vmem:[#allocation8 + $0x728] sm:$0xff]
    %v3730 = vld [vmem:[#allocation8 + $0x730] sm:$0xff]
    %v3731 = vld [vmem:[#allocation8 + $0x738] sm:$0xff]
    %v3732 = vld [vmem:[#allocation8 + $0x740] sm:$0xff]
    %v3733 = vld [vmem:[#allocation8 + $0x748] sm:$0xff]
    %v3734 = vld [vmem:[#allocation8 + $0x750] sm:$0xff]
    %v3735 = vld [vmem:[#allocation8 + $0x758] sm:$0xff]
    %v3736 = vld [vmem:[#allocation8 + $0x760] sm:$0xff]
    %v3737 = vld [vmem:[#allocation8 + $0x768] sm:$0xff]
    %v3738 = vld [vmem:[#allocation8 + $0x770] sm:$0xff]
    %v3739 = vld [vmem:[#allocation8 + $0x778] sm:$0xff]
    %v3740 = vld [vmem:[#allocation8 + $0x780] sm:$0xff]
    %v3741 = vld [vmem:[#allocation8 + $0x788] sm:$0xff]
    %v3742 = vld [vmem:[#allocation8 + $0x790] sm:$0xff]
    %v3743 = vld [vmem:[#allocation8 + $0x798] sm:$0xff]
    %v3744 = vld [vmem:[#allocation8 + $0x7a0] sm:$0xff]
    %v3745 = vld [vmem:[#allocation8 + $0x7a8] sm:$0xff]
    %v3746 = vld [vmem:[#allocation8 + $0x7b0] sm:$0xff]
    %v3747 = vld [vmem:[#allocation8 + $0x7b8] sm:$0xff]
    %v3748 = vld [vmem:[#allocation8 + $0x7c0] sm:$0xff]
    %v3749 = vld [vmem:[#allocation8 + $0x7c8] sm:$0xff]
    %v3750 = vld [vmem:[#allocation8 + $0x7d0] sm:$0xff]
    %v3751 = vld [vmem:[#allocation8 + $0x7d8] sm:$0xff]
    %v3752 = vld [vmem:[#allocation8 + $0x7e0] sm:$0xff]
    %v3753 = vld [vmem:[#allocation8 + $0x7e8] sm:$0xff]
    %v3754 = vld [vmem:[#allocation8 + $0x7f0] sm:$0xff]
    %v3755 = vld [vmem:[#allocation8 + $0x7f8] sm:$0xff]
    %v3756 = vld [vmem:[#allocation10] sm:$0xf]
    %v3758 = vlaneseq
    %v3759 = vshrl.u32 %v3758, 7
    %v3760 = vsub.s32 0, %v3759
    %v3761 = vrot.slane %v3756, %v3760
    %v3762 = vlaneseq
    %v3763 = vshrl.u32 %v3762, 7
    %v3764 = vsub.s32 1, %v3763
    %v3765 = vrot.slane %v3756, %v3764
    %v3766 = vlaneseq
    %v3767 = vshrl.u32 %v3766, 7
    %v3768 = vsub.s32 2, %v3767
    %v3769 = vrot.slane %v3756, %v3768
    %v3770 = vlaneseq
    %v3771 = vshrl.u32 %v3770, 7
    %v3772 = vsub.s32 3, %v3771
    %v3773 = vrot.slane %v3756, %v3772
    %v4034 = vunpack.c.l.b16 %v3500
    %v4035 = vunpack.c.h.b16 %v3500
    %v4036 = vunpack.c.l.b16 %v3501
    %v4037 = vunpack.c.h.b16 %v3501
    %v4038 = vunpack.c.l.b16 %v3502
    %v4039 = vunpack.c.h.b16 %v3502
    %v4040 = vunpack.c.l.b16 %v3503
    %v4041 = vunpack.c.h.b16 %v3503
    %v4042 = vunpack.c.l.b16 %v3504
    %v4043 = vunpack.c.h.b16 %v3504
    %v4044 = vunpack.c.l.b16 %v3505
    %v4045 = vunpack.c.h.b16 %v3505
    %v4046 = vunpack.c.l.b16 %v3506
    %v4047 = vunpack.c.h.b16 %v3506
    %v4048 = vunpack.c.l.b16 %v3507
    %v4049 = vunpack.c.h.b16 %v3507
    %v4050 = vunpack.c.l.b16 %v3508
    %v4051 = vunpack.c.h.b16 %v3508
    %v4052 = vunpack.c.l.b16 %v3509
    %v4053 = vunpack.c.h.b16 %v3509
    %v4054 = vunpack.c.l.b16 %v3510
    %v4055 = vunpack.c.h.b16 %v3510
    %v4056 = vunpack.c.l.b16 %v3511
    %v4057 = vunpack.c.h.b16 %v3511
    %v4058 = vunpack.c.l.b16 %v3512
    %v4059 = vunpack.c.h.b16 %v3512
    %v4060 = vunpack.c.l.b16 %v3513
    %v4061 = vunpack.c.h.b16 %v3513
    %v4062 = vunpack.c.l.b16 %v3514
    %v4063 = vunpack.c.h.b16 %v3514
    %v4064 = vunpack.c.l.b16 %v3515
    %v4065 = vunpack.c.h.b16 %v3515
    %v4066 = vunpack.c.l.b16 %v3516
    %v4067 = vunpack.c.h.b16 %v3516
    %v4068 = vunpack.c.l.b16 %v3517
    %v4069 = vunpack.c.h.b16 %v3517
    %v4070 = vunpack.c.l.b16 %v3518
    %v4071 = vunpack.c.h.b16 %v3518
    %v4072 = vunpack.c.l.b16 %v3519
    %v4073 = vunpack.c.h.b16 %v3519
    %v4074 = vunpack.c.l.b16 %v3520
    %v4075 = vunpack.c.h.b16 %v3520
    %v4076 = vunpack.c.l.b16 %v3521
    %v4077 = vunpack.c.h.b16 %v3521
    %v4078 = vunpack.c.l.b16 %v3522
    %v4079 = vunpack.c.h.b16 %v3522
    %v4080 = vunpack.c.l.b16 %v3523
    %v4081 = vunpack.c.h.b16 %v3523
    %v4082 = vunpack.c.l.b16 %v3524
    %v4083 = vunpack.c.h.b16 %v3524
    %v4084 = vunpack.c.l.b16 %v3525
    %v4085 = vunpack.c.h.b16 %v3525
    %v4086 = vunpack.c.l.b16 %v3526
    %v4087 = vunpack.c.h.b16 %v3526
    %v4088 = vunpack.c.l.b16 %v3527
    %v4089 = vunpack.c.h.b16 %v3527
    %v4090 = vunpack.c.l.b16 %v3528
    %v4091 = vunpack.c.h.b16 %v3528
    %v4092 = vunpack.c.l.b16 %v3529
    %v4093 = vunpack.c.h.b16 %v3529
    %v4094 = vunpack.c.l.b16 %v3530
    %v4095 = vunpack.c.h.b16 %v3530
    %v4096 = vunpack.c.l.b16 %v3531
    %v4097 = vunpack.c.h.b16 %v3531
    %v4098 = vunpack.c.l.b16 %v3532
    %v4099 = vunpack.c.h.b16 %v3532
    %v4100 = vunpack.c.l.b16 %v3533
    %v4101 = vunpack.c.h.b16 %v3533
    %v4102 = vunpack.c.l.b16 %v3534
    %v4103 = vunpack.c.h.b16 %v3534
    %v4104 = vunpack.c.l.b16 %v3535
    %v4105 = vunpack.c.h.b16 %v3535
    %v4106 = vunpack.c.l.b16 %v3536
    %v4107 = vunpack.c.h.b16 %v3536
    %v4108 = vunpack.c.l.b16 %v3537
    %v4109 = vunpack.c.h.b16 %v3537
    %v4110 = vunpack.c.l.b16 %v3538
    %v4111 = vunpack.c.h.b16 %v3538
    %v4112 = vunpack.c.l.b16 %v3539
    %v4113 = vunpack.c.h.b16 %v3539
    %v4114 = vunpack.c.l.b16 %v3540
    %v4115 = vunpack.c.h.b16 %v3540
    %v4116 = vunpack.c.l.b16 %v3541
    %v4117 = vunpack.c.h.b16 %v3541
    %v4118 = vunpack.c.l.b16 %v3542
    %v4119 = vunpack.c.h.b16 %v3542
    %v4120 = vunpack.c.l.b16 %v3543
    %v4121 = vunpack.c.h.b16 %v3543
    %v4122 = vunpack.c.l.b16 %v3544
    %v4123 = vunpack.c.h.b16 %v3544
    %v4124 = vunpack.c.l.b16 %v3545
    %v4125 = vunpack.c.h.b16 %v3545
    %v4126 = vunpack.c.l.b16 %v3546
    %v4127 = vunpack.c.h.b16 %v3546
    %v4128 = vunpack.c.l.b16 %v3547
    %v4129 = vunpack.c.h.b16 %v3547
    %v4130 = vunpack.c.l.b16 %v3548
    %v4131 = vunpack.c.h.b16 %v3548
    %v4132 = vunpack.c.l.b16 %v3549
    %v4133 = vunpack.c.h.b16 %v3549
    %v4134 = vunpack.c.l.b16 %v3550
    %v4135 = vunpack.c.h.b16 %v3550
    %v4136 = vunpack.c.l.b16 %v3551
    %v4137 = vunpack.c.h.b16 %v3551
    %v4138 = vunpack.c.l.b16 %v3552
    %v4139 = vunpack.c.h.b16 %v3552
    %v4140 = vunpack.c.l.b16 %v3553
    %v4141 = vunpack.c.h.b16 %v3553
    %v4142 = vunpack.c.l.b16 %v3554
    %v4143 = vunpack.c.h.b16 %v3554
    %v4144 = vunpack.c.l.b16 %v3555
    %v4145 = vunpack.c.h.b16 %v3555
    %v4146 = vunpack.c.l.b16 %v3556
    %v4147 = vunpack.c.h.b16 %v3556
    %v4148 = vunpack.c.l.b16 %v3557
    %v4149 = vunpack.c.h.b16 %v3557
    %v4150 = vunpack.c.l.b16 %v3558
    %v4151 = vunpack.c.h.b16 %v3558
    %v4152 = vunpack.c.l.b16 %v3559
    %v4153 = vunpack.c.h.b16 %v3559
    %v4154 = vunpack.c.l.b16 %v3560
    %v4155 = vunpack.c.h.b16 %v3560
    %v4156 = vunpack.c.l.b16 %v3561
    %v4157 = vunpack.c.h.b16 %v3561
    %v4158 = vunpack.c.l.b16 %v3562
    %v4159 = vunpack.c.h.b16 %v3562
    %v4160 = vunpack.c.l.b16 %v3563
    %v4161 = vunpack.c.h.b16 %v3563
    %v4162 = vunpack.c.l.b16 %v3564
    %v4163 = vunpack.c.h.b16 %v3564
    %v4164 = vunpack.c.l.b16 %v3565
    %v4165 = vunpack.c.h.b16 %v3565
    %v4166 = vunpack.c.l.b16 %v3566
    %v4167 = vunpack.c.h.b16 %v3566
    %v4168 = vunpack.c.l.b16 %v3567
    %v4169 = vunpack.c.h.b16 %v3567
    %v4170 = vunpack.c.l.b16 %v3568
    %v4171 = vunpack.c.h.b16 %v3568
    %v4172 = vunpack.c.l.b16 %v3569
    %v4173 = vunpack.c.h.b16 %v3569
    %v4174 = vunpack.c.l.b16 %v3570
    %v4175 = vunpack.c.h.b16 %v3570
    %v4176 = vunpack.c.l.b16 %v3571
    %v4177 = vunpack.c.h.b16 %v3571
    %v4178 = vunpack.c.l.b16 %v3572
    %v4179 = vunpack.c.h.b16 %v3572
    %v4180 = vunpack.c.l.b16 %v3573
    %v4181 = vunpack.c.h.b16 %v3573
    %v4182 = vunpack.c.l.b16 %v3574
    %v4183 = vunpack.c.h.b16 %v3574
    %v4184 = vunpack.c.l.b16 %v3575
    %v4185 = vunpack.c.h.b16 %v3575
    %v4186 = vunpack.c.l.b16 %v3576
    %v4187 = vunpack.c.h.b16 %v3576
    %v4188 = vunpack.c.l.b16 %v3577
    %v4189 = vunpack.c.h.b16 %v3577
    %v4190 = vunpack.c.l.b16 %v3578
    %v4191 = vunpack.c.h.b16 %v3578
    %v4192 = vunpack.c.l.b16 %v3579
    %v4193 = vunpack.c.h.b16 %v3579
    %v4194 = vunpack.c.l.b16 %v3580
    %v4195 = vunpack.c.h.b16 %v3580
    %v4196 = vunpack.c.l.b16 %v3581
    %v4197 = vunpack.c.h.b16 %v3581
    %v4198 = vunpack.c.l.b16 %v3582
    %v4199 = vunpack.c.h.b16 %v3582
    %v4200 = vunpack.c.l.b16 %v3583
    %v4201 = vunpack.c.h.b16 %v3583
    %v4202 = vunpack.c.l.b16 %v3584
    %v4203 = vunpack.c.h.b16 %v3584
    %v4204 = vunpack.c.l.b16 %v3585
    %v4205 = vunpack.c.h.b16 %v3585
    %v4206 = vunpack.c.l.b16 %v3586
    %v4207 = vunpack.c.h.b16 %v3586
    %v4208 = vunpack.c.l.b16 %v3587
    %v4209 = vunpack.c.h.b16 %v3587
    %v4210 = vunpack.c.l.b16 %v3588
    %v4211 = vunpack.c.h.b16 %v3588
    %v4212 = vunpack.c.l.b16 %v3589
    %v4213 = vunpack.c.h.b16 %v3589
    %v4214 = vunpack.c.l.b16 %v3590
    %v4215 = vunpack.c.h.b16 %v3590
    %v4216 = vunpack.c.l.b16 %v3591
    %v4217 = vunpack.c.h.b16 %v3591
    %v4218 = vunpack.c.l.b16 %v3592
    %v4219 = vunpack.c.h.b16 %v3592
    %v4220 = vunpack.c.l.b16 %v3593
    %v4221 = vunpack.c.h.b16 %v3593
    %v4222 = vunpack.c.l.b16 %v3594
    %v4223 = vunpack.c.h.b16 %v3594
    %v4224 = vunpack.c.l.b16 %v3595
    %v4225 = vunpack.c.h.b16 %v3595
    %v4226 = vunpack.c.l.b16 %v3596
    %v4227 = vunpack.c.h.b16 %v3596
    %v4228 = vunpack.c.l.b16 %v3597
    %v4229 = vunpack.c.h.b16 %v3597
    %v4230 = vunpack.c.l.b16 %v3598
    %v4231 = vunpack.c.h.b16 %v3598
    %v4232 = vunpack.c.l.b16 %v3599
    %v4233 = vunpack.c.h.b16 %v3599
    %v4234 = vunpack.c.l.b16 %v3600
    %v4235 = vunpack.c.h.b16 %v3600
    %v4236 = vunpack.c.l.b16 %v3601
    %v4237 = vunpack.c.h.b16 %v3601
    %v4238 = vunpack.c.l.b16 %v3602
    %v4239 = vunpack.c.h.b16 %v3602
    %v4240 = vunpack.c.l.b16 %v3603
    %v4241 = vunpack.c.h.b16 %v3603
    %v4242 = vunpack.c.l.b16 %v3604
    %v4243 = vunpack.c.h.b16 %v3604
    %v4244 = vunpack.c.l.b16 %v3605
    %v4245 = vunpack.c.h.b16 %v3605
    %v4246 = vunpack.c.l.b16 %v3606
    %v4247 = vunpack.c.h.b16 %v3606
    %v4248 = vunpack.c.l.b16 %v3607
    %v4249 = vunpack.c.h.b16 %v3607
    %v4250 = vunpack.c.l.b16 %v3608
    %v4251 = vunpack.c.h.b16 %v3608
    %v4252 = vunpack.c.l.b16 %v3609
    %v4253 = vunpack.c.h.b16 %v3609
    %v4254 = vunpack.c.l.b16 %v3610
    %v4255 = vunpack.c.h.b16 %v3610
    %v4256 = vunpack.c.l.b16 %v3611
    %v4257 = vunpack.c.h.b16 %v3611
    %v4258 = vunpack.c.l.b16 %v3612
    %v4259 = vunpack.c.h.b16 %v3612
    %v4260 = vunpack.c.l.b16 %v3613
    %v4261 = vunpack.c.h.b16 %v3613
    %v4262 = vunpack.c.l.b16 %v3614
    %v4263 = vunpack.c.h.b16 %v3614
    %v4264 = vunpack.c.l.b16 %v3615
    %v4265 = vunpack.c.h.b16 %v3615
    %v4266 = vunpack.c.l.b16 %v3616
    %v4267 = vunpack.c.h.b16 %v3616
    %v4268 = vunpack.c.l.b16 %v3617
    %v4269 = vunpack.c.h.b16 %v3617
    %v4270 = vunpack.c.l.b16 %v3618
    %v4271 = vunpack.c.h.b16 %v3618
    %v4272 = vunpack.c.l.b16 %v3619
    %v4273 = vunpack.c.h.b16 %v3619
    %v4274 = vunpack.c.l.b16 %v3620
    %v4275 = vunpack.c.h.b16 %v3620
    %v4276 = vunpack.c.l.b16 %v3621
    %v4277 = vunpack.c.h.b16 %v3621
    %v4278 = vunpack.c.l.b16 %v3622
    %v4279 = vunpack.c.h.b16 %v3622
    %v4280 = vunpack.c.l.b16 %v3623
    %v4281 = vunpack.c.h.b16 %v3623
    %v4282 = vunpack.c.l.b16 %v3624
    %v4283 = vunpack.c.h.b16 %v3624
    %v4284 = vunpack.c.l.b16 %v3625
    %v4285 = vunpack.c.h.b16 %v3625
    %v4286 = vunpack.c.l.b16 %v3626
    %v4287 = vunpack.c.h.b16 %v3626
    %v4288 = vunpack.c.l.b16 %v3627
    %v4289 = vunpack.c.h.b16 %v3627
    %v4290 = vunpack.c.l.b16 %v3628
    %v4291 = vunpack.c.h.b16 %v3628
    %v4292 = vunpack.c.l.b16 %v3629
    %v4293 = vunpack.c.h.b16 %v3629
    %v4294 = vunpack.c.l.b16 %v3630
    %v4295 = vunpack.c.h.b16 %v3630
    %v4296 = vunpack.c.l.b16 %v3631
    %v4297 = vunpack.c.h.b16 %v3631
    %v4298 = vunpack.c.l.b16 %v3632
    %v4299 = vunpack.c.h.b16 %v3632
    %v4300 = vunpack.c.l.b16 %v3633
    %v4301 = vunpack.c.h.b16 %v3633
    %v4302 = vunpack.c.l.b16 %v3634
    %v4303 = vunpack.c.h.b16 %v3634
    %v4304 = vunpack.c.l.b16 %v3635
    %v4305 = vunpack.c.h.b16 %v3635
    %v4306 = vunpack.c.l.b16 %v3636
    %v4307 = vunpack.c.h.b16 %v3636
    %v4308 = vunpack.c.l.b16 %v3637
    %v4309 = vunpack.c.h.b16 %v3637
    %v4310 = vunpack.c.l.b16 %v3638
    %v4311 = vunpack.c.h.b16 %v3638
    %v4312 = vunpack.c.l.b16 %v3639
    %v4313 = vunpack.c.h.b16 %v3639
    %v4314 = vunpack.c.l.b16 %v3640
    %v4315 = vunpack.c.h.b16 %v3640
    %v4316 = vunpack.c.l.b16 %v3641
    %v4317 = vunpack.c.h.b16 %v3641
    %v4318 = vunpack.c.l.b16 %v3642
    %v4319 = vunpack.c.h.b16 %v3642
    %v4320 = vunpack.c.l.b16 %v3643
    %v4321 = vunpack.c.h.b16 %v3643
    %v4322 = vunpack.c.l.b16 %v3644
    %v4323 = vunpack.c.h.b16 %v3644
    %v4324 = vunpack.c.l.b16 %v3645
    %v4325 = vunpack.c.h.b16 %v3645
    %v4326 = vunpack.c.l.b16 %v3646
    %v4327 = vunpack.c.h.b16 %v3646
    %v4328 = vunpack.c.l.b16 %v3647
    %v4329 = vunpack.c.h.b16 %v3647
    %v4330 = vunpack.c.l.b16 %v3648
    %v4331 = vunpack.c.h.b16 %v3648
    %v4332 = vunpack.c.l.b16 %v3649
    %v4333 = vunpack.c.h.b16 %v3649
    %v4334 = vunpack.c.l.b16 %v3650
    %v4335 = vunpack.c.h.b16 %v3650
    %v4336 = vunpack.c.l.b16 %v3651
    %v4337 = vunpack.c.h.b16 %v3651
    %v4338 = vunpack.c.l.b16 %v3652
    %v4339 = vunpack.c.h.b16 %v3652
    %v4340 = vunpack.c.l.b16 %v3653
    %v4341 = vunpack.c.h.b16 %v3653
    %v4342 = vunpack.c.l.b16 %v3654
    %v4343 = vunpack.c.h.b16 %v3654
    %v4344 = vunpack.c.l.b16 %v3655
    %v4345 = vunpack.c.h.b16 %v3655
    %v4346 = vunpack.c.l.b16 %v3656
    %v4347 = vunpack.c.h.b16 %v3656
    %v4348 = vunpack.c.l.b16 %v3657
    %v4349 = vunpack.c.h.b16 %v3657
    %v4350 = vunpack.c.l.b16 %v3658
    %v4351 = vunpack.c.h.b16 %v3658
    %v4352 = vunpack.c.l.b16 %v3659
    %v4353 = vunpack.c.h.b16 %v3659
    %v4354 = vunpack.c.l.b16 %v3660
    %v4355 = vunpack.c.h.b16 %v3660
    %v4356 = vunpack.c.l.b16 %v3661
    %v4357 = vunpack.c.h.b16 %v3661
    %v4358 = vunpack.c.l.b16 %v3662
    %v4359 = vunpack.c.h.b16 %v3662
    %v4360 = vunpack.c.l.b16 %v3663
    %v4361 = vunpack.c.h.b16 %v3663
    %v4362 = vunpack.c.l.b16 %v3664
    %v4363 = vunpack.c.h.b16 %v3664
    %v4364 = vunpack.c.l.b16 %v3665
    %v4365 = vunpack.c.h.b16 %v3665
    %v4366 = vunpack.c.l.b16 %v3666
    %v4367 = vunpack.c.h.b16 %v3666
    %v4368 = vunpack.c.l.b16 %v3667
    %v4369 = vunpack.c.h.b16 %v3667
    %v4370 = vunpack.c.l.b16 %v3668
    %v4371 = vunpack.c.h.b16 %v3668
    %v4372 = vunpack.c.l.b16 %v3669
    %v4373 = vunpack.c.h.b16 %v3669
    %v4374 = vunpack.c.l.b16 %v3670
    %v4375 = vunpack.c.h.b16 %v3670
    %v4376 = vunpack.c.l.b16 %v3671
    %v4377 = vunpack.c.h.b16 %v3671
    %v4378 = vunpack.c.l.b16 %v3672
    %v4379 = vunpack.c.h.b16 %v3672
    %v4380 = vunpack.c.l.b16 %v3673
    %v4381 = vunpack.c.h.b16 %v3673
    %v4382 = vunpack.c.l.b16 %v3674
    %v4383 = vunpack.c.h.b16 %v3674
    %v4384 = vunpack.c.l.b16 %v3675
    %v4385 = vunpack.c.h.b16 %v3675
    %v4386 = vunpack.c.l.b16 %v3676
    %v4387 = vunpack.c.h.b16 %v3676
    %v4388 = vunpack.c.l.b16 %v3677
    %v4389 = vunpack.c.h.b16 %v3677
    %v4390 = vunpack.c.l.b16 %v3678
    %v4391 = vunpack.c.h.b16 %v3678
    %v4392 = vunpack.c.l.b16 %v3679
    %v4393 = vunpack.c.h.b16 %v3679
    %v4394 = vunpack.c.l.b16 %v3680
    %v4395 = vunpack.c.h.b16 %v3680
    %v4396 = vunpack.c.l.b16 %v3681
    %v4397 = vunpack.c.h.b16 %v3681
    %v4398 = vunpack.c.l.b16 %v3682
    %v4399 = vunpack.c.h.b16 %v3682
    %v4400 = vunpack.c.l.b16 %v3683
    %v4401 = vunpack.c.h.b16 %v3683
    %v4402 = vunpack.c.l.b16 %v3684
    %v4403 = vunpack.c.h.b16 %v3684
    %v4404 = vunpack.c.l.b16 %v3685
    %v4405 = vunpack.c.h.b16 %v3685
    %v4406 = vunpack.c.l.b16 %v3686
    %v4407 = vunpack.c.h.b16 %v3686
    %v4408 = vunpack.c.l.b16 %v3687
    %v4409 = vunpack.c.h.b16 %v3687
    %v4410 = vunpack.c.l.b16 %v3688
    %v4411 = vunpack.c.h.b16 %v3688
    %v4412 = vunpack.c.l.b16 %v3689
    %v4413 = vunpack.c.h.b16 %v3689
    %v4414 = vunpack.c.l.b16 %v3690
    %v4415 = vunpack.c.h.b16 %v3690
    %v4416 = vunpack.c.l.b16 %v3691
    %v4417 = vunpack.c.h.b16 %v3691
    %v4418 = vunpack.c.l.b16 %v3692
    %v4419 = vunpack.c.h.b16 %v3692
    %v4420 = vunpack.c.l.b16 %v3693
    %v4421 = vunpack.c.h.b16 %v3693
    %v4422 = vunpack.c.l.b16 %v3694
    %v4423 = vunpack.c.h.b16 %v3694
    %v4424 = vunpack.c.l.b16 %v3695
    %v4425 = vunpack.c.h.b16 %v3695
    %v4426 = vunpack.c.l.b16 %v3696
    %v4427 = vunpack.c.h.b16 %v3696
    %v4428 = vunpack.c.l.b16 %v3697
    %v4429 = vunpack.c.h.b16 %v3697
    %v4430 = vunpack.c.l.b16 %v3698
    %v4431 = vunpack.c.h.b16 %v3698
    %v4432 = vunpack.c.l.b16 %v3699
    %v4433 = vunpack.c.h.b16 %v3699
    %v4434 = vunpack.c.l.b16 %v3700
    %v4435 = vunpack.c.h.b16 %v3700
    %v4436 = vunpack.c.l.b16 %v3701
    %v4437 = vunpack.c.h.b16 %v3701
    %v4438 = vunpack.c.l.b16 %v3702
    %v4439 = vunpack.c.h.b16 %v3702
    %v4440 = vunpack.c.l.b16 %v3703
    %v4441 = vunpack.c.h.b16 %v3703
    %v4442 = vunpack.c.l.b16 %v3704
    %v4443 = vunpack.c.h.b16 %v3704
    %v4444 = vunpack.c.l.b16 %v3705
    %v4445 = vunpack.c.h.b16 %v3705
    %v4446 = vunpack.c.l.b16 %v3706
    %v4447 = vunpack.c.h.b16 %v3706
    %v4448 = vunpack.c.l.b16 %v3707
    %v4449 = vunpack.c.h.b16 %v3707
    %v4450 = vunpack.c.l.b16 %v3708
    %v4451 = vunpack.c.h.b16 %v3708
    %v4452 = vunpack.c.l.b16 %v3709
    %v4453 = vunpack.c.h.b16 %v3709
    %v4454 = vunpack.c.l.b16 %v3710
    %v4455 = vunpack.c.h.b16 %v3710
    %v4456 = vunpack.c.l.b16 %v3711
    %v4457 = vunpack.c.h.b16 %v3711
    %v4458 = vunpack.c.l.b16 %v3712
    %v4459 = vunpack.c.h.b16 %v3712
    %v4460 = vunpack.c.l.b16 %v3713
    %v4461 = vunpack.c.h.b16 %v3713
    %v4462 = vunpack.c.l.b16 %v3714
    %v4463 = vunpack.c.h.b16 %v3714
    %v4464 = vunpack.c.l.b16 %v3715
    %v4465 = vunpack.c.h.b16 %v3715
    %v4466 = vunpack.c.l.b16 %v3716
    %v4467 = vunpack.c.h.b16 %v3716
    %v4468 = vunpack.c.l.b16 %v3717
    %v4469 = vunpack.c.h.b16 %v3717
    %v4470 = vunpack.c.l.b16 %v3718
    %v4471 = vunpack.c.h.b16 %v3718
    %v4472 = vunpack.c.l.b16 %v3719
    %v4473 = vunpack.c.h.b16 %v3719
    %v4474 = vunpack.c.l.b16 %v3720
    %v4475 = vunpack.c.h.b16 %v3720
    %v4476 = vunpack.c.l.b16 %v3721
    %v4477 = vunpack.c.h.b16 %v3721
    %v4478 = vunpack.c.l.b16 %v3722
    %v4479 = vunpack.c.h.b16 %v3722
    %v4480 = vunpack.c.l.b16 %v3723
    %v4481 = vunpack.c.h.b16 %v3723
    %v4482 = vunpack.c.l.b16 %v3724
    %v4483 = vunpack.c.h.b16 %v3724
    %v4484 = vunpack.c.l.b16 %v3725
    %v4485 = vunpack.c.h.b16 %v3725
    %v4486 = vunpack.c.l.b16 %v3726
    %v4487 = vunpack.c.h.b16 %v3726
    %v4488 = vunpack.c.l.b16 %v3727
    %v4489 = vunpack.c.h.b16 %v3727
    %v4490 = vunpack.c.l.b16 %v3728
    %v4491 = vunpack.c.h.b16 %v3728
    %v4492 = vunpack.c.l.b16 %v3729
    %v4493 = vunpack.c.h.b16 %v3729
    %v4494 = vunpack.c.l.b16 %v3730
    %v4495 = vunpack.c.h.b16 %v3730
    %v4496 = vunpack.c.l.b16 %v3731
    %v4497 = vunpack.c.h.b16 %v3731
    %v4498 = vunpack.c.l.b16 %v3732
    %v4499 = vunpack.c.h.b16 %v3732
    %v4500 = vunpack.c.l.b16 %v3733
    %v4501 = vunpack.c.h.b16 %v3733
    %v4502 = vunpack.c.l.b16 %v3734
    %v4503 = vunpack.c.h.b16 %v3734
    %v4504 = vunpack.c.l.b16 %v3735
    %v4505 = vunpack.c.h.b16 %v3735
    %v4506 = vunpack.c.l.b16 %v3736
    %v4507 = vunpack.c.h.b16 %v3736
    %v4508 = vunpack.c.l.b16 %v3737
    %v4509 = vunpack.c.h.b16 %v3737
    %v4510 = vunpack.c.l.b16 %v3738
    %v4511 = vunpack.c.h.b16 %v3738
    %v4512 = vunpack.c.l.b16 %v3739
    %v4513 = vunpack.c.h.b16 %v3739
    %v4514 = vunpack.c.l.b16 %v3740
    %v4515 = vunpack.c.h.b16 %v3740
    %v4516 = vunpack.c.l.b16 %v3741
    %v4517 = vunpack.c.h.b16 %v3741
    %v4518 = vunpack.c.l.b16 %v3742
    %v4519 = vunpack.c.h.b16 %v3742
    %v4520 = vunpack.c.l.b16 %v3743
    %v4521 = vunpack.c.h.b16 %v3743
    %v4522 = vunpack.c.l.b16 %v3744
    %v4523 = vunpack.c.h.b16 %v3744
    %v4524 = vunpack.c.l.b16 %v3745
    %v4525 = vunpack.c.h.b16 %v3745
    %v4526 = vunpack.c.l.b16 %v3746
    %v4527 = vunpack.c.h.b16 %v3746
    %v4528 = vunpack.c.l.b16 %v3747
    %v4529 = vunpack.c.h.b16 %v3747
    %v4530 = vunpack.c.l.b16 %v3748
    %v4531 = vunpack.c.h.b16 %v3748
    %v4532 = vunpack.c.l.b16 %v3749
    %v4533 = vunpack.c.h.b16 %v3749
    %v4534 = vunpack.c.l.b16 %v3750
    %v4535 = vunpack.c.h.b16 %v3750
    %v4536 = vunpack.c.l.b16 %v3751
    %v4537 = vunpack.c.h.b16 %v3751
    %v4538 = vunpack.c.l.b16 %v3752
    %v4539 = vunpack.c.h.b16 %v3752
    %v4540 = vunpack.c.l.b16 %v3753
    %v4541 = vunpack.c.h.b16 %v3753
    %v4542 = vunpack.c.l.b16 %v3754
    %v4543 = vunpack.c.h.b16 %v3754
    %v4544 = vunpack.c.l.b16 %v3755
    %v4545 = vunpack.c.h.b16 %v3755
    %v4546 = vpack.c.b16 %v4038, %v4034
    %v4547 = vpack.c.b16 %v4039, %v4035
    %v4548 = vpack.c.b16 %v4040, %v4036
    %v4549 = vpack.c.b16 %v4041, %v4037
    %v4550 = vpack.c.b16 %v4046, %v4042
    %v4551 = vpack.c.b16 %v4047, %v4043
    %v4552 = vpack.c.b16 %v4048, %v4044
    %v4553 = vpack.c.b16 %v4049, %v4045
    %v4554 = vpack.c.b16 %v4054, %v4050
    %v4555 = vpack.c.b16 %v4055, %v4051
    %v4556 = vpack.c.b16 %v4056, %v4052
    %v4557 = vpack.c.b16 %v4057, %v4053
    %v4558 = vpack.c.b16 %v4062, %v4058
    %v4559 = vpack.c.b16 %v4063, %v4059
    %v4560 = vpack.c.b16 %v4064, %v4060
    %v4561 = vpack.c.b16 %v4065, %v4061
    %v4562 = vpack.c.b16 %v4070, %v4066
    %v4563 = vpack.c.b16 %v4071, %v4067
    %v4564 = vpack.c.b16 %v4072, %v4068
    %v4565 = vpack.c.b16 %v4073, %v4069
    %v4566 = vpack.c.b16 %v4078, %v4074
    %v4567 = vpack.c.b16 %v4079, %v4075
    %v4568 = vpack.c.b16 %v4080, %v4076
    %v4569 = vpack.c.b16 %v4081, %v4077
    %v4570 = vpack.c.b16 %v4086, %v4082
    %v4571 = vpack.c.b16 %v4087, %v4083
    %v4572 = vpack.c.b16 %v4088, %v4084
    %v4573 = vpack.c.b16 %v4089, %v4085
    %v4574 = vpack.c.b16 %v4094, %v4090
    %v4575 = vpack.c.b16 %v4095, %v4091
    %v4576 = vpack.c.b16 %v4096, %v4092
    %v4577 = vpack.c.b16 %v4097, %v4093
    %v4578 = vpack.c.b16 %v4102, %v4098
    %v4579 = vpack.c.b16 %v4103, %v4099
    %v4580 = vpack.c.b16 %v4104, %v4100
    %v4581 = vpack.c.b16 %v4105, %v4101
    %v4582 = vpack.c.b16 %v4110, %v4106
    %v4583 = vpack.c.b16 %v4111, %v4107
    %v4584 = vpack.c.b16 %v4112, %v4108
    %v4585 = vpack.c.b16 %v4113, %v4109
    %v4586 = vpack.c.b16 %v4118, %v4114
    %v4587 = vpack.c.b16 %v4119, %v4115
    %v4588 = vpack.c.b16 %v4120, %v4116
    %v4589 = vpack.c.b16 %v4121, %v4117
    %v4590 = vpack.c.b16 %v4126, %v4122
    %v4591 = vpack.c.b16 %v4127, %v4123
    %v4592 = vpack.c.b16 %v4128, %v4124
    %v4593 = vpack.c.b16 %v4129, %v4125
    %v4594 = vpack.c.b16 %v4134, %v4130
    %v4595 = vpack.c.b16 %v4135, %v4131
    %v4596 = vpack.c.b16 %v4136, %v4132
    %v4597 = vpack.c.b16 %v4137, %v4133
    %v4598 = vpack.c.b16 %v4142, %v4138
    %v4599 = vpack.c.b16 %v4143, %v4139
    %v4600 = vpack.c.b16 %v4144, %v4140
    %v4601 = vpack.c.b16 %v4145, %v4141
    %v4602 = vpack.c.b16 %v4150, %v4146
    %v4603 = vpack.c.b16 %v4151, %v4147
    %v4604 = vpack.c.b16 %v4152, %v4148
    %v4605 = vpack.c.b16 %v4153, %v4149
    %v4606 = vpack.c.b16 %v4158, %v4154
    %v4607 = vpack.c.b16 %v4159, %v4155
    %v4608 = vpack.c.b16 %v4160, %v4156
    %v4609 = vpack.c.b16 %v4161, %v4157
    %v4610 = vpack.c.b16 %v4166, %v4162
    %v4611 = vpack.c.b16 %v4167, %v4163
    %v4612 = vpack.c.b16 %v4168, %v4164
    %v4613 = vpack.c.b16 %v4169, %v4165
    %v4614 = vpack.c.b16 %v4174, %v4170
    %v4615 = vpack.c.b16 %v4175, %v4171
    %v4616 = vpack.c.b16 %v4176, %v4172
    %v4617 = vpack.c.b16 %v4177, %v4173
    %v4618 = vpack.c.b16 %v4182, %v4178
    %v4619 = vpack.c.b16 %v4183, %v4179
    %v4620 = vpack.c.b16 %v4184, %v4180
    %v4621 = vpack.c.b16 %v4185, %v4181
    %v4622 = vpack.c.b16 %v4190, %v4186
    %v4623 = vpack.c.b16 %v4191, %v4187
    %v4624 = vpack.c.b16 %v4192, %v4188
    %v4625 = vpack.c.b16 %v4193, %v4189
    %v4626 = vpack.c.b16 %v4198, %v4194
    %v4627 = vpack.c.b16 %v4199, %v4195
    %v4628 = vpack.c.b16 %v4200, %v4196
    %v4629 = vpack.c.b16 %v4201, %v4197
    %v4630 = vpack.c.b16 %v4206, %v4202
    %v4631 = vpack.c.b16 %v4207, %v4203
    %v4632 = vpack.c.b16 %v4208, %v4204
    %v4633 = vpack.c.b16 %v4209, %v4205
    %v4634 = vpack.c.b16 %v4214, %v4210
    %v4635 = vpack.c.b16 %v4215, %v4211
    %v4636 = vpack.c.b16 %v4216, %v4212
    %v4637 = vpack.c.b16 %v4217, %v4213
    %v4638 = vpack.c.b16 %v4222, %v4218
    %v4639 = vpack.c.b16 %v4223, %v4219
    %v4640 = vpack.c.b16 %v4224, %v4220
    %v4641 = vpack.c.b16 %v4225, %v4221
    %v4642 = vpack.c.b16 %v4230, %v4226
    %v4643 = vpack.c.b16 %v4231, %v4227
    %v4644 = vpack.c.b16 %v4232, %v4228
    %v4645 = vpack.c.b16 %v4233, %v4229
    %v4646 = vpack.c.b16 %v4238, %v4234
    %v4647 = vpack.c.b16 %v4239, %v4235
    %v4648 = vpack.c.b16 %v4240, %v4236
    %v4649 = vpack.c.b16 %v4241, %v4237
    %v4650 = vpack.c.b16 %v4246, %v4242
    %v4651 = vpack.c.b16 %v4247, %v4243
    %v4652 = vpack.c.b16 %v4248, %v4244
    %v4653 = vpack.c.b16 %v4249, %v4245
    %v4654 = vpack.c.b16 %v4254, %v4250
    %v4655 = vpack.c.b16 %v4255, %v4251
    %v4656 = vpack.c.b16 %v4256, %v4252
    %v4657 = vpack.c.b16 %v4257, %v4253
    %v4658 = vpack.c.b16 %v4262, %v4258
    %v4659 = vpack.c.b16 %v4263, %v4259
    %v4660 = vpack.c.b16 %v4264, %v4260
    %v4661 = vpack.c.b16 %v4265, %v4261
    %v4662 = vpack.c.b16 %v4270, %v4266
    %v4663 = vpack.c.b16 %v4271, %v4267
    %v4664 = vpack.c.b16 %v4272, %v4268
    %v4665 = vpack.c.b16 %v4273, %v4269
    %v4666 = vpack.c.b16 %v4278, %v4274
    %v4667 = vpack.c.b16 %v4279, %v4275
    %v4668 = vpack.c.b16 %v4280, %v4276
    %v4669 = vpack.c.b16 %v4281, %v4277
    %v4670 = vpack.c.b16 %v4286, %v4282
    %v4671 = vpack.c.b16 %v4287, %v4283
    %v4672 = vpack.c.b16 %v4288, %v4284
    %v4673 = vpack.c.b16 %v4289, %v4285
    %v4674 = vpack.c.b16 %v4294, %v4290
    %v4675 = vpack.c.b16 %v4295, %v4291
    %v4676 = vpack.c.b16 %v4296, %v4292
    %v4677 = vpack.c.b16 %v4297, %v4293
    %v4678 = vpack.c.b16 %v4302, %v4298
    %v4679 = vpack.c.b16 %v4303, %v4299
    %v4680 = vpack.c.b16 %v4304, %v4300
    %v4681 = vpack.c.b16 %v4305, %v4301
    %v4682 = vpack.c.b16 %v4310, %v4306
    %v4683 = vpack.c.b16 %v4311, %v4307
    %v4684 = vpack.c.b16 %v4312, %v4308
    %v4685 = vpack.c.b16 %v4313, %v4309
    %v4686 = vpack.c.b16 %v4318, %v4314
    %v4687 = vpack.c.b16 %v4319, %v4315
    %v4688 = vpack.c.b16 %v4320, %v4316
    %v4689 = vpack.c.b16 %v4321, %v4317
    %v4690 = vpack.c.b16 %v4326, %v4322
    %v4691 = vpack.c.b16 %v4327, %v4323
    %v4692 = vpack.c.b16 %v4328, %v4324
    %v4693 = vpack.c.b16 %v4329, %v4325
    %v4694 = vpack.c.b16 %v4334, %v4330
    %v4695 = vpack.c.b16 %v4335, %v4331
    %v4696 = vpack.c.b16 %v4336, %v4332
    %v4697 = vpack.c.b16 %v4337, %v4333
    %v4698 = vpack.c.b16 %v4342, %v4338
    %v4699 = vpack.c.b16 %v4343, %v4339
    %v4700 = vpack.c.b16 %v4344, %v4340
    %v4701 = vpack.c.b16 %v4345, %v4341
    %v4702 = vpack.c.b16 %v4350, %v4346
    %v4703 = vpack.c.b16 %v4351, %v4347
    %v4704 = vpack.c.b16 %v4352, %v4348
    %v4705 = vpack.c.b16 %v4353, %v4349
    %v4706 = vpack.c.b16 %v4358, %v4354
    %v4707 = vpack.c.b16 %v4359, %v4355
    %v4708 = vpack.c.b16 %v4360, %v4356
    %v4709 = vpack.c.b16 %v4361, %v4357
    %v4710 = vpack.c.b16 %v4366, %v4362
    %v4711 = vpack.c.b16 %v4367, %v4363
    %v4712 = vpack.c.b16 %v4368, %v4364
    %v4713 = vpack.c.b16 %v4369, %v4365
    %v4714 = vpack.c.b16 %v4374, %v4370
    %v4715 = vpack.c.b16 %v4375, %v4371
    %v4716 = vpack.c.b16 %v4376, %v4372
    %v4717 = vpack.c.b16 %v4377, %v4373
    %v4718 = vpack.c.b16 %v4382, %v4378
    %v4719 = vpack.c.b16 %v4383, %v4379
    %v4720 = vpack.c.b16 %v4384, %v4380
    %v4721 = vpack.c.b16 %v4385, %v4381
    %v4722 = vpack.c.b16 %v4390, %v4386
    %v4723 = vpack.c.b16 %v4391, %v4387
    %v4724 = vpack.c.b16 %v4392, %v4388
    %v4725 = vpack.c.b16 %v4393, %v4389
    %v4726 = vpack.c.b16 %v4398, %v4394
    %v4727 = vpack.c.b16 %v4399, %v4395
    %v4728 = vpack.c.b16 %v4400, %v4396
    %v4729 = vpack.c.b16 %v4401, %v4397
    %v4730 = vpack.c.b16 %v4406, %v4402
    %v4731 = vpack.c.b16 %v4407, %v4403
    %v4732 = vpack.c.b16 %v4408, %v4404
    %v4733 = vpack.c.b16 %v4409, %v4405
    %v4734 = vpack.c.b16 %v4414, %v4410
    %v4735 = vpack.c.b16 %v4415, %v4411
    %v4736 = vpack.c.b16 %v4416, %v4412
    %v4737 = vpack.c.b16 %v4417, %v4413
    %v4738 = vpack.c.b16 %v4422, %v4418
    %v4739 = vpack.c.b16 %v4423, %v4419
    %v4740 = vpack.c.b16 %v4424, %v4420
    %v4741 = vpack.c.b16 %v4425, %v4421
    %v4742 = vpack.c.b16 %v4430, %v4426
    %v4743 = vpack.c.b16 %v4431, %v4427
    %v4744 = vpack.c.b16 %v4432, %v4428
    %v4745 = vpack.c.b16 %v4433, %v4429
    %v4746 = vpack.c.b16 %v4438, %v4434
    %v4747 = vpack.c.b16 %v4439, %v4435
    %v4748 = vpack.c.b16 %v4440, %v4436
    %v4749 = vpack.c.b16 %v4441, %v4437
    %v4750 = vpack.c.b16 %v4446, %v4442
    %v4751 = vpack.c.b16 %v4447, %v4443
    %v4752 = vpack.c.b16 %v4448, %v4444
    %v4753 = vpack.c.b16 %v4449, %v4445
    %v4754 = vpack.c.b16 %v4454, %v4450
    %v4755 = vpack.c.b16 %v4455, %v4451
    %v4756 = vpack.c.b16 %v4456, %v4452
    %v4757 = vpack.c.b16 %v4457, %v4453
    %v4758 = vpack.c.b16 %v4462, %v4458
    %v4759 = vpack.c.b16 %v4463, %v4459
    %v4760 = vpack.c.b16 %v4464, %v4460
    %v4761 = vpack.c.b16 %v4465, %v4461
    %v4762 = vpack.c.b16 %v4470, %v4466
    %v4763 = vpack.c.b16 %v4471, %v4467
    %v4764 = vpack.c.b16 %v4472, %v4468
    %v4765 = vpack.c.b16 %v4473, %v4469
    %v4766 = vpack.c.b16 %v4478, %v4474
    %v4767 = vpack.c.b16 %v4479, %v4475
    %v4768 = vpack.c.b16 %v4480, %v4476
    %v4769 = vpack.c.b16 %v4481, %v4477
    %v4770 = vpack.c.b16 %v4486, %v4482
    %v4771 = vpack.c.b16 %v4487, %v4483
    %v4772 = vpack.c.b16 %v4488, %v4484
    %v4773 = vpack.c.b16 %v4489, %v4485
    %v4774 = vpack.c.b16 %v4494, %v4490
    %v4775 = vpack.c.b16 %v4495, %v4491
    %v4776 = vpack.c.b16 %v4496, %v4492
    %v4777 = vpack.c.b16 %v4497, %v4493
    %v4778 = vpack.c.b16 %v4502, %v4498
    %v4779 = vpack.c.b16 %v4503, %v4499
    %v4780 = vpack.c.b16 %v4504, %v4500
    %v4781 = vpack.c.b16 %v4505, %v4501
    %v4782 = vpack.c.b16 %v4510, %v4506
    %v4783 = vpack.c.b16 %v4511, %v4507
    %v4784 = vpack.c.b16 %v4512, %v4508
    %v4785 = vpack.c.b16 %v4513, %v4509
    %v4786 = vpack.c.b16 %v4518, %v4514
    %v4787 = vpack.c.b16 %v4519, %v4515
    %v4788 = vpack.c.b16 %v4520, %v4516
    %v4789 = vpack.c.b16 %v4521, %v4517
    %v4790 = vpack.c.b16 %v4526, %v4522
    %v4791 = vpack.c.b16 %v4527, %v4523
    %v4792 = vpack.c.b16 %v4528, %v4524
    %v4793 = vpack.c.b16 %v4529, %v4525
    %v4794 = vpack.c.b16 %v4534, %v4530
    %v4795 = vpack.c.b16 %v4535, %v4531
    %v4796 = vpack.c.b16 %v4536, %v4532
    %v4797 = vpack.c.b16 %v4537, %v4533
    %v4798 = vpack.c.b16 %v4542, %v4538
    %v4799 = vpack.c.b16 %v4543, %v4539
    %v4800 = vpack.c.b16 %v4544, %v4540
    %v4801 = vpack.c.b16 %v4545, %v4541
    %5058 = vmatprep.subr.bf16.mxu0 %v4547
    %5059 = vmatpush1.bf16.msra.mxu0 %v4546
    %5060 = vmatprep.subr.bf16.mxu0 %v4551
    %5061 = vmatpush1.bf16.msra.mxu0 %v4550
    %5062 = vmatprep.subr.bf16.mxu0 %v4555
    %5063 = vmatpush1.bf16.msra.mxu0 %v4554
    %5064 = vmatprep.subr.bf16.mxu0 %v4559
    %5065 = vmatpush1.bf16.msra.mxu0 %v4558
    %5066 = vmatprep.subr.bf16.mxu0 %v4563
    %5067 = vmatpush1.bf16.msra.mxu0 %v4562
    %5068 = vmatprep.subr.bf16.mxu0 %v4567
    %5069 = vmatpush1.bf16.msra.mxu0 %v4566
    %5070 = vmatprep.subr.bf16.mxu0 %v4571
    %5071 = vmatpush1.bf16.msra.mxu0 %v4570
    %5072 = vmatprep.subr.bf16.mxu0 %v4575
    %5073 = vmatpush1.bf16.msra.mxu0 %v4574
    %5074 = vmatprep.subr.bf16.mxu0 %v4579
    %5075 = vmatpush1.bf16.msra.mxu0 %v4578
    %5076 = vmatprep.subr.bf16.mxu0 %v4583
    %5077 = vmatpush1.bf16.msra.mxu0 %v4582
    %5078 = vmatprep.subr.bf16.mxu0 %v4587
    %5079 = vmatpush1.bf16.msra.mxu0 %v4586
    %5080 = vmatprep.subr.bf16.mxu0 %v4591
    %5081 = vmatpush1.bf16.msra.mxu0 %v4590
    %5082 = vmatprep.subr.bf16.mxu0 %v4595
    %5083 = vmatpush1.bf16.msra.mxu0 %v4594
    %5084 = vmatprep.subr.bf16.mxu0 %v4599
    %5085 = vmatpush1.bf16.msra.mxu0 %v4598
    %5086 = vmatprep.subr.bf16.mxu0 %v4603
    %5087 = vmatpush1.bf16.msra.mxu0 %v4602
    %5088 = vmatprep.subr.bf16.mxu0 %v4607
    %5089 = vmatpush1.bf16.msra.mxu0 %v4606
    %5090 = vmatprep.mubr.bf16.mxu0 %v3485
    %5091 = vmatmul.mubr.bf16.gmra.mrb[0].mxu0 %v3484
    %v5092 = vpop.f32.mrb[0].mxu0
    %v5093 = vadd.f32 %v3761, %v5092
    %v5094 = vpop.f32.mrb[0].mxu0
    %v5095 = vadd.f32 %v3765, %v5094
    %v5096 = vpop.f32.mrb[0].mxu0
    %v5097 = vadd.f32 %v3761, %v5096
    %v5098 = vpop.f32.mrb[0].mxu0
    %v5099 = vadd.f32 %v3765, %v5098
    %5100 = vmatprep.mubr.bf16.mxu0 %v3493
    %5101 = vmatmul.mubr.bf16.gmra.mrb[0].mxu0 %v3492
    %v5102 = vpop.f32.mrb[0].mxu0
    %v5103 = vadd.f32 %v3761, %v5102
    %v5104 = vpop.f32.mrb[0].mxu0
    %v5105 = vadd.f32 %v3765, %v5104
    %v5106 = vpop.f32.mrb[0].mxu0
    %v5107 = vadd.f32 %v3761, %v5106
    %v5108 = vpop.f32.mrb[0].mxu0
    %v5109 = vadd.f32 %v3765, %v5108
    %5110 = vdwg.mxu0
    %5111 = vmatprep.subr.bf16.mxu0 %v4611
    %5112 = vmatpush1.bf16.msra.mxu0 %v4610
    %5113 = vmatprep.subr.bf16.mxu0 %v4615
    %5114 = vmatpush1.bf16.msra.mxu0 %v4614
    %5115 = vmatprep.subr.bf16.mxu0 %v4619
    %5116 = vmatpush1.bf16.msra.mxu0 %v4618
    %5117 = vmatprep.subr.bf16.mxu0 %v4623
    %5118 = vmatpush1.bf16.msra.mxu0 %v4622
    %5119 = vmatprep.subr.bf16.mxu0 %v4627
    %5120 = vmatpush1.bf16.msra.mxu0 %v4626
    %5121 = vmatprep.subr.bf16.mxu0 %v4631
    %5122 = vmatpush1.bf16.msra.mxu0 %v4630
    %5123 = vmatprep.subr.bf16.mxu0 %v4635
    %5124 = vmatpush1.bf16.msra.mxu0 %v4634
    %5125 = vmatprep.subr.bf16.mxu0 %v4639
    %5126 = vmatpush1.bf16.msra.mxu0 %v4638
    %5127 = vmatprep.subr.bf16.mxu0 %v4643
    %5128 = vmatpush1.bf16.msra.mxu0 %v4642
    %5129 = vmatprep.subr.bf16.mxu0 %v4647
    %5130 = vmatpush1.bf16.msra.mxu0 %v4646
    %5131 = vmatprep.subr.bf16.mxu0 %v4651
    %5132 = vmatpush1.bf16.msra.mxu0 %v4650
    %5133 = vmatprep.subr.bf16.mxu0 %v4655
    %5134 = vmatpush1.bf16.msra.mxu0 %v4654
    %5135 = vmatprep.subr.bf16.mxu0 %v4659
    %5136 = vmatpush1.bf16.msra.mxu0 %v4658
    %5137 = vmatprep.subr.bf16.mxu0 %v4663
    %5138 = vmatpush1.bf16.msra.mxu0 %v4662
    %5139 = vmatprep.subr.bf16.mxu0 %v4667
    %5140 = vmatpush1.bf16.msra.mxu0 %v4666
    %5141 = vmatprep.subr.bf16.mxu0 %v4671
    %5142 = vmatpush1.bf16.msra.mxu0 %v4670
    %5143 = vmatprep.mubr.bf16.mxu0 %v3487
    %5144 = vmatmul.mubr.bf16.gmra.mrb[0].mxu0 %v3486
    %v5145 = vpop.f32.mrb[0].mxu0
    %v5146 = vadd.f32 %v5093, %v5145
    %v5147 = vpop.f32.mrb[0].mxu0
    %v5148 = vadd.f32 %v5095, %v5147
    %v5149 = vpop.f32.mrb[0].mxu0
    %v5150 = vadd.f32 %v5097, %v5149
    %v5151 = vpop.f32.mrb[0].mxu0
    %v5152 = vadd.f32 %v5099, %v5151
    %5153 = vmatprep.mubr.bf16.mxu0 %v3495
    %5154 = vmatmul.mubr.bf16.gmra.mrb[0].mxu0 %v3494
    %v5155 = vpop.f32.mrb[0].mxu0
    %v5156 = vadd.f32 %v5103, %v5155
    %v5157 = vpop.f32.mrb[0].mxu0
    %v5158 = vadd.f32 %v5105, %v5157
    %v5159 = vpop.f32.mrb[0].mxu0
    %v5160 = vadd.f32 %v5107, %v5159
    %v5161 = vpop.f32.mrb[0].mxu0
    %v5162 = vadd.f32 %v5109, %v5161
    %5163 = vdwg.mxu0
    %5164 = vmatprep.subr.bf16.mxu0 %v4675
    %5165 = vmatpush1.bf16.msra.mxu0 %v4674
    %5166 = vmatprep.subr.bf16.mxu0 %v4679
    %5167 = vmatpush1.bf16.msra.mxu0 %v4678
    %5168 = vmatprep.subr.bf16.mxu0 %v4683
    %5169 = vmatpush1.bf16.msra.mxu0 %v4682
    %5170 = vmatprep.subr.bf16.mxu0 %v4687
    %5171 = vmatpush1.bf16.msra.mxu0 %v4686
    %5172 = vmatprep.subr.bf16.mxu0 %v4691
    %5173 = vmatpush1.bf16.msra.mxu0 %v4690
    %5174 = vmatprep.subr.bf16.mxu0 %v4695
    %5175 = vmatpush1.bf16.msra.mxu0 %v4694
    %5176 = vmatprep.subr.bf16.mxu0 %v4699
    %5177 = vmatpush1.bf16.msra.mxu0 %v4698
    %5178 = vmatprep.subr.bf16.mxu0 %v4703
    %5179 = vmatpush1.bf16.msra.mxu0 %v4702
    %5180 = vmatprep.subr.bf16.mxu0 %v4707
    %5181 = vmatpush1.bf16.msra.mxu0 %v4706
    %5182 = vmatprep.subr.bf16.mxu0 %v4711
    %5183 = vmatpush1.bf16.msra.mxu0 %v4710
    %5184 = vmatprep.subr.bf16.mxu0 %v4715
    %5185 = vmatpush1.bf16.msra.mxu0 %v4714
    %5186 = vmatprep.subr.bf16.mxu0 %v4719
    %5187 = vmatpush1.bf16.msra.mxu0 %v4718
    %5188 = vmatprep.subr.bf16.mxu0 %v4723
    %5189 = vmatpush1.bf16.msra.mxu0 %v4722
    %5190 = vmatprep.subr.bf16.mxu0 %v4727
    %5191 = vmatpush1.bf16.msra.mxu0 %v4726
    %5192 = vmatprep.subr.bf16.mxu0 %v4731
    %5193 = vmatpush1.bf16.msra.mxu0 %v4730
    %5194 = vmatprep.subr.bf16.mxu0 %v4735
    %5195 = vmatpush1.bf16.msra.mxu0 %v4734
    %5196 = vmatprep.mubr.bf16.mxu0 %v3489
    %5197 = vmatmul.mubr.bf16.gmra.mrb[0].mxu0 %v3488
    %v5198 = vpop.f32.mrb[0].mxu0
    %v5199 = vadd.f32 %v5146, %v5198
    %v5200 = vpop.f32.mrb[0].mxu0
    %v5201 = vadd.f32 %v5148, %v5200
    %v5202 = vpop.f32.mrb[0].mxu0
    %v5203 = vadd.f32 %v5150, %v5202
    %v5204 = vpop.f32.mrb[0].mxu0
    %v5205 = vadd.f32 %v5152, %v5204
    %5206 = vmatprep.mubr.bf16.mxu0 %v3497
    %5207 = vmatmul.mubr.bf16.gmra.mrb[0].mxu0 %v3496
    %v5208 = vpop.f32.mrb[0].mxu0
    %v5209 = vadd.f32 %v5156, %v5208
    %v5210 = vpop.f32.mrb[0].mxu0
    %v5211 = vadd.f32 %v5158, %v5210
    %v5212 = vpop.f32.mrb[0].mxu0
    %v5213 = vadd.f32 %v5160, %v5212
    %v5214 = vpop.f32.mrb[0].mxu0
    %v5215 = vadd.f32 %v5162, %v5214
    %5216 = vdwg.mxu0
    %5217 = vmatprep.subr.bf16.mxu0 %v4739
    %5218 = vmatpush1.bf16.msra.mxu0 %v4738
    %5219 = vmatprep.subr.bf16.mxu0 %v4743
    %5220 = vmatpush1.bf16.msra.mxu0 %v4742
    %5221 = vmatprep.subr.bf16.mxu0 %v4747
    %5222 = vmatpush1.bf16.msra.mxu0 %v4746
    %5223 = vmatprep.subr.bf16.mxu0 %v4751
    %5224 = vmatpush1.bf16.msra.mxu0 %v4750
    %5225 = vmatprep.subr.bf16.mxu0 %v4755
    %5226 = vmatpush1.bf16.msra.mxu0 %v4754
    %5227 = vmatprep.subr.bf16.mxu0 %v4759
    %5228 = vmatpush1.bf16.msra.mxu0 %v4758
    %5229 = vmatprep.subr.bf16.mxu0 %v4763
    %5230 = vmatpush1.bf16.msra.mxu0 %v4762
    %5231 = vmatprep.subr.bf16.mxu0 %v4767
    %5232 = vmatpush1.bf16.msra.mxu0 %v4766
    %5233 = vmatprep.subr.bf16.mxu0 %v4771
    %5234 = vmatpush1.bf16.msra.mxu0 %v4770
    %5235 = vmatprep.subr.bf16.mxu0 %v4775
    %5236 = vmatpush1.bf16.msra.mxu0 %v4774
    %5237 = vmatprep.subr.bf16.mxu0 %v4779
    %5238 = vmatpush1.bf16.msra.mxu0 %v4778
    %5239 = vmatprep.subr.bf16.mxu0 %v4783
    %5240 = vmatpush1.bf16.msra.mxu0 %v4782
    %5241 = vmatprep.subr.bf16.mxu0 %v4787
    %5242 = vmatpush1.bf16.msra.mxu0 %v4786
    %5243 = vmatprep.subr.bf16.mxu0 %v4791
    %5244 = vmatpush1.bf16.msra.mxu0 %v4790
    %5245 = vmatprep.subr.bf16.mxu0 %v4795
    %5246 = vmatpush1.bf16.msra.mxu0 %v4794
    %5247 = vmatprep.subr.bf16.mxu0 %v4799
    %5248 = vmatpush1.bf16.msra.mxu0 %v4798
    %5249 = vmatprep.mubr.bf16.mxu0 %v3491
    %5250 = vmatmul.mubr.bf16.gmra.mrb[0].mxu0 %v3490
    %v5251 = vpop.f32.mrb[0].mxu0
    %v5252 = vadd.f32 %v5199, %v5251
    %v5253 = vpop.f32.mrb[0].mxu0
    %v5254 = vadd.f32 %v5201, %v5253
    %v5255 = vpop.f32.mrb[0].mxu0
    %v5256 = vadd.f32 %v5203, %v5255
    %v5257 = vpop.f32.mrb[0].mxu0
    %v5258 = vadd.f32 %v5205, %v5257
    %5259 = vmatprep.mubr.bf16.mxu0 %v3499
    %5260 = vmatmul.mubr.bf16.gmra.mrb[0].mxu0 %v3498
    %v5261 = vpop.f32.mrb[0].mxu0
    %v5262 = vadd.f32 %v5209, %v5261
    %v5263 = vpop.f32.mrb[0].mxu0
    %v5264 = vadd.f32 %v5211, %v5263
    %v5265 = vpop.f32.mrb[0].mxu0
    %v5266 = vadd.f32 %v5213, %v5265
    %v5267 = vpop.f32.mrb[0].mxu0
    %v5268 = vadd.f32 %v5215, %v5267
    %5269 = vdwg.mxu0
    %5270 = vmatprep.subr.bf16.mxu0 %v4549
    %5271 = vmatpush1.bf16.msra.mxu0 %v4548
    %5272 = vmatprep.subr.bf16.mxu0 %v4553
    %5273 = vmatpush1.bf16.msra.mxu0 %v4552
    %5274 = vmatprep.subr.bf16.mxu0 %v4557
    %5275 = vmatpush1.bf16.msra.mxu0 %v4556
    %5276 = vmatprep.subr.bf16.mxu0 %v4561
    %5277 = vmatpush1.bf16.msra.mxu0 %v4560
    %5278 = vmatprep.subr.bf16.mxu0 %v4565
    %5279 = vmatpush1.bf16.msra.mxu0 %v4564
    %5280 = vmatprep.subr.bf16.mxu0 %v4569
    %5281 = vmatpush1.bf16.msra.mxu0 %v4568
    %5282 = vmatprep.subr.bf16.mxu0 %v4573
    %5283 = vmatpush1.bf16.msra.mxu0 %v4572
    %5284 = vmatprep.subr.bf16.mxu0 %v4577
    %5285 = vmatpush1.bf16.msra.mxu0 %v4576
    %5286 = vmatprep.subr.bf16.mxu0 %v4581
    %5287 = vmatpush1.bf16.msra.mxu0 %v4580
    %5288 = vmatprep.subr.bf16.mxu0 %v4585
    %5289 = vmatpush1.bf16.msra.mxu0 %v4584
    %5290 = vmatprep.subr.bf16.mxu0 %v4589
    %5291 = vmatpush1.bf16.msra.mxu0 %v4588
    %5292 = vmatprep.subr.bf16.mxu0 %v4593
    %5293 = vmatpush1.bf16.msra.mxu0 %v4592
    %5294 = vmatprep.subr.bf16.mxu0 %v4597
    %5295 = vmatpush1.bf16.msra.mxu0 %v4596
    %5296 = vmatprep.subr.bf16.mxu0 %v4601
    %5297 = vmatpush1.bf16.msra.mxu0 %v4600
    %5298 = vmatprep.subr.bf16.mxu0 %v4605
    %5299 = vmatpush1.bf16.msra.mxu0 %v4604
    %5300 = vmatprep.subr.bf16.mxu0 %v4609
    %5301 = vmatpush1.bf16.msra.mxu0 %v4608
    %5302 = vmatprep.mubr.bf16.mxu0 %v3485
    %5303 = vmatmul.mubr.bf16.gmra.mrb[0].mxu0 %v3484
    %v5304 = vpop.f32.mrb[0].mxu0
    %v5305 = vadd.f32 %v3769, %v5304
    %v5306 = vpop.f32.mrb[0].mxu0
    %v5307 = vadd.f32 %v3773, %v5306
    %v5308 = vpop.f32.mrb[0].mxu0
    %v5309 = vadd.f32 %v3769, %v5308
    %v5310 = vpop.f32.mrb[0].mxu0
    %v5311 = vadd.f32 %v3773, %v5310
    %5312 = vmatprep.mubr.bf16.mxu0 %v3493
    %5313 = vmatmul.mubr.bf16.gmra.mrb[0].mxu0 %v3492
    %v5314 = vpop.f32.mrb[0].mxu0
    %v5315 = vadd.f32 %v3769, %v5314
    %v5316 = vpop.f32.mrb[0].mxu0
    %v5317 = vadd.f32 %v3773, %v5316
    %v5318 = vpop.f32.mrb[0].mxu0
    %v5319 = vadd.f32 %v3769, %v5318
    %v5320 = vpop.f32.mrb[0].mxu0
    %v5321 = vadd.f32 %v3773, %v5320
    %5322 = vdwg.mxu0
    %5323 = vmatprep.subr.bf16.mxu0 %v4613
    %5324 = vmatpush1.bf16.msra.mxu0 %v4612
    %5325 = vmatprep.subr.bf16.mxu0 %v4617
    %5326 = vmatpush1.bf16.msra.mxu0 %v4616
    %5327 = vmatprep.subr.bf16.mxu0 %v4621
    %5328 = vmatpush1.bf16.msra.mxu0 %v4620
    %5329 = vmatprep.subr.bf16.mxu0 %v4625
    %5330 = vmatpush1.bf16.msra.mxu0 %v4624
    %5331 = vmatprep.subr.bf16.mxu0 %v4629
    %5332 = vmatpush1.bf16.msra.mxu0 %v4628
    %5333 = vmatprep.subr.bf16.mxu0 %v4633
    %5334 = vmatpush1.bf16.msra.mxu0 %v4632
    %5335 = vmatprep.subr.bf16.mxu0 %v4637
    %5336 = vmatpush1.bf16.msra.mxu0 %v4636
    %5337 = vmatprep.subr.bf16.mxu0 %v4641
    %5338 = vmatpush1.bf16.msra.mxu0 %v4640
    %5339 = vmatprep.subr.bf16.mxu0 %v4645
    %5340 = vmatpush1.bf16.msra.mxu0 %v4644
    %5341 = vmatprep.subr.bf16.mxu0 %v4649
    %5342 = vmatpush1.bf16.msra.mxu0 %v4648
    %5343 = vmatprep.subr.bf16.mxu0 %v4653
    %5344 = vmatpush1.bf16.msra.mxu0 %v4652
    %5345 = vmatprep.subr.bf16.mxu0 %v4657
    %5346 = vmatpush1.bf16.msra.mxu0 %v4656
    %5347 = vmatprep.subr.bf16.mxu0 %v4661
    %5348 = vmatpush1.bf16.msra.mxu0 %v4660
    %5349 = vmatprep.subr.bf16.mxu0 %v4665
    %5350 = vmatpush1.bf16.msra.mxu0 %v4664
    %5351 = vmatprep.subr.bf16.mxu0 %v4669
    %5352 = vmatpush1.bf16.msra.mxu0 %v4668
    %5353 = vmatprep.subr.bf16.mxu0 %v4673
    %5354 = vmatpush1.bf16.msra.mxu0 %v4672
    %5355 = vmatprep.mubr.bf16.mxu0 %v3487
    %5356 = vmatmul.mubr.bf16.gmra.mrb[0].mxu0 %v3486
    %v5357 = vpop.f32.mrb[0].mxu0
    %v5358 = vadd.f32 %v5305, %v5357
    %v5359 = vpop.f32.mrb[0].mxu0
    %v5360 = vadd.f32 %v5307, %v5359
    %v5361 = vpop.f32.mrb[0].mxu0
    %v5362 = vadd.f32 %v5309, %v5361
    %v5363 = vpop.f32.mrb[0].mxu0
    %v5364 = vadd.f32 %v5311, %v5363
    %5365 = vmatprep.mubr.bf16.mxu0 %v3495
    %5366 = vmatmul.mubr.bf16.gmra.mrb[0].mxu0 %v3494
    %v5367 = vpop.f32.mrb[0].mxu0
    %v5368 = vadd.f32 %v5315, %v5367
    %v5369 = vpop.f32.mrb[0].mxu0
    %v5370 = vadd.f32 %v5317, %v5369
    %v5371 = vpop.f32.mrb[0].mxu0
    %v5372 = vadd.f32 %v5319, %v5371
    %v5373 = vpop.f32.mrb[0].mxu0
    %v5374 = vadd.f32 %v5321, %v5373
    %5375 = vdwg.mxu0
    %5376 = vmatprep.subr.bf16.mxu0 %v4677
    %5377 = vmatpush1.bf16.msra.mxu0 %v4676
    %5378 = vmatprep.subr.bf16.mxu0 %v4681
    %5379 = vmatpush1.bf16.msra.mxu0 %v4680
    %5380 = vmatprep.subr.bf16.mxu0 %v4685
    %5381 = vmatpush1.bf16.msra.mxu0 %v4684
    %5382 = vmatprep.subr.bf16.mxu0 %v4689
    %5383 = vmatpush1.bf16.msra.mxu0 %v4688
    %5384 = vmatprep.subr.bf16.mxu0 %v4693
    %5385 = vmatpush1.bf16.msra.mxu0 %v4692
    %5386 = vmatprep.subr.bf16.mxu0 %v4697
    %5387 = vmatpush1.bf16.msra.mxu0 %v4696
    %5388 = vmatprep.subr.bf16.mxu0 %v4701
    %5389 = vmatpush1.bf16.msra.mxu0 %v4700
    %5390 = vmatprep.subr.bf16.mxu0 %v4705
    %5391 = vmatpush1.bf16.msra.mxu0 %v4704
    %5392 = vmatprep.subr.bf16.mxu0 %v4709
    %5393 = vmatpush1.bf16.msra.mxu0 %v4708
    %5394 = vmatprep.subr.bf16.mxu0 %v4713
    %5395 = vmatpush1.bf16.msra.mxu0 %v4712
    %5396 = vmatprep.subr.bf16.mxu0 %v4717
    %5397 = vmatpush1.bf16.msra.mxu0 %v4716
    %5398 = vmatprep.subr.bf16.mxu0 %v4721
    %5399 = vmatpush1.bf16.msra.mxu0 %v4720
    %5400 = vmatprep.subr.bf16.mxu0 %v4725
    %5401 = vmatpush1.bf16.msra.mxu0 %v4724
    %5402 = vmatprep.subr.bf16.mxu0 %v4729
    %5403 = vmatpush1.bf16.msra.mxu0 %v4728
    %5404 = vmatprep.subr.bf16.mxu0 %v4733
    %5405 = vmatpush1.bf16.msra.mxu0 %v4732
    %5406 = vmatprep.subr.bf16.mxu0 %v4737
    %5407 = vmatpush1.bf16.msra.mxu0 %v4736
    %5408 = vmatprep.mubr.bf16.mxu0 %v3489
    %5409 = vmatmul.mubr.bf16.gmra.mrb[0].mxu0 %v3488
    %v5410 = vpop.f32.mrb[0].mxu0
    %v5411 = vadd.f32 %v5358, %v5410
    %v5412 = vpop.f32.mrb[0].mxu0
    %v5413 = vadd.f32 %v5360, %v5412
    %v5414 = vpop.f32.mrb[0].mxu0
    %v5415 = vadd.f32 %v5362, %v5414
    %v5416 = vpop.f32.mrb[0].mxu0
    %v5417 = vadd.f32 %v5364, %v5416
    %5418 = vmatprep.mubr.bf16.mxu0 %v3497
    %5419 = vmatmul.mubr.bf16.gmra.mrb[0].mxu0 %v3496
    %v5420 = vpop.f32.mrb[0].mxu0
    %v5421 = vadd.f32 %v5368, %v5420
    %v5422 = vpop.f32.mrb[0].mxu0
    %v5423 = vadd.f32 %v5370, %v5422
    %v5424 = vpop.f32.mrb[0].mxu0
    %v5425 = vadd.f32 %v5372, %v5424
    %v5426 = vpop.f32.mrb[0].mxu0
    %v5427 = vadd.f32 %v5374, %v5426
    %5428 = vdwg.mxu0
    %5429 = vmatprep.subr.bf16.mxu0 %v4741
    %5430 = vmatpush1.bf16.msra.mxu0 %v4740
    %5431 = vmatprep.subr.bf16.mxu0 %v4745
    %5432 = vmatpush1.bf16.msra.mxu0 %v4744
    %5433 = vmatprep.subr.bf16.mxu0 %v4749
    %5434 = vmatpush1.bf16.msra.mxu0 %v4748
    %5435 = vmatprep.subr.bf16.mxu0 %v4753
    %5436 = vmatpush1.bf16.msra.mxu0 %v4752
    %5437 = vmatprep.subr.bf16.mxu0 %v4757
    %5438 = vmatpush1.bf16.msra.mxu0 %v4756
    %5439 = vmatprep.subr.bf16.mxu0 %v4761
    %5440 = vmatpush1.bf16.msra.mxu0 %v4760
    %5441 = vmatprep.subr.bf16.mxu0 %v4765
    %5442 = vmatpush1.bf16.msra.mxu0 %v4764
    %5443 = vmatprep.subr.bf16.mxu0 %v4769
    %5444 = vmatpush1.bf16.msra.mxu0 %v4768
    %5445 = vmatprep.subr.bf16.mxu0 %v4773
    %5446 = vmatpush1.bf16.msra.mxu0 %v4772
    %5447 = vmatprep.subr.bf16.mxu0 %v4777
    %5448 = vmatpush1.bf16.msra.mxu0 %v4776
    %5449 = vmatprep.subr.bf16.mxu0 %v4781
    %5450 = vmatpush1.bf16.msra.mxu0 %v4780
    %5451 = vmatprep.subr.bf16.mxu0 %v4785
    %5452 = vmatpush1.bf16.msra.mxu0 %v4784
    %5453 = vmatprep.subr.bf16.mxu0 %v4789
    %5454 = vmatpush1.bf16.msra.mxu0 %v4788
    %5455 = vmatprep.subr.bf16.mxu0 %v4793
    %5456 = vmatpush1.bf16.msra.mxu0 %v4792
    %5457 = vmatprep.subr.bf16.mxu0 %v4797
    %5458 = vmatpush1.bf16.msra.mxu0 %v4796
    %5459 = vmatprep.subr.bf16.mxu0 %v4801
    %5460 = vmatpush1.bf16.msra.mxu0 %v4800
    %5461 = vmatprep.mubr.bf16.mxu0 %v3491
    %5462 = vmatmul.mubr.bf16.gmra.mrb[0].mxu0 %v3490
    %v5463 = vpop.f32.mrb[0].mxu0
    %v5464 = vadd.f32 %v5411, %v5463
    %v5465 = vpop.f32.mrb[0].mxu0
    %v5466 = vadd.f32 %v5413, %v5465
    %v5467 = vpop.f32.mrb[0].mxu0
    %v5468 = vadd.f32 %v5415, %v5467
    %v5469 = vpop.f32.mrb[0].mxu0
    %v5470 = vadd.f32 %v5417, %v5469
    %5471 = vmatprep.mubr.bf16.mxu0 %v3499
    %5472 = vmatmul.mubr.bf16.gmra.mrb[0].mxu0 %v3498
    %v5473 = vpop.f32.mrb[0].mxu0
    %v5474 = vadd.f32 %v5421, %v5473
    %v5475 = vpop.f32.mrb[0].mxu0
    %v5476 = vadd.f32 %v5423, %v5475
    %v5477 = vpop.f32.mrb[0].mxu0
    %v5478 = vadd.f32 %v5425, %v5477
    %v5479 = vpop.f32.mrb[0].mxu0
    %v5480 = vadd.f32 %v5427, %v5479
    %5481 = vdwg.mxu0
    %v5482 = vmax.f32 %v5252, 0.0
    %v5483 = vmax.f32 %v5254, 0.0
    %v5484 = vmax.f32 %v5464, 0.0
    %v5485 = vmax.f32 %v5466, 0.0
    %v5486 = vmax.f32 %v5256, 0.0
    %v5487 = vmax.f32 %v5258, 0.0
    %v5488 = vmax.f32 %v5468, 0.0
    %v5489 = vmax.f32 %v5470, 0.0
    %v5490 = vmax.f32 %v5262, 0.0
    %v5491 = vmax.f32 %v5264, 0.0
    %v5492 = vmax.f32 %v5474, 0.0
    %v5493 = vmax.f32 %v5476, 0.0
    %v5494 = vmax.f32 %v5266, 0.0
    %v5495 = vmax.f32 %v5268, 0.0
    %v5496 = vmax.f32 %v5478, 0.0
    %v5497 = vmax.f32 %v5480, 0.0
    %v5498 = vpack.c.bf16 %v5486, %v5482
    %v5499 = vpack.c.bf16 %v5487, %v5483
    %v5500 = vpack.c.bf16 %v5488, %v5484
    %v5501 = vpack.c.bf16 %v5489, %v5485
    %v5502 = vpack.c.bf16 %v5494, %v5490
    %v5503 = vpack.c.bf16 %v5495, %v5491
    %v5504 = vpack.c.bf16 %v5496, %v5492
    %v5505 = vpack.c.bf16 %v5497, %v5493
    %v5506 = vld [vmem:[#allocation11] sm:$0xf]
    %v5507 = vld [vmem:[#allocation11 + $0x4] sm:$0xf]
    %v5508 = vld [vmem:[#allocation11 + $0x8] sm:$0xf]
    %v5509 = vld [vmem:[#allocation11 + $0xc] sm:$0xf]
    %v5510 = vld [vmem:[#allocation11 + $0x10] sm:$0xf]
    %v5511 = vld [vmem:[#allocation11 + $0x14] sm:$0xf]
    %v5512 = vld [vmem:[#allocation11 + $0x18] sm:$0xf]
    %v5513 = vld [vmem:[#allocation11 + $0x1c] sm:$0xf]
    %v5514 = vld [vmem:[#allocation11 + $0x20] sm:$0xf]
    %v5515 = vld [vmem:[#allocation11 + $0x24] sm:$0xf]
    %v5516 = vld [vmem:[#allocation11 + $0x28] sm:$0xf]
    %v5517 = vld [vmem:[#allocation11 + $0x2c] sm:$0xf]
    %v5518 = vld [vmem:[#allocation11 + $0x30] sm:$0xf]
    %v5519 = vld [vmem:[#allocation11 + $0x34] sm:$0xf]
    %v5520 = vld [vmem:[#allocation11 + $0x38] sm:$0xf]
    %v5521 = vld [vmem:[#allocation11 + $0x3c] sm:$0xf]
    %v5522 = vld [vmem:[#allocation11 + $0x40] sm:$0xf]
    %v5523 = vld [vmem:[#allocation11 + $0x44] sm:$0xf]
    %v5524 = vld [vmem:[#allocation11 + $0x48] sm:$0xf]
    %v5525 = vld [vmem:[#allocation11 + $0x4c] sm:$0xf]
    %v5526 = vld [vmem:[#allocation11 + $0x50] sm:$0xf]
    %v5527 = vld [vmem:[#allocation11 + $0x54] sm:$0xf]
    %v5528 = vld [vmem:[#allocation11 + $0x58] sm:$0xf]
    %v5529 = vld [vmem:[#allocation11 + $0x5c] sm:$0xf]
    %v5530 = vld [vmem:[#allocation11 + $0x60] sm:$0xf]
    %v5531 = vld [vmem:[#allocation11 + $0x64] sm:$0xf]
    %v5532 = vld [vmem:[#allocation11 + $0x68] sm:$0xf]
    %v5533 = vld [vmem:[#allocation11 + $0x6c] sm:$0xf]
    %v5534 = vld [vmem:[#allocation11 + $0x70] sm:$0xf]
    %v5535 = vld [vmem:[#allocation11 + $0x74] sm:$0xf]
    %v5536 = vld [vmem:[#allocation11 + $0x78] sm:$0xf]
    %v5537 = vld [vmem:[#allocation11 + $0x7c] sm:$0xf]
    %v5538 = vld [vmem:[#allocation11 + $0x80] sm:$0xf]
    %v5539 = vld [vmem:[#allocation11 + $0x84] sm:$0xf]
    %v5540 = vld [vmem:[#allocation11 + $0x88] sm:$0xf]
    %v5541 = vld [vmem:[#allocation11 + $0x8c] sm:$0xf]
    %v5542 = vld [vmem:[#allocation11 + $0x90] sm:$0xf]
    %v5543 = vld [vmem:[#allocation11 + $0x94] sm:$0xf]
    %v5544 = vld [vmem:[#allocation11 + $0x98] sm:$0xf]
    %v5545 = vld [vmem:[#allocation11 + $0x9c] sm:$0xf]
    %v5546 = vld [vmem:[#allocation11 + $0xa0] sm:$0xf]
    %v5547 = vld [vmem:[#allocation11 + $0xa4] sm:$0xf]
    %v5548 = vld [vmem:[#allocation11 + $0xa8] sm:$0xf]
    %v5549 = vld [vmem:[#allocation11 + $0xac] sm:$0xf]
    %v5550 = vld [vmem:[#allocation11 + $0xb0] sm:$0xf]
    %v5551 = vld [vmem:[#allocation11 + $0xb4] sm:$0xf]
    %v5552 = vld [vmem:[#allocation11 + $0xb8] sm:$0xf]
    %v5553 = vld [vmem:[#allocation11 + $0xbc] sm:$0xf]
    %v5554 = vld [vmem:[#allocation11 + $0xc0] sm:$0xf]
    %v5555 = vld [vmem:[#allocation11 + $0xc4] sm:$0xf]
    %v5556 = vld [vmem:[#allocation11 + $0xc8] sm:$0xf]
    %v5557 = vld [vmem:[#allocation11 + $0xcc] sm:$0xf]
    %v5558 = vld [vmem:[#allocation11 + $0xd0] sm:$0xf]
    %v5559 = vld [vmem:[#allocation11 + $0xd4] sm:$0xf]
    %v5560 = vld [vmem:[#allocation11 + $0xd8] sm:$0xf]
    %v5561 = vld [vmem:[#allocation11 + $0xdc] sm:$0xf]
    %v5562 = vld [vmem:[#allocation11 + $0xe0] sm:$0xf]
    %v5563 = vld [vmem:[#allocation11 + $0xe4] sm:$0xf]
    %v5564 = vld [vmem:[#allocation11 + $0xe8] sm:$0xf]
    %v5565 = vld [vmem:[#allocation11 + $0xec] sm:$0xf]
    %v5566 = vld [vmem:[#allocation11 + $0xf0] sm:$0xf]
    %v5567 = vld [vmem:[#allocation11 + $0xf4] sm:$0xf]
    %v5568 = vld [vmem:[#allocation11 + $0xf8] sm:$0xf]
    %v5569 = vld [vmem:[#allocation11 + $0xfc] sm:$0xf]
    %v5570 = vld [vmem:[#allocation13] sm:$0x1]
    %v5572 = vlaneseq
    %v5573 = vshrl.u32 %v5572, 7
    %v5574 = vsub.s32 0, %v5573
    %v5575 = vrot.slane %v5570, %v5574
    %v5641 = vunpack.c.l.b16 %v5506
    %v5642 = vunpack.c.l.b16 %v5507
    %v5643 = vunpack.c.l.b16 %v5508
    %v5644 = vunpack.c.l.b16 %v5509
    %v5645 = vunpack.c.l.b16 %v5510
    %v5646 = vunpack.c.l.b16 %v5511
    %v5647 = vunpack.c.l.b16 %v5512
    %v5648 = vunpack.c.l.b16 %v5513
    %v5649 = vunpack.c.l.b16 %v5514
    %v5650 = vunpack.c.l.b16 %v5515
    %v5651 = vunpack.c.l.b16 %v5516
    %v5652 = vunpack.c.l.b16 %v5517
    %v5653 = vunpack.c.l.b16 %v5518
    %v5654 = vunpack.c.l.b16 %v5519
    %v5655 = vunpack.c.l.b16 %v5520
    %v5656 = vunpack.c.l.b16 %v5521
    %v5657 = vunpack.c.l.b16 %v5522
    %v5658 = vunpack.c.l.b16 %v5523
    %v5659 = vunpack.c.l.b16 %v5524
    %v5660 = vunpack.c.l.b16 %v5525
    %v5661 = vunpack.c.l.b16 %v5526
    %v5662 = vunpack.c.l.b16 %v5527
    %v5663 = vunpack.c.l.b16 %v5528
    %v5664 = vunpack.c.l.b16 %v5529
    %v5665 = vunpack.c.l.b16 %v5530
    %v5666 = vunpack.c.l.b16 %v5531
    %v5667 = vunpack.c.l.b16 %v5532
    %v5668 = vunpack.c.l.b16 %v5533
    %v5669 = vunpack.c.l.b16 %v5534
    %v5670 = vunpack.c.l.b16 %v5535
    %v5671 = vunpack.c.l.b16 %v5536
    %v5672 = vunpack.c.l.b16 %v5537
    %v5673 = vunpack.c.l.b16 %v5538
    %v5674 = vunpack.c.l.b16 %v5539
    %v5675 = vunpack.c.l.b16 %v5540
    %v5676 = vunpack.c.l.b16 %v5541
    %v5677 = vunpack.c.l.b16 %v5542
    %v5678 = vunpack.c.l.b16 %v5543
    %v5679 = vunpack.c.l.b16 %v5544
    %v5680 = vunpack.c.l.b16 %v5545
    %v5681 = vunpack.c.l.b16 %v5546
    %v5682 = vunpack.c.l.b16 %v5547
    %v5683 = vunpack.c.l.b16 %v5548
    %v5684 = vunpack.c.l.b16 %v5549
    %v5685 = vunpack.c.l.b16 %v5550
    %v5686 = vunpack.c.l.b16 %v5551
    %v5687 = vunpack.c.l.b16 %v5552
    %v5688 = vunpack.c.l.b16 %v5553
    %v5689 = vunpack.c.l.b16 %v5554
    %v5690 = vunpack.c.l.b16 %v5555
    %v5691 = vunpack.c.l.b16 %v5556
    %v5692 = vunpack.c.l.b16 %v5557
    %v5693 = vunpack.c.l.b16 %v5558
    %v5694 = vunpack.c.l.b16 %v5559
    %v5695 = vunpack.c.l.b16 %v5560
    %v5696 = vunpack.c.l.b16 %v5561
    %v5697 = vunpack.c.l.b16 %v5562
    %v5698 = vunpack.c.l.b16 %v5563
    %v5699 = vunpack.c.l.b16 %v5564
    %v5700 = vunpack.c.l.b16 %v5565
    %v5701 = vunpack.c.l.b16 %v5566
    %v5702 = vunpack.c.l.b16 %v5567
    %v5703 = vunpack.c.l.b16 %v5568
    %v5704 = vunpack.c.l.b16 %v5569
    %v5705 = vpack.c.b16 %v5642, %v5641
    %v5706 = vpack.c.b16 %v5644, %v5643
    %v5707 = vpack.c.b16 %v5646, %v5645
    %v5708 = vpack.c.b16 %v5648, %v5647
    %v5709 = vpack.c.b16 %v5650, %v5649
    %v5710 = vpack.c.b16 %v5652, %v5651
    %v5711 = vpack.c.b16 %v5654, %v5653
    %v5712 = vpack.c.b16 %v5656, %v5655
    %v5713 = vpack.c.b16 %v5658, %v5657
    %v5714 = vpack.c.b16 %v5660, %v5659
    %v5715 = vpack.c.b16 %v5662, %v5661
    %v5716 = vpack.c.b16 %v5664, %v5663
    %v5717 = vpack.c.b16 %v5666, %v5665
    %v5718 = vpack.c.b16 %v5668, %v5667
    %v5719 = vpack.c.b16 %v5670, %v5669
    %v5720 = vpack.c.b16 %v5672, %v5671
    %v5721 = vpack.c.b16 %v5674, %v5673
    %v5722 = vpack.c.b16 %v5676, %v5675
    %v5723 = vpack.c.b16 %v5678, %v5677
    %v5724 = vpack.c.b16 %v5680, %v5679
    %v5725 = vpack.c.b16 %v5682, %v5681
    %v5726 = vpack.c.b16 %v5684, %v5683
    %v5727 = vpack.c.b16 %v5686, %v5685
    %v5728 = vpack.c.b16 %v5688, %v5687
    %v5729 = vpack.c.b16 %v5690, %v5689
    %v5730 = vpack.c.b16 %v5692, %v5691
    %v5731 = vpack.c.b16 %v5694, %v5693
    %v5732 = vpack.c.b16 %v5696, %v5695
    %v5733 = vpack.c.b16 %v5698, %v5697
    %v5734 = vpack.c.b16 %v5700, %v5699
    %v5735 = vpack.c.b16 %v5702, %v5701
    %v5736 = vpack.c.b16 %v5704, %v5703
    %5769 = vmatprep.subr.bf16.mxu0 0
    %5770 = vmatpush1.bf16.msra.mxu0 %v5705
    %5771 = vmatprep.subr.bf16.mxu0 0
    %5772 = vmatpush1.bf16.msra.mxu0 %v5706
    %5773 = vmatprep.subr.bf16.mxu0 0
    %5774 = vmatpush1.bf16.msra.mxu0 %v5707
    %5775 = vmatprep.subr.bf16.mxu0 0
    %5776 = vmatpush1.bf16.msra.mxu0 %v5708
    %5777 = vmatprep.subr.bf16.mxu0 0
    %5778 = vmatpush1.bf16.msra.mxu0 %v5709
    %5779 = vmatprep.subr.bf16.mxu0 0
    %5780 = vmatpush1.bf16.msra.mxu0 %v5710
    %5781 = vmatprep.subr.bf16.mxu0 0
    %5782 = vmatpush1.bf16.msra.mxu0 %v5711
    %5783 = vmatprep.subr.bf16.mxu0 0
    %5784 = vmatpush1.bf16.msra.mxu0 %v5712
    %5785 = vmatprep.subr.bf16.mxu0 0
    %5786 = vmatpush1.bf16.msra.mxu0 %v5713
    %5787 = vmatprep.subr.bf16.mxu0 0
    %5788 = vmatpush1.bf16.msra.mxu0 %v5714
    %5789 = vmatprep.subr.bf16.mxu0 0
    %5790 = vmatpush1.bf16.msra.mxu0 %v5715
    %5791 = vmatprep.subr.bf16.mxu0 0
    %5792 = vmatpush1.bf16.msra.mxu0 %v5716
    %5793 = vmatprep.subr.bf16.mxu0 0
    %5794 = vmatpush1.bf16.msra.mxu0 %v5717
    %5795 = vmatprep.subr.bf16.mxu0 0
    %5796 = vmatpush1.bf16.msra.mxu0 %v5718
    %5797 = vmatprep.subr.bf16.mxu0 0
    %5798 = vmatpush1.bf16.msra.mxu0 %v5719
    %5799 = vmatprep.subr.bf16.mxu0 0
    %5800 = vmatpush1.bf16.msra.mxu0 %v5720
    %5801 = vmatprep.mubr.bf16.mxu0 %v5499
    %5802 = vmatmul.mubr.bf16.gmra.mrb[0].mxu0 %v5498
    %v5803 = vpop.f32.mrb[0].mxu0
    %v5804 = vadd.f32 %v5575, %v5803
    %v5805 = vpop.f32.mrb[0].mxu0
    %v5806 = vpop.f32.mrb[0].mxu0
    %v5807 = vadd.f32 %v5575, %v5806
    %v5808 = vpop.f32.mrb[0].mxu0
    %5809 = vmatprep.mubr.bf16.mxu0 %v5503
    %5810 = vmatmul.mubr.bf16.gmra.mrb[0].mxu0 %v5502
    %v5811 = vpop.f32.mrb[0].mxu0
    %v5812 = vadd.f32 %v5575, %v5811
    %v5813 = vpop.f32.mrb[0].mxu0
    %v5814 = vpop.f32.mrb[0].mxu0
    %v5815 = vadd.f32 %v5575, %v5814
    %v5816 = vpop.f32.mrb[0].mxu0
    %5817 = vdwg.mxu0
    %5818 = vmatprep.subr.bf16.mxu0 0
    %5819 = vmatpush1.bf16.msra.mxu0 %v5721
    %5820 = vmatprep.subr.bf16.mxu0 0
    %5821 = vmatpush1.bf16.msra.mxu0 %v5722
    %5822 = vmatprep.subr.bf16.mxu0 0
    %5823 = vmatpush1.bf16.msra.mxu0 %v5723
    %5824 = vmatprep.subr.bf16.mxu0 0
    %5825 = vmatpush1.bf16.msra.mxu0 %v5724
    %5826 = vmatprep.subr.bf16.mxu0 0
    %5827 = vmatpush1.bf16.msra.mxu0 %v5725
    %5828 = vmatprep.subr.bf16.mxu0 0
    %5829 = vmatpush1.bf16.msra.mxu0 %v5726
    %5830 = vmatprep.subr.bf16.mxu0 0
    %5831 = vmatpush1.bf16.msra.mxu0 %v5727
    %5832 = vmatprep.subr.bf16.mxu0 0
    %5833 = vmatpush1.bf16.msra.mxu0 %v5728
    %5834 = vmatprep.subr.bf16.mxu0 0
    %5835 = vmatpush1.bf16.msra.mxu0 %v5729
    %5836 = vmatprep.subr.bf16.mxu0 0
    %5837 = vmatpush1.bf16.msra.mxu0 %v5730
    %5838 = vmatprep.subr.bf16.mxu0 0
    %5839 = vmatpush1.bf16.msra.mxu0 %v5731
    %5840 = vmatprep.subr.bf16.mxu0 0
    %5841 = vmatpush1.bf16.msra.mxu0 %v5732
    %5842 = vmatprep.subr.bf16.mxu0 0
    %5843 = vmatpush1.bf16.msra.mxu0 %v5733
    %5844 = vmatprep.subr.bf16.mxu0 0
    %5845 = vmatpush1.bf16.msra.mxu0 %v5734
    %5846 = vmatprep.subr.bf16.mxu0 0
    %5847 = vmatpush1.bf16.msra.mxu0 %v5735
    %5848 = vmatprep.subr.bf16.mxu0 0
    %5849 = vmatpush1.bf16.msra.mxu0 %v5736
    %5850 = vmatprep.mubr.bf16.mxu0 %v5501
    %5851 = vmatmul.mubr.bf16.gmra.mrb[0].mxu0 %v5500
    %v5852 = vpop.f32.mrb[0].mxu0
    %v5853 = vadd.f32 %v5804, %v5852
    %v5854 = vpop.f32.mrb[0].mxu0
    %v5855 = vpop.f32.mrb[0].mxu0
    %v5856 = vadd.f32 %v5807, %v5855
    %v5857 = vpop.f32.mrb[0].mxu0
    %5858 = vmatprep.mubr.bf16.mxu0 %v5505
    %5859 = vmatmul.mubr.bf16.gmra.mrb[0].mxu0 %v5504
    %v5860 = vpop.f32.mrb[0].mxu0
    %v5861 = vadd.f32 %v5812, %v5860
    %v5862 = vpop.f32.mrb[0].mxu0
    %v5863 = vpop.f32.mrb[0].mxu0
    %v5864 = vadd.f32 %v5815, %v5863
    %v5865 = vpop.f32.mrb[0].mxu0
    %5866 = vdwg.mxu0
    %5867 = vst [vmem:[#allocation14] sm:$0xff] %v5853
    %5868 = vst [vmem:[#allocation14 + $0x8] sm:$0xff] %v5856
    %5869 = vst [vmem:[#allocation14 + $0x10] sm:$0xff] %v5861
    %5870 = vst [vmem:[#allocation14 + $0x18] sm:$0xff] %v5864
    // Predicated region
    $region58: #{tpu_custom_call.1} parent=1 // pred_check
      _
    $region59: #{tpu_custom_call.1} parent=1 // pred_check_branch
      %5872 = sbr.rel (0) target = $region61
    $region60: #{tpu_custom_call.1} parent=1 // pred_region
      %s5874 = ssub.s32 512, 512
      %5875 = vsyncadd [#allocation4], %s5874
      %s5876 = sshll.u32 [#allocation14], 4
      %s5877 = int_to_ptr.vmem [resolvable:$true] %s5876
      %5882 = dma.vmem_to_hbm [thread:$0]  %s5877, 512, %s7, [#allocation4], 128, 128, 8
    $region61: #{tpu_custom_call.1} parent=1 // pred_fallthru
      _
    // Predicated region
    $region62: #{tpu_custom_call.1} parent=1 // pred_check
      _
    $region63: #{tpu_custom_call.1} parent=1 // pred_check_branch
      %5884 = sbr.rel (0) target = $region65
    $region64: #{tpu_custom_call.1} parent=1 // pred_region
      %5885 = dma.done [#allocation4], 512
    $region65: #{tpu_custom_call.1} parent=1 // pred_fallthru
      _
    %5886 = vsyncpa [#allocation3], 1
    %5887 = vsyncpa [#allocation6], 1
    %5888 = vsyncpa [#allocation9], 1
    %5889 = vsyncpa [#allocation12], 1
    %5890 = vsyncpa [#allocation4], 1

</llo_original>
